<compile_context>
chip_gen: v7x
topology: tpu7x:2x2x1
jax: 0.10.0
libtpu: 0.0.40
codegen_flags: <defaults>
</compile_context>

<pallas_src>
import jax
import jax.numpy as jnp
from jax.experimental import pallas as pl
from jax.experimental.pallas import tpu as pltpu

# Model hyper-parameters (small, consistent with the module).
HID = 32
N_HEADS = 4
HEAD_DIM = HID // N_HEADS
PF_DIM = 64
EPS = 1e-5


# ---------------------------------------------------------------------------
# Fused decoder-layer kernel (whole batch in one grid step)
# ---------------------------------------------------------------------------
def _make_decoder_layer_kernel(B, Tq, Tk):
    inv_scale = 1.0 / (float(HEAD_DIM) ** 0.5)          # folded constant

    def kernel(
        trg_ref, enc_ref, tmask_ref, smask_ref,
        wqkv_s_ref, bqkv_s_ref, wo_s_ref, bo_s_ref, g1_ref, be1_ref,
        wq_c_ref, bq_c_ref, wkv_c_ref, bkv_c_ref, wo_c_ref, bo_c_ref, g2_ref, be2_ref,
        w1_ref, bf1_ref, w2_ref, bf2_ref, g3_ref, be3_ref,
        out_ref, attn_ref,
    ):
        X = trg_ref[...]                                 # (B*Tq, H)
        E = enc_ref[...]                                 # (B*Tk, H)

        def layer_norm(x, g_ref, b_ref):
            mean = jnp.mean(x, axis=-1, keepdims=True)
            c = x - mean
            var = jnp.mean(c * c, axis=-1, keepdims=True)
            return c * jax.lax.rsqrt(var + EPS) * g_ref[0] + b_ref[0]

        # Additive mask biases (0 = keep, -1e10 = masked), computed once/batch.
        tbias = [(tmask_ref[b] - 1.0) * 1e10 for b in range(B)]   # (Tq, Tq)
        sbias = [(smask_ref[b] - 1.0) * 1e10 for b in range(B)]   # (1, Tk)

        def attention(Q, K, V, bias_list, Tkv, wo_ref, store_ref=None):
            """Q: (B*Tq,H); K/V: (B*Tkv,H).  Returns (B*Tq,H) (before bo)."""
            parts = []
            for b in range(B):                           # static unroll
                rq = slice(b * Tq, (b + 1) * Tq)
                rk = slice(b * Tkv, (b + 1) * Tkv)
                acc = None
                for h in range(N_HEADS):                 # static unroll
                    lo = h * HEAD_DIM
                    hi = lo + HEAD_DIM
                    Qh = Q[rq, lo:hi]                    # (Tq, dh)
                    Kh = K[rk, lo:hi]                    # (Tkv, dh)
                    Vh = V[rk, lo:hi]                    # (Tkv, dh)
                    energy = (jnp.dot(Qh, Kh.T, preferred_element_type=jnp.float32)
                              * inv_scale + bias_list[b])
                    m = jnp.max(energy, axis=-1, keepdims=True)
                    p = jnp.exp(energy - m)
                    attn = p / jnp.sum(p, axis=-1, keepdims=True)
                    if store_ref is not None:            # only cross-attn stores probs
                        store_ref[b, h] = attn
                    ctx_h = jnp.dot(attn, Vh, preferred_element_type=jnp.float32)
                    # Per-head output projection (sublane-aligned Wo slice):
                    contrib = jnp.dot(ctx_h, wo_ref[lo:hi, :],
                                      preferred_element_type=jnp.float32)
                    acc = contrib if acc is None else acc + contrib
                parts.append(acc)                        # (Tq, H)
            return parts[0] if B == 1 else jnp.concatenate(parts, axis=0)

        # ---- Self-attention (fused QKV projection), probs discarded ----
        qkv = (jnp.dot(X, wqkv_s_ref[...], preferred_element_type=jnp.float32)
               + bqkv_s_ref[0])                          # (B*Tq, 3H)
        sa = attention(qkv[:, :HID], qkv[:, HID:2 * HID], qkv[:, 2 * HID:],
                       tbias, Tq, wo_s_ref) + bo_s_ref[0]
        x1 = layer_norm(X + sa, g1_ref, be1_ref)

        # ---- Cross-attention: Q from x1, fused K/V from encoder output ----
        Qc = (jnp.dot(x1, wq_c_ref[...], preferred_element_type=jnp.float32)
              + bq_c_ref[0])                             # (B*Tq, H)
        kv = (jnp.dot(E, wkv_c_ref[...], preferred_element_type=jnp.float32)
              + bkv_c_ref[0])                            # (B*Tk, 2H)
        ca = attention(Qc, kv[:, :HID], kv[:, HID:],
                       sbias, Tk, wo_c_ref, store_ref=attn_ref) + bo_c_ref[0]
        x2 = layer_norm(x1 + ca, g2_ref, be2_ref)

        # ---- Positionwise feedforward ----
        hdn = jnp.maximum(
            jnp.dot(x2, w1_ref[...], preferred_element_type=jnp.float32) + bf1_ref[0],
            0.0)
        ff = jnp.dot(hdn, w2_ref[...], preferred_element_type=jnp.float32) + bf2_ref[0]

        out_ref[...] = layer_norm(x2 + ff, g3_ref, be3_ref)

    return kernel


# ---------------------------------------------------------------------------
# Wrapper: single pallas_call, single grid step, whole layer fused
# ---------------------------------------------------------------------------
def decoder_layer(trg, enc_src, trg_mask, src_mask, params):
    """trg: (B,Tq,H) f32; enc_src: (B,Tk,H) f32;
    trg_mask: (B,1,Tq,Tq); src_mask: (B,1,1,Tk) (0/1 masks, any float/int)."""
    B, Tq, H = trg.shape
    Tk = enc_src.shape[1]

    wqkv_s, bqkv_s, wo_s, bo_s = params["self_attn"]
    wq_c, bq_c, wkv_c, bkv_c, wo_c, bo_c = params["cross_attn"]
    g1, be1 = params["norm1"]
    g2, be2 = params["norm2"]
    g3, be3 = params["norm3"]
    w1, bf1, w2, bf2 = params["ffn"]

    weights = (wqkv_s, bqkv_s, wo_s, bo_s, g1, be1,
               wq_c, bq_c, wkv_c, bkv_c, wo_c, bo_c, g2, be2,
               w1, bf1, w2, bf2, g3, be3)

    # Free reshapes (contiguous dims only): flatten rows, squeeze mask dims.
    trg_flat = trg.reshape(B * Tq, H)
    enc_flat = enc_src.reshape(B * Tk, H)
    tmask = trg_mask.astype(jnp.float32).reshape(B, Tq, Tq)
    smask = src_mask.astype(jnp.float32).reshape(B, 1, Tk)

    inputs = (trg_flat, enc_flat, tmask, smask) + weights

    def full_spec(a):
        n = a.ndim
        return pl.BlockSpec(a.shape, lambda i, _n=n: (0,) * _n)

    out_specs = (
        pl.BlockSpec((B * Tq, H), lambda i: (0, 0)),
        pl.BlockSpec((B, N_HEADS, Tq, Tk), lambda i: (0, 0, 0, 0)),
    )
    out_shape = (
        jax.ShapeDtypeStruct((B * Tq, H), jnp.float32),
        jax.ShapeDtypeStruct((B, N_HEADS, Tq, Tk), jnp.float32),
    )

    out_flat, attn = pl.pallas_call(
        _make_decoder_layer_kernel(B, Tq, Tk),
        grid=(1,),
        in_specs=[full_spec(a) for a in inputs],
        out_specs=out_specs,
        out_shape=out_shape,
        compiler_params=pltpu.CompilerParams(dimension_semantics=("arbitrary",)),
    )(*inputs)

    return out_flat.reshape(B, Tq, H), attn


# ---------------------------------------------------------------------------
# Deterministic parameter construction (fused weight layout)
# ---------------------------------------------------------------------------
def make_params(key):
    keys = jax.random.split(key, 10)
    k = iter(keys)

    def lin(kk, d_in, d_out):
        w = 0.02 * jax.random.normal(kk, (d_in, d_out), jnp.float32)
        b = jnp.zeros((1, d_out), jnp.float32)
        return w, b

    # Self-attention: independent q/k/v weights fused into one (H, 3H) matmul.
    wq, bq = lin(next(k), HID, HID)
    wk, bk = lin(next(k), HID, HID)
    wv, bv = lin(next(k), HID, HID)
    wo_s, bo_s = lin(next(k), HID, HID)
    wqkv = jnp.concatenate([wq, wk, wv], axis=1)        # (H, 3H)
    bqkv = jnp.concatenate([bq, bk, bv], axis=1)        # (1, 3H)

    # Cross-attention: Q separate (different input), K/V fused into (H, 2H).
    wq_c, bq_c = lin(next(k), HID, HID)
    wk_c, bk_c = lin(next(k), HID, HID)
    wv_c, bv_c = lin(next(k), HID, HID)
    wo_c, bo_c = lin(next(k), HID, HID)
    wkv = jnp.concatenate([wk_c, wv_c], axis=1)         # (H, 2H)
    bkv = jnp.concatenate([bk_c, bv_c], axis=1)         # (1, 2H)

    w1, b1 = lin(next(k), HID, PF_DIM)
    w2, b2 = lin(next(k), PF_DIM, HID)

    def ln():
        return (jnp.ones((1, HID), jnp.float32), jnp.zeros((1, HID), jnp.float32))

    return {
        "self_attn": (wqkv, bqkv, wo_s, bo_s),
        "cross_attn": (wq_c, bq_c, wkv, bkv, wo_c, bo_c),
        "norm1": ln(), "norm2": ln(), "norm3": ln(),
        "ffn": (w1, b1, w2, b2),
    }


# ---------------------------------------------------------------------------
# Pure-JAX reference (mirrors the PyTorch module) for a correctness check
# ---------------------------------------------------------------------------
def _mha_ref(xq, xkv, mask, wq, bq, wk, bk, wv, bv, wo, bo):
    B, Tq, H = xq.shape
    Tk = xkv.shape[1]
    Q = (xq @ wq + bq).reshape(B, Tq, N_HEADS, HEAD_DIM).transpose(0, 2, 1, 3)
    K = (xkv @ wk + bk).reshape(B, Tk, N_HEADS, HEAD_DIM).transpose(0, 2, 1, 3)
    V = (xkv @ wv + bv).reshape(B, Tk, N_HEADS, HEAD_DIM).transpose(0, 2, 1, 3)
    energy = jnp.einsum('bhqd,bhkd->bhqk', Q, K) / jnp.sqrt(jnp.float32(HEAD_DIM))
    energy = jnp.where(mask == 0, jnp.float32(-1e10), energy)
    attn = jax.nn.softmax(energy, axis=-1)
    ctx = jnp.einsum('bhqk,bhkd->bhqd', attn, V).transpose(0, 2, 1, 3).reshape(B, Tq, H)
    return ctx @ wo + bo, attn


def _ln_ref(x, g, b):
    mean = x.mean(-1, keepdims=True)
    var = ((x - mean) ** 2).mean(-1, keepdims=True)
    return (x - mean) / jnp.sqrt(var + EPS) * g + b


def decoder_layer_ref(trg, enc_src, trg_mask, src_mask, params):
    wqkv, bqkv, wo_s, bo_s = params["self_attn"]
    wq_c, bq_c, wkv, bkv, wo_c, bo_c = params["cross_attn"]
    sa, _ = _mha_ref(trg, trg, trg_mask,
                     wqkv[:, :HID], bqkv[:, :HID],
                     wqkv[:, HID:2 * HID], bqkv[:, HID:2 * HID],
                     wqkv[:, 2 * HID:], bqkv[:, 2 * HID:], wo_s, bo_s)
    x1 = _ln_ref(trg + sa, *params["norm1"])
    ca, attn = _mha_ref(x1, enc_src, src_mask,
                        wq_c, bq_c, wkv[:, :HID], bkv[:, :HID],
                        wkv[:, HID:], bkv[:, HID:], wo_c, bo_c)
    x2 = _ln_ref(x1 + ca, *params["norm2"])
    w1, b1, w2, b2 = params["ffn"]
    ff = jnp.maximum(x2 @ w1 + b1, 0.0) @ w2 + b2
    x3 = _ln_ref(x2 + ff, *params["norm3"])
    return x3, attn


# ---------------------------------------------------------------------------
if __name__ == "__main__":
    B, Tq, Tk = 2, 8, 8

    root = jax.random.PRNGKey(0)
    k_trg, k_enc, k_par = jax.random.split(root, 3)

    trg = jax.random.normal(k_trg, (B, Tq, HID), jnp.float32)
    enc_src = jax.random.normal(k_enc, (B, Tk, HID), jnp.float32)

    # Causal target mask (B,1,Tq,Tq); all-ones source padding mask (B,1,1,Tk).
    trg_mask = jnp.broadcast_to(
        jnp.tril(jnp.ones((Tq, Tq), jnp.float32))[None, None], (B, 1, Tq, Tq))
    src_mask = jnp.ones((B, 1, 1, Tk), jnp.float32)

    params = make_params(k_par)

    out, attention = jax.jit(decoder_layer)(trg, enc_src, trg_mask, src_mask, params)
    jax.block_until_ready((out, attention))

    ref_out, ref_attn = decoder_layer_ref(trg, enc_src, trg_mask, src_mask, params)

    assert out.shape == (B, Tq, HID)
    assert attention.shape == (B, N_HEADS, Tq, Tk)
    assert bool(jnp.all(jnp.isfinite(out)))
    # Softmax rows of the cross-attention must sum to 1 (exact divide kept).
    assert bool(jnp.allclose(jnp.sum(attention, axis=-1), 1.0, atol=1e-5))
    # Match the pure-JAX (PyTorch-equivalent) reference.
    assert bool(jnp.allclose(out, ref_out, atol=2e-2, rtol=2e-2))
    assert bool(jnp.allclose(attention, ref_attn, atol=2e-2, rtol=2e-2))

    print("KERNEL_OK")
</pallas_src>

<mosaic_0001>
module attributes {stable_mosaic.version = 11 : i64} {
  func.func @kernel(%arg0: i32, %arg1: memref<16x32xf32, #tpu.memory_space<vmem>>, %arg2: memref<16x32xf32, #tpu.memory_space<vmem>>, %arg3: memref<2x8x8xf32, #tpu.memory_space<vmem>>, %arg4: memref<2x1x8xf32, #tpu.memory_space<vmem>>, %arg5: memref<32x96xf32, #tpu.memory_space<vmem>>, %arg6: memref<1x96xf32, #tpu.memory_space<vmem>>, %arg7: memref<32x32xf32, #tpu.memory_space<vmem>>, %arg8: memref<1x32xf32, #tpu.memory_space<vmem>>, %arg9: memref<1x32xf32, #tpu.memory_space<vmem>>, %arg10: memref<1x32xf32, #tpu.memory_space<vmem>>, %arg11: memref<32x32xf32, #tpu.memory_space<vmem>>, %arg12: memref<1x32xf32, #tpu.memory_space<vmem>>, %arg13: memref<32x64xf32, #tpu.memory_space<vmem>>, %arg14: memref<1x64xf32, #tpu.memory_space<vmem>>, %arg15: memref<32x32xf32, #tpu.memory_space<vmem>>, %arg16: memref<1x32xf32, #tpu.memory_space<vmem>>, %arg17: memref<1x32xf32, #tpu.memory_space<vmem>>, %arg18: memref<1x32xf32, #tpu.memory_space<vmem>>, %arg19: memref<32x64xf32, #tpu.memory_space<vmem>>, %arg20: memref<1x64xf32, #tpu.memory_space<vmem>>, %arg21: memref<64x32xf32, #tpu.memory_space<vmem>>, %arg22: memref<1x32xf32, #tpu.memory_space<vmem>>, %arg23: memref<1x32xf32, #tpu.memory_space<vmem>>, %arg24: memref<1x32xf32, #tpu.memory_space<vmem>>, %arg25: memref<16x32xf32, #tpu.memory_space<vmem>>, %arg26: memref<2x4x8x8xf32, #tpu.memory_space<vmem>>) attributes {dimension_semantics = [#tpu.dimension_semantics<arbitrary>], iteration_bounds = array<i64: 1>, scalar_prefetch = 0 : i64, scratch_operands = 0 : i64, tpu.core_type = #tpu.core_type<tc>, window_params = [{pipeline_mode = #tpu.pipeline_mode<synchronous>, transform_indices = @transform_0, window_bounds = array<i64: 16, 32>}, {pipeline_mode = #tpu.pipeline_mode<synchronous>, transform_indices = @transform_1, window_bounds = array<i64: 16, 32>}, {pipeline_mode = #tpu.pipeline_mode<synchronous>, transform_indices = @transform_2, window_bounds = array<i64: 2, 8, 8>}, {pipeline_mode = #tpu.pipeline_mode<synchronous>, transform_indices = @transform_3, window_bounds = array<i64: 2, 1, 8>}, {pipeline_mode = #tpu.pipeline_mode<synchronous>, transform_indices = @transform_4, window_bounds = array<i64: 32, 96>}, {pipeline_mode = #tpu.pipeline_mode<synchronous>, transform_indices = @transform_5, window_bounds = array<i64: 1, 96>}, {pipeline_mode = #tpu.pipeline_mode<synchronous>, transform_indices = @transform_6, window_bounds = array<i64: 32, 32>}, {pipeline_mode = #tpu.pipeline_mode<synchronous>, transform_indices = @transform_7, window_bounds = array<i64: 1, 32>}, {pipeline_mode = #tpu.pipeline_mode<synchronous>, transform_indices = @transform_8, window_bounds = array<i64: 1, 32>}, {pipeline_mode = #tpu.pipeline_mode<synchronous>, transform_indices = @transform_9, window_bounds = array<i64: 1, 32>}, {pipeline_mode = #tpu.pipeline_mode<synchronous>, transform_indices = @transform_10, window_bounds = array<i64: 32, 32>}, {pipeline_mode = #tpu.pipeline_mode<synchronous>, transform_indices = @transform_11, window_bounds = array<i64: 1, 32>}, {pipeline_mode = #tpu.pipeline_mode<synchronous>, transform_indices = @transform_12, window_bounds = array<i64: 32, 64>}, {pipeline_mode = #tpu.pipeline_mode<synchronous>, transform_indices = @transform_13, window_bounds = array<i64: 1, 64>}, {pipeline_mode = #tpu.pipeline_mode<synchronous>, transform_indices = @transform_14, window_bounds = array<i64: 32, 32>}, {pipeline_mode = #tpu.pipeline_mode<synchronous>, transform_indices = @transform_15, window_bounds = array<i64: 1, 32>}, {pipeline_mode = #tpu.pipeline_mode<synchronous>, transform_indices = @transform_16, window_bounds = array<i64: 1, 32>}, {pipeline_mode = #tpu.pipeline_mode<synchronous>, transform_indices = @transform_17, window_bounds = array<i64: 1, 32>}, {pipeline_mode = #tpu.pipeline_mode<synchronous>, transform_indices = @transform_18, window_bounds = array<i64: 32, 64>}, {pipeline_mode = #tpu.pipeline_mode<synchronous>, transform_indices = @transform_19, window_bounds = array<i64: 1, 64>}, {pipeline_mode = #tpu.pipeline_mode<synchronous>, transform_indices = @transform_20, window_bounds = array<i64: 64, 32>}, {pipeline_mode = #tpu.pipeline_mode<synchronous>, transform_indices = @transform_21, window_bounds = array<i64: 1, 32>}, {pipeline_mode = #tpu.pipeline_mode<synchronous>, transform_indices = @transform_22, window_bounds = array<i64: 1, 32>}, {pipeline_mode = #tpu.pipeline_mode<synchronous>, transform_indices = @transform_23, window_bounds = array<i64: 1, 32>}, {pipeline_mode = #tpu.pipeline_mode<synchronous>, transform_indices = @transform_24, window_bounds = array<i64: 16, 32>}, {pipeline_mode = #tpu.pipeline_mode<synchronous>, transform_indices = @transform_25, window_bounds = array<i64: 2, 4, 8, 8>}]} {
    %c0 = arith.constant 0 : index
    %c0_0 = arith.constant 0 : index
    %0 = vector.load %arg1[%c0, %c0_0] : memref<16x32xf32, #tpu.memory_space<vmem>>, vector<16x32xf32>
    %c0_1 = arith.constant 0 : index
    %c0_2 = arith.constant 0 : index
    %1 = vector.load %arg2[%c0_1, %c0_2] : memref<16x32xf32, #tpu.memory_space<vmem>>, vector<16x32xf32>
    %c0_3 = arith.constant 0 : index
    %c0_4 = arith.constant 0 : index
    %c0_5 = arith.constant 0 : index
    %2 = vector.load %arg3[%c0_3, %c0_4, %c0_5] : memref<2x8x8xf32, #tpu.memory_space<vmem>>, vector<1x8x8xf32>
    %3 = vector.shape_cast %2 : vector<1x8x8xf32> to vector<8x8xf32>
    %cst = arith.constant 1.000000e+00 : f32
    %4 = vector.broadcast %cst : f32 to vector<8x8xf32>
    %5 = arith.subf %3, %4 : vector<8x8xf32>
    %cst_6 = arith.constant 1.000000e+10 : f32
    %6 = vector.broadcast %cst_6 : f32 to vector<8x8xf32>
    %7 = arith.mulf %5, %6 : vector<8x8xf32>
    %c1 = arith.constant 1 : index
    %c0_7 = arith.constant 0 : index
    %c0_8 = arith.constant 0 : index
    %8 = vector.load %arg3[%c1, %c0_7, %c0_8] : memref<2x8x8xf32, #tpu.memory_space<vmem>>, vector<1x8x8xf32>
    %9 = vector.shape_cast %8 : vector<1x8x8xf32> to vector<8x8xf32>
    %cst_9 = arith.constant 1.000000e+00 : f32
    %10 = vector.broadcast %cst_9 : f32 to vector<8x8xf32>
    %11 = arith.subf %9, %10 : vector<8x8xf32>
    %cst_10 = arith.constant 1.000000e+10 : f32
    %12 = vector.broadcast %cst_10 : f32 to vector<8x8xf32>
    %13 = arith.mulf %11, %12 : vector<8x8xf32>
    %c0_11 = arith.constant 0 : index
    %c0_12 = arith.constant 0 : index
    %c0_13 = arith.constant 0 : index
    %14 = vector.load %arg4[%c0_11, %c0_12, %c0_13] : memref<2x1x8xf32, #tpu.memory_space<vmem>>, vector<1x1x8xf32>
    %15 = vector.shape_cast %14 : vector<1x1x8xf32> to vector<1x8xf32>
    %cst_14 = arith.constant 1.000000e+00 : f32
    %16 = vector.broadcast %cst_14 : f32 to vector<1x8xf32>
    %17 = arith.subf %15, %16 : vector<1x8xf32>
    %cst_15 = arith.constant 1.000000e+10 : f32
    %18 = vector.broadcast %cst_15 : f32 to vector<1x8xf32>
    %19 = arith.mulf %17, %18 : vector<1x8xf32>
    %c1_16 = arith.constant 1 : index
    %c0_17 = arith.constant 0 : index
    %c0_18 = arith.constant 0 : index
    %20 = vector.load %arg4[%c1_16, %c0_17, %c0_18] : memref<2x1x8xf32, #tpu.memory_space<vmem>>, vector<1x1x8xf32>
    %21 = vector.shape_cast %20 : vector<1x1x8xf32> to vector<1x8xf32>
    %cst_19 = arith.constant 1.000000e+00 : f32
    %22 = vector.broadcast %cst_19 : f32 to vector<1x8xf32>
    %23 = arith.subf %21, %22 : vector<1x8xf32>
    %cst_20 = arith.constant 1.000000e+10 : f32
    %24 = vector.broadcast %cst_20 : f32 to vector<1x8xf32>
    %25 = arith.mulf %23, %24 : vector<1x8xf32>
    %c0_21 = arith.constant 0 : index
    %c0_22 = arith.constant 0 : index
    %26 = vector.load %arg5[%c0_21, %c0_22] : memref<32x96xf32, #tpu.memory_space<vmem>>, vector<32x96xf32>
    %cst_23 = arith.constant dense<0.000000e+00> : vector<16x96xf32>
    %27 = tpu.matmul %0, %26, %cst_23 {dimension_numbers = #tpu.dot_dimension_numbers<[1], [0], [0], [1], [0, 0, 1, 1], [], []>} : vector<16x32xf32>, vector<32x96xf32>, vector<16x96xf32> -> vector<16x96xf32>
    %c0_24 = arith.constant 0 : index
    %c0_25 = arith.constant 0 : index
    %28 = vector.load %arg6[%c0_24, %c0_25] : memref<1x96xf32, #tpu.memory_space<vmem>>, vector<1x96xf32>
    %29 = vector.shape_cast %28 : vector<1x96xf32> to vector<96xf32>
    %30 = vector.shape_cast %29 : vector<96xf32> to vector<1x96xf32>
    %31 = vector.broadcast %30 : vector<1x96xf32> to vector<16x96xf32>
    %32 = arith.addf %27, %31 : vector<16x96xf32>
    %33 = vector.extract_strided_slice %32 {offsets = [0, 0], sizes = [16, 32], strides = [1, 1]} : vector<16x96xf32> to vector<16x32xf32>
    %34 = vector.extract_strided_slice %32 {offsets = [0, 32], sizes = [16, 32], strides = [1, 1]} : vector<16x96xf32> to vector<16x32xf32>
    %35 = vector.extract_strided_slice %32 {offsets = [0, 64], sizes = [16, 32], strides = [1, 1]} : vector<16x96xf32> to vector<16x32xf32>
    %36 = vector.extract_strided_slice %33 {offsets = [0, 0], sizes = [8, 8], strides = [1, 1]} : vector<16x32xf32> to vector<8x8xf32>
    %37 = vector.extract_strided_slice %34 {offsets = [0, 0], sizes = [8, 8], strides = [1, 1]} : vector<16x32xf32> to vector<8x8xf32>
    %38 = vector.extract_strided_slice %35 {offsets = [0, 0], sizes = [8, 8], strides = [1, 1]} : vector<16x32xf32> to vector<8x8xf32>
    %39 = tpu.transpose %37, [1, 0] : vector<8x8xf32> -> vector<8x8xf32>
    %cst_26 = arith.constant dense<0.000000e+00> : vector<8x8xf32>
    %40 = tpu.matmul %36, %39, %cst_26 {dimension_numbers = #tpu.dot_dimension_numbers<[1], [0], [0], [1], [0, 0, 1, 1], [], []>} : vector<8x8xf32>, vector<8x8xf32>, vector<8x8xf32> -> vector<8x8xf32>
    %cst_27 = arith.constant 0.353553385 : f32
    %41 = vector.broadcast %cst_27 : f32 to vector<8x8xf32>
    %42 = arith.mulf %40, %41 : vector<8x8xf32>
    %43 = arith.addf %42, %7 : vector<8x8xf32>
    %cst_28 = arith.constant dense<0xFF800000> : vector<8xf32>
    %44 = vector.multi_reduction <maximumf>, %43, %cst_28 [1] : vector<8x8xf32> to vector<8xf32>
    %45 = vector.shape_cast %44 : vector<8xf32> to vector<8x1xf32>
    %46 = vector.broadcast %45 : vector<8x1xf32> to vector<8x8xf32>
    %47 = arith.subf %43, %46 : vector<8x8xf32>
    %48 = math.exp %47 : vector<8x8xf32>
    %cst_29 = arith.constant dense<0.000000e+00> : vector<8xf32>
    %49 = vector.multi_reduction <add>, %48, %cst_29 [1] : vector<8x8xf32> to vector<8xf32>
    %50 = vector.shape_cast %49 : vector<8xf32> to vector<8x1xf32>
    %51 = vector.broadcast %50 : vector<8x1xf32> to vector<8x8xf32>
    %52 = arith.divf %48, %51 : vector<8x8xf32>
    %cst_30 = arith.constant dense<0.000000e+00> : vector<8x8xf32>
    %53 = tpu.matmul %52, %38, %cst_30 {dimension_numbers = #tpu.dot_dimension_numbers<[1], [0], [0], [1], [0, 0, 1, 1], [], []>} : vector<8x8xf32>, vector<8x8xf32>, vector<8x8xf32> -> vector<8x8xf32>
    %c0_31 = arith.constant 0 : index
    %c0_32 = arith.constant 0 : index
    %54 = vector.load %arg7[%c0_31, %c0_32] : memref<32x32xf32, #tpu.memory_space<vmem>>, vector<8x32xf32>
    %cst_33 = arith.constant dense<0.000000e+00> : vector<8x32xf32>
    %55 = tpu.matmul %53, %54, %cst_33 {dimension_numbers = #tpu.dot_dimension_numbers<[1], [0], [0], [1], [0, 0, 1, 1], [], []>} : vector<8x8xf32>, vector<8x32xf32>, vector<8x32xf32> -> vector<8x32xf32>
    %56 = vector.extract_strided_slice %33 {offsets = [0, 8], sizes = [8, 8], strides = [1, 1]} : vector<16x32xf32> to vector<8x8xf32>
    %57 = vector.extract_strided_slice %34 {offsets = [0, 8], sizes = [8, 8], strides = [1, 1]} : vector<16x32xf32> to vector<8x8xf32>
    %58 = vector.extract_strided_slice %35 {offsets = [0, 8], sizes = [8, 8], strides = [1, 1]} : vector<16x32xf32> to vector<8x8xf32>
    %59 = tpu.transpose %57, [1, 0] : vector<8x8xf32> -> vector<8x8xf32>
    %cst_34 = arith.constant dense<0.000000e+00> : vector<8x8xf32>
    %60 = tpu.matmul %56, %59, %cst_34 {dimension_numbers = #tpu.dot_dimension_numbers<[1], [0], [0], [1], [0, 0, 1, 1], [], []>} : vector<8x8xf32>, vector<8x8xf32>, vector<8x8xf32> -> vector<8x8xf32>
    %cst_35 = arith.constant 0.353553385 : f32
    %61 = vector.broadcast %cst_35 : f32 to vector<8x8xf32>
    %62 = arith.mulf %60, %61 : vector<8x8xf32>
    %63 = arith.addf %62, %7 : vector<8x8xf32>
    %cst_36 = arith.constant dense<0xFF800000> : vector<8xf32>
    %64 = vector.multi_reduction <maximumf>, %63, %cst_36 [1] : vector<8x8xf32> to vector<8xf32>
    %65 = vector.shape_cast %64 : vector<8xf32> to vector<8x1xf32>
    %66 = vector.broadcast %65 : vector<8x1xf32> to vector<8x8xf32>
    %67 = arith.subf %63, %66 : vector<8x8xf32>
    %68 = math.exp %67 : vector<8x8xf32>
    %cst_37 = arith.constant dense<0.000000e+00> : vector<8xf32>
    %69 = vector.multi_reduction <add>, %68, %cst_37 [1] : vector<8x8xf32> to vector<8xf32>
    %70 = vector.shape_cast %69 : vector<8xf32> to vector<8x1xf32>
    %71 = vector.broadcast %70 : vector<8x1xf32> to vector<8x8xf32>
    %72 = arith.divf %68, %71 : vector<8x8xf32>
    %cst_38 = arith.constant dense<0.000000e+00> : vector<8x8xf32>
    %73 = tpu.matmul %72, %58, %cst_38 {dimension_numbers = #tpu.dot_dimension_numbers<[1], [0], [0], [1], [0, 0, 1, 1], [], []>} : vector<8x8xf32>, vector<8x8xf32>, vector<8x8xf32> -> vector<8x8xf32>
    %c8 = arith.constant 8 : index
    %c0_39 = arith.constant 0 : index
    %74 = vector.load %arg7[%c8, %c0_39] : memref<32x32xf32, #tpu.memory_space<vmem>>, vector<8x32xf32>
    %cst_40 = arith.constant dense<0.000000e+00> : vector<8x32xf32>
    %75 = tpu.matmul %73, %74, %cst_40 {dimension_numbers = #tpu.dot_dimension_numbers<[1], [0], [0], [1], [0, 0, 1, 1], [], []>} : vector<8x8xf32>, vector<8x32xf32>, vector<8x32xf32> -> vector<8x32xf32>
    %76 = arith.addf %55, %75 : vector<8x32xf32>
    %77 = vector.extract_strided_slice %33 {offsets = [0, 16], sizes = [8, 8], strides = [1, 1]} : vector<16x32xf32> to vector<8x8xf32>
    %78 = vector.extract_strided_slice %34 {offsets = [0, 16], sizes = [8, 8], strides = [1, 1]} : vector<16x32xf32> to vector<8x8xf32>
    %79 = vector.extract_strided_slice %35 {offsets = [0, 16], sizes = [8, 8], strides = [1, 1]} : vector<16x32xf32> to vector<8x8xf32>
    %80 = tpu.transpose %78, [1, 0] : vector<8x8xf32> -> vector<8x8xf32>
    %cst_41 = arith.constant dense<0.000000e+00> : vector<8x8xf32>
    %81 = tpu.matmul %77, %80, %cst_41 {dimension_numbers = #tpu.dot_dimension_numbers<[1], [0], [0], [1], [0, 0, 1, 1], [], []>} : vector<8x8xf32>, vector<8x8xf32>, vector<8x8xf32> -> vector<8x8xf32>
    %cst_42 = arith.constant 0.353553385 : f32
    %82 = vector.broadcast %cst_42 : f32 to vector<8x8xf32>
    %83 = arith.mulf %81, %82 : vector<8x8xf32>
    %84 = arith.addf %83, %7 : vector<8x8xf32>
    %cst_43 = arith.constant dense<0xFF800000> : vector<8xf32>
    %85 = vector.multi_reduction <maximumf>, %84, %cst_43 [1] : vector<8x8xf32> to vector<8xf32>
    %86 = vector.shape_cast %85 : vector<8xf32> to vector<8x1xf32>
    %87 = vector.broadcast %86 : vector<8x1xf32> to vector<8x8xf32>
    %88 = arith.subf %84, %87 : vector<8x8xf32>
    %89 = math.exp %88 : vector<8x8xf32>
    %cst_44 = arith.constant dense<0.000000e+00> : vector<8xf32>
    %90 = vector.multi_reduction <add>, %89, %cst_44 [1] : vector<8x8xf32> to vector<8xf32>
    %91 = vector.shape_cast %90 : vector<8xf32> to vector<8x1xf32>
    %92 = vector.broadcast %91 : vector<8x1xf32> to vector<8x8xf32>
    %93 = arith.divf %89, %92 : vector<8x8xf32>
    %cst_45 = arith.constant dense<0.000000e+00> : vector<8x8xf32>
    %94 = tpu.matmul %93, %79, %cst_45 {dimension_numbers = #tpu.dot_dimension_numbers<[1], [0], [0], [1], [0, 0, 1, 1], [], []>} : vector<8x8xf32>, vector<8x8xf32>, vector<8x8xf32> -> vector<8x8xf32>
    %c16 = arith.constant 16 : index
    %c0_46 = arith.constant 0 : index
    %95 = vector.load %arg7[%c16, %c0_46] : memref<32x32xf32, #tpu.memory_space<vmem>>, vector<8x32xf32>
    %cst_47 = arith.constant dense<0.000000e+00> : vector<8x32xf32>
    %96 = tpu.matmul %94, %95, %cst_47 {dimension_numbers = #tpu.dot_dimension_numbers<[1], [0], [0], [1], [0, 0, 1, 1], [], []>} : vector<8x8xf32>, vector<8x32xf32>, vector<8x32xf32> -> vector<8x32xf32>
    %97 = arith.addf %76, %96 : vector<8x32xf32>
    %98 = vector.extract_strided_slice %33 {offsets = [0, 24], sizes = [8, 8], strides = [1, 1]} : vector<16x32xf32> to vector<8x8xf32>
    %99 = vector.extract_strided_slice %34 {offsets = [0, 24], sizes = [8, 8], strides = [1, 1]} : vector<16x32xf32> to vector<8x8xf32>
    %100 = vector.extract_strided_slice %35 {offsets = [0, 24], sizes = [8, 8], strides = [1, 1]} : vector<16x32xf32> to vector<8x8xf32>
    %101 = tpu.transpose %99, [1, 0] : vector<8x8xf32> -> vector<8x8xf32>
    %cst_48 = arith.constant dense<0.000000e+00> : vector<8x8xf32>
    %102 = tpu.matmul %98, %101, %cst_48 {dimension_numbers = #tpu.dot_dimension_numbers<[1], [0], [0], [1], [0, 0, 1, 1], [], []>} : vector<8x8xf32>, vector<8x8xf32>, vector<8x8xf32> -> vector<8x8xf32>
    %cst_49 = arith.constant 0.353553385 : f32
    %103 = vector.broadcast %cst_49 : f32 to vector<8x8xf32>
    %104 = arith.mulf %102, %103 : vector<8x8xf32>
    %105 = arith.addf %104, %7 : vector<8x8xf32>
    %cst_50 = arith.constant dense<0xFF800000> : vector<8xf32>
    %106 = vector.multi_reduction <maximumf>, %105, %cst_50 [1] : vector<8x8xf32> to vector<8xf32>
    %107 = vector.shape_cast %106 : vector<8xf32> to vector<8x1xf32>
    %108 = vector.broadcast %107 : vector<8x1xf32> to vector<8x8xf32>
    %109 = arith.subf %105, %108 : vector<8x8xf32>
    %110 = math.exp %109 : vector<8x8xf32>
    %cst_51 = arith.constant dense<0.000000e+00> : vector<8xf32>
    %111 = vector.multi_reduction <add>, %110, %cst_51 [1] : vector<8x8xf32> to vector<8xf32>
    %112 = vector.shape_cast %111 : vector<8xf32> to vector<8x1xf32>
    %113 = vector.broadcast %112 : vector<8x1xf32> to vector<8x8xf32>
    %114 = arith.divf %110, %113 : vector<8x8xf32>
    %cst_52 = arith.constant dense<0.000000e+00> : vector<8x8xf32>
    %115 = tpu.matmul %114, %100, %cst_52 {dimension_numbers = #tpu.dot_dimension_numbers<[1], [0], [0], [1], [0, 0, 1, 1], [], []>} : vector<8x8xf32>, vector<8x8xf32>, vector<8x8xf32> -> vector<8x8xf32>
    %c24 = arith.constant 24 : index
    %c0_53 = arith.constant 0 : index
    %116 = vector.load %arg7[%c24, %c0_53] : memref<32x32xf32, #tpu.memory_space<vmem>>, vector<8x32xf32>
    %cst_54 = arith.constant dense<0.000000e+00> : vector<8x32xf32>
    %117 = tpu.matmul %115, %116, %cst_54 {dimension_numbers = #tpu.dot_dimension_numbers<[1], [0], [0], [1], [0, 0, 1, 1], [], []>} : vector<8x8xf32>, vector<8x32xf32>, vector<8x32xf32> -> vector<8x32xf32>
    %118 = arith.addf %97, %117 : vector<8x32xf32>
    %119 = vector.extract_strided_slice %33 {offsets = [8, 0], sizes = [8, 8], strides = [1, 1]} : vector<16x32xf32> to vector<8x8xf32>
    %120 = vector.extract_strided_slice %34 {offsets = [8, 0], sizes = [8, 8], strides = [1, 1]} : vector<16x32xf32> to vector<8x8xf32>
    %121 = vector.extract_strided_slice %35 {offsets = [8, 0], sizes = [8, 8], strides = [1, 1]} : vector<16x32xf32> to vector<8x8xf32>
    %122 = tpu.transpose %120, [1, 0] : vector<8x8xf32> -> vector<8x8xf32>
    %cst_55 = arith.constant dense<0.000000e+00> : vector<8x8xf32>
    %123 = tpu.matmul %119, %122, %cst_55 {dimension_numbers = #tpu.dot_dimension_numbers<[1], [0], [0], [1], [0, 0, 1, 1], [], []>} : vector<8x8xf32>, vector<8x8xf32>, vector<8x8xf32> -> vector<8x8xf32>
    %cst_56 = arith.constant 0.353553385 : f32
    %124 = vector.broadcast %cst_56 : f32 to vector<8x8xf32>
    %125 = arith.mulf %123, %124 : vector<8x8xf32>
    %126 = arith.addf %125, %13 : vector<8x8xf32>
    %cst_57 = arith.constant dense<0xFF800000> : vector<8xf32>
    %127 = vector.multi_reduction <maximumf>, %126, %cst_57 [1] : vector<8x8xf32> to vector<8xf32>
    %128 = vector.shape_cast %127 : vector<8xf32> to vector<8x1xf32>
    %129 = vector.broadcast %128 : vector<8x1xf32> to vector<8x8xf32>
    %130 = arith.subf %126, %129 : vector<8x8xf32>
    %131 = math.exp %130 : vector<8x8xf32>
    %cst_58 = arith.constant dense<0.000000e+00> : vector<8xf32>
    %132 = vector.multi_reduction <add>, %131, %cst_58 [1] : vector<8x8xf32> to vector<8xf32>
    %133 = vector.shape_cast %132 : vector<8xf32> to vector<8x1xf32>
    %134 = vector.broadcast %133 : vector<8x1xf32> to vector<8x8xf32>
    %135 = arith.divf %131, %134 : vector<8x8xf32>
    %cst_59 = arith.constant dense<0.000000e+00> : vector<8x8xf32>
    %136 = tpu.matmul %135, %121, %cst_59 {dimension_numbers = #tpu.dot_dimension_numbers<[1], [0], [0], [1], [0, 0, 1, 1], [], []>} : vector<8x8xf32>, vector<8x8xf32>, vector<8x8xf32> -> vector<8x8xf32>
    %c0_60 = arith.constant 0 : index
    %c0_61 = arith.constant 0 : index
    %137 = vector.load %arg7[%c0_60, %c0_61] : memref<32x32xf32, #tpu.memory_space<vmem>>, vector<8x32xf32>
    %cst_62 = arith.constant dense<0.000000e+00> : vector<8x32xf32>
    %138 = tpu.matmul %136, %137, %cst_62 {dimension_numbers = #tpu.dot_dimension_numbers<[1], [0], [0], [1], [0, 0, 1, 1], [], []>} : vector<8x8xf32>, vector<8x32xf32>, vector<8x32xf32> -> vector<8x32xf32>
    %139 = vector.extract_strided_slice %33 {offsets = [8, 8], sizes = [8, 8], strides = [1, 1]} : vector<16x32xf32> to vector<8x8xf32>
    %140 = vector.extract_strided_slice %34 {offsets = [8, 8], sizes = [8, 8], strides = [1, 1]} : vector<16x32xf32> to vector<8x8xf32>
    %141 = vector.extract_strided_slice %35 {offsets = [8, 8], sizes = [8, 8], strides = [1, 1]} : vector<16x32xf32> to vector<8x8xf32>
    %142 = tpu.transpose %140, [1, 0] : vector<8x8xf32> -> vector<8x8xf32>
    %cst_63 = arith.constant dense<0.000000e+00> : vector<8x8xf32>
    %143 = tpu.matmul %139, %142, %cst_63 {dimension_numbers = #tpu.dot_dimension_numbers<[1], [0], [0], [1], [0, 0, 1, 1], [], []>} : vector<8x8xf32>, vector<8x8xf32>, vector<8x8xf32> -> vector<8x8xf32>
    %cst_64 = arith.constant 0.353553385 : f32
    %144 = vector.broadcast %cst_64 : f32 to vector<8x8xf32>
    %145 = arith.mulf %143, %144 : vector<8x8xf32>
    %146 = arith.addf %145, %13 : vector<8x8xf32>
    %cst_65 = arith.constant dense<0xFF800000> : vector<8xf32>
    %147 = vector.multi_reduction <maximumf>, %146, %cst_65 [1] : vector<8x8xf32> to vector<8xf32>
    %148 = vector.shape_cast %147 : vector<8xf32> to vector<8x1xf32>
    %149 = vector.broadcast %148 : vector<8x1xf32> to vector<8x8xf32>
    %150 = arith.subf %146, %149 : vector<8x8xf32>
    %151 = math.exp %150 : vector<8x8xf32>
    %cst_66 = arith.constant dense<0.000000e+00> : vector<8xf32>
    %152 = vector.multi_reduction <add>, %151, %cst_66 [1] : vector<8x8xf32> to vector<8xf32>
    %153 = vector.shape_cast %152 : vector<8xf32> to vector<8x1xf32>
    %154 = vector.broadcast %153 : vector<8x1xf32> to vector<8x8xf32>
    %155 = arith.divf %151, %154 : vector<8x8xf32>
    %cst_67 = arith.constant dense<0.000000e+00> : vector<8x8xf32>
    %156 = tpu.matmul %155, %141, %cst_67 {dimension_numbers = #tpu.dot_dimension_numbers<[1], [0], [0], [1], [0, 0, 1, 1], [], []>} : vector<8x8xf32>, vector<8x8xf32>, vector<8x8xf32> -> vector<8x8xf32>
    %c8_68 = arith.constant 8 : index
    %c0_69 = arith.constant 0 : index
    %157 = vector.load %arg7[%c8_68, %c0_69] : memref<32x32xf32, #tpu.memory_space<vmem>>, vector<8x32xf32>
    %cst_70 = arith.constant dense<0.000000e+00> : vector<8x32xf32>
    %158 = tpu.matmul %156, %157, %cst_70 {dimension_numbers = #tpu.dot_dimension_numbers<[1], [0], [0], [1], [0, 0, 1, 1], [], []>} : vector<8x8xf32>, vector<8x32xf32>, vector<8x32xf32> -> vector<8x32xf32>
    %159 = arith.addf %138, %158 : vector<8x32xf32>
    %160 = vector.extract_strided_slice %33 {offsets = [8, 16], sizes = [8, 8], strides = [1, 1]} : vector<16x32xf32> to vector<8x8xf32>
    %161 = vector.extract_strided_slice %34 {offsets = [8, 16], sizes = [8, 8], strides = [1, 1]} : vector<16x32xf32> to vector<8x8xf32>
    %162 = vector.extract_strided_slice %35 {offsets = [8, 16], sizes = [8, 8], strides = [1, 1]} : vector<16x32xf32> to vector<8x8xf32>
    %163 = tpu.transpose %161, [1, 0] : vector<8x8xf32> -> vector<8x8xf32>
    %cst_71 = arith.constant dense<0.000000e+00> : vector<8x8xf32>
    %164 = tpu.matmul %160, %163, %cst_71 {dimension_numbers = #tpu.dot_dimension_numbers<[1], [0], [0], [1], [0, 0, 1, 1], [], []>} : vector<8x8xf32>, vector<8x8xf32>, vector<8x8xf32> -> vector<8x8xf32>
    %cst_72 = arith.constant 0.353553385 : f32
    %165 = vector.broadcast %cst_72 : f32 to vector<8x8xf32>
    %166 = arith.mulf %164, %165 : vector<8x8xf32>
    %167 = arith.addf %166, %13 : vector<8x8xf32>
    %cst_73 = arith.constant dense<0xFF800000> : vector<8xf32>
    %168 = vector.multi_reduction <maximumf>, %167, %cst_73 [1] : vector<8x8xf32> to vector<8xf32>
    %169 = vector.shape_cast %168 : vector<8xf32> to vector<8x1xf32>
    %170 = vector.broadcast %169 : vector<8x1xf32> to vector<8x8xf32>
    %171 = arith.subf %167, %170 : vector<8x8xf32>
    %172 = math.exp %171 : vector<8x8xf32>
    %cst_74 = arith.constant dense<0.000000e+00> : vector<8xf32>
    %173 = vector.multi_reduction <add>, %172, %cst_74 [1] : vector<8x8xf32> to vector<8xf32>
    %174 = vector.shape_cast %173 : vector<8xf32> to vector<8x1xf32>
    %175 = vector.broadcast %174 : vector<8x1xf32> to vector<8x8xf32>
    %176 = arith.divf %172, %175 : vector<8x8xf32>
    %cst_75 = arith.constant dense<0.000000e+00> : vector<8x8xf32>
    %177 = tpu.matmul %176, %162, %cst_75 {dimension_numbers = #tpu.dot_dimension_numbers<[1], [0], [0], [1], [0, 0, 1, 1], [], []>} : vector<8x8xf32>, vector<8x8xf32>, vector<8x8xf32> -> vector<8x8xf32>
    %c16_76 = arith.constant 16 : index
    %c0_77 = arith.constant 0 : index
    %178 = vector.load %arg7[%c16_76, %c0_77] : memref<32x32xf32, #tpu.memory_space<vmem>>, vector<8x32xf32>
    %cst_78 = arith.constant dense<0.000000e+00> : vector<8x32xf32>
    %179 = tpu.matmul %177, %178, %cst_78 {dimension_numbers = #tpu.dot_dimension_numbers<[1], [0], [0], [1], [0, 0, 1, 1], [], []>} : vector<8x8xf32>, vector<8x32xf32>, vector<8x32xf32> -> vector<8x32xf32>
    %180 = arith.addf %159, %179 : vector<8x32xf32>
    %181 = vector.extract_strided_slice %33 {offsets = [8, 24], sizes = [8, 8], strides = [1, 1]} : vector<16x32xf32> to vector<8x8xf32>
    %182 = vector.extract_strided_slice %34 {offsets = [8, 24], sizes = [8, 8], strides = [1, 1]} : vector<16x32xf32> to vector<8x8xf32>
    %183 = vector.extract_strided_slice %35 {offsets = [8, 24], sizes = [8, 8], strides = [1, 1]} : vector<16x32xf32> to vector<8x8xf32>
    %184 = tpu.transpose %182, [1, 0] : vector<8x8xf32> -> vector<8x8xf32>
    %cst_79 = arith.constant dense<0.000000e+00> : vector<8x8xf32>
    %185 = tpu.matmul %181, %184, %cst_79 {dimension_numbers = #tpu.dot_dimension_numbers<[1], [0], [0], [1], [0, 0, 1, 1], [], []>} : vector<8x8xf32>, vector<8x8xf32>, vector<8x8xf32> -> vector<8x8xf32>
    %cst_80 = arith.constant 0.353553385 : f32
    %186 = vector.broadcast %cst_80 : f32 to vector<8x8xf32>
    %187 = arith.mulf %185, %186 : vector<8x8xf32>
    %188 = arith.addf %187, %13 : vector<8x8xf32>
    %cst_81 = arith.constant dense<0xFF800000> : vector<8xf32>
    %189 = vector.multi_reduction <maximumf>, %188, %cst_81 [1] : vector<8x8xf32> to vector<8xf32>
    %190 = vector.shape_cast %189 : vector<8xf32> to vector<8x1xf32>
    %191 = vector.broadcast %190 : vector<8x1xf32> to vector<8x8xf32>
    %192 = arith.subf %188, %191 : vector<8x8xf32>
    %193 = math.exp %192 : vector<8x8xf32>
    %cst_82 = arith.constant dense<0.000000e+00> : vector<8xf32>
    %194 = vector.multi_reduction <add>, %193, %cst_82 [1] : vector<8x8xf32> to vector<8xf32>
    %195 = vector.shape_cast %194 : vector<8xf32> to vector<8x1xf32>
    %196 = vector.broadcast %195 : vector<8x1xf32> to vector<8x8xf32>
    %197 = arith.divf %193, %196 : vector<8x8xf32>
    %cst_83 = arith.constant dense<0.000000e+00> : vector<8x8xf32>
    %198 = tpu.matmul %197, %183, %cst_83 {dimension_numbers = #tpu.dot_dimension_numbers<[1], [0], [0], [1], [0, 0, 1, 1], [], []>} : vector<8x8xf32>, vector<8x8xf32>, vector<8x8xf32> -> vector<8x8xf32>
    %c24_84 = arith.constant 24 : index
    %c0_85 = arith.constant 0 : index
    %199 = vector.load %arg7[%c24_84, %c0_85] : memref<32x32xf32, #tpu.memory_space<vmem>>, vector<8x32xf32>
    %cst_86 = arith.constant dense<0.000000e+00> : vector<8x32xf32>
    %200 = tpu.matmul %198, %199, %cst_86 {dimension_numbers = #tpu.dot_dimension_numbers<[1], [0], [0], [1], [0, 0, 1, 1], [], []>} : vector<8x8xf32>, vector<8x32xf32>, vector<8x32xf32> -> vector<8x32xf32>
    %201 = arith.addf %180, %200 : vector<8x32xf32>
    %202 = tpu.concatenate %118, %201 in 0 : vector<8x32xf32>, vector<8x32xf32> -> vector<16x32xf32>
    %c0_87 = arith.constant 0 : index
    %c0_88 = arith.constant 0 : index
    %203 = vector.load %arg8[%c0_87, %c0_88] : memref<1x32xf32, #tpu.memory_space<vmem>>, vector<1x32xf32>
    %204 = vector.shape_cast %203 : vector<1x32xf32> to vector<32xf32>
    %205 = vector.shape_cast %204 : vector<32xf32> to vector<1x32xf32>
    %206 = vector.broadcast %205 : vector<1x32xf32> to vector<16x32xf32>
    %207 = arith.addf %202, %206 : vector<16x32xf32>
    %208 = arith.addf %0, %207 : vector<16x32xf32>
    %cst_89 = arith.constant dense<0.000000e+00> : vector<16xf32>
    %209 = vector.multi_reduction <add>, %208, %cst_89 [1] : vector<16x32xf32> to vector<16xf32>
    %210 = vector.shape_cast %209 : vector<16xf32> to vector<16x1xf32>
    %cst_90 = arith.constant 3.200000e+01 : f32
    %211 = vector.broadcast %cst_90 : f32 to vector<16x1xf32>
    %212 = arith.divf %210, %211 : vector<16x1xf32>
    %213 = vector.broadcast %212 : vector<16x1xf32> to vector<16x32xf32>
    %214 = arith.subf %208, %213 : vector<16x32xf32>
    %215 = arith.mulf %214, %214 : vector<16x32xf32>
    %cst_91 = arith.constant dense<0.000000e+00> : vector<16xf32>
    %216 = vector.multi_reduction <add>, %215, %cst_91 [1] : vector<16x32xf32> to vector<16xf32>
    %217 = vector.shape_cast %216 : vector<16xf32> to vector<16x1xf32>
    %cst_92 = arith.constant 3.200000e+01 : f32
    %218 = vector.broadcast %cst_92 : f32 to vector<16x1xf32>
    %219 = arith.divf %217, %218 : vector<16x1xf32>
    %cst_93 = arith.constant 9.99999974E-6 : f32
    %220 = vector.broadcast %cst_93 : f32 to vector<16x1xf32>
    %221 = arith.addf %219, %220 : vector<16x1xf32>
    %222 = math.rsqrt %221 : vector<16x1xf32>
    %223 = vector.broadcast %222 : vector<16x1xf32> to vector<16x32xf32>
    %224 = arith.mulf %214, %223 : vector<16x32xf32>
    %c0_94 = arith.constant 0 : index
    %c0_95 = arith.constant 0 : index
    %225 = vector.load %arg9[%c0_94, %c0_95] : memref<1x32xf32, #tpu.memory_space<vmem>>, vector<1x32xf32>
    %226 = vector.shape_cast %225 : vector<1x32xf32> to vector<32xf32>
    %227 = vector.shape_cast %226 : vector<32xf32> to vector<1x32xf32>
    %228 = vector.broadcast %227 : vector<1x32xf32> to vector<16x32xf32>
    %229 = arith.mulf %224, %228 : vector<16x32xf32>
    %c0_96 = arith.constant 0 : index
    %c0_97 = arith.constant 0 : index
    %230 = vector.load %arg10[%c0_96, %c0_97] : memref<1x32xf32, #tpu.memory_space<vmem>>, vector<1x32xf32>
    %231 = vector.shape_cast %230 : vector<1x32xf32> to vector<32xf32>
    %232 = vector.shape_cast %231 : vector<32xf32> to vector<1x32xf32>
    %233 = vector.broadcast %232 : vector<1x32xf32> to vector<16x32xf32>
    %234 = arith.addf %229, %233 : vector<16x32xf32>
    %c0_98 = arith.constant 0 : index
    %c0_99 = arith.constant 0 : index
    %235 = vector.load %arg11[%c0_98, %c0_99] : memref<32x32xf32, #tpu.memory_space<vmem>>, vector<32x32xf32>
    %cst_100 = arith.constant dense<0.000000e+00> : vector<16x32xf32>
    %236 = tpu.matmul %234, %235, %cst_100 {dimension_numbers = #tpu.dot_dimension_numbers<[1], [0], [0], [1], [0, 0, 1, 1], [], []>} : vector<16x32xf32>, vector<32x32xf32>, vector<16x32xf32> -> vector<16x32xf32>
    %c0_101 = arith.constant 0 : index
    %c0_102 = arith.constant 0 : index
    %237 = vector.load %arg12[%c0_101, %c0_102] : memref<1x32xf32, #tpu.memory_space<vmem>>, vector<1x32xf32>
    %238 = vector.shape_cast %237 : vector<1x32xf32> to vector<32xf32>
    %239 = vector.shape_cast %238 : vector<32xf32> to vector<1x32xf32>
    %240 = vector.broadcast %239 : vector<1x32xf32> to vector<16x32xf32>
    %241 = arith.addf %236, %240 : vector<16x32xf32>
    %c0_103 = arith.constant 0 : index
    %c0_104 = arith.constant 0 : index
    %242 = vector.load %arg13[%c0_103, %c0_104] : memref<32x64xf32, #tpu.memory_space<vmem>>, vector<32x64xf32>
    %cst_105 = arith.constant dense<0.000000e+00> : vector<16x64xf32>
    %243 = tpu.matmul %1, %242, %cst_105 {dimension_numbers = #tpu.dot_dimension_numbers<[1], [0], [0], [1], [0, 0, 1, 1], [], []>} : vector<16x32xf32>, vector<32x64xf32>, vector<16x64xf32> -> vector<16x64xf32>
    %c0_106 = arith.constant 0 : index
    %c0_107 = arith.constant 0 : index
    %244 = vector.load %arg14[%c0_106, %c0_107] : memref<1x64xf32, #tpu.memory_space<vmem>>, vector<1x64xf32>
    %245 = vector.shape_cast %244 : vector<1x64xf32> to vector<64xf32>
    %246 = vector.shape_cast %245 : vector<64xf32> to vector<1x64xf32>
    %247 = vector.broadcast %246 : vector<1x64xf32> to vector<16x64xf32>
    %248 = arith.addf %243, %247 : vector<16x64xf32>
    %249 = vector.extract_strided_slice %248 {offsets = [0, 0], sizes = [16, 32], strides = [1, 1]} : vector<16x64xf32> to vector<16x32xf32>
    %250 = vector.extract_strided_slice %248 {offsets = [0, 32], sizes = [16, 32], strides = [1, 1]} : vector<16x64xf32> to vector<16x32xf32>
    %251 = vector.extract_strided_slice %241 {offsets = [0, 0], sizes = [8, 8], strides = [1, 1]} : vector<16x32xf32> to vector<8x8xf32>
    %252 = vector.extract_strided_slice %249 {offsets = [0, 0], sizes = [8, 8], strides = [1, 1]} : vector<16x32xf32> to vector<8x8xf32>
    %253 = vector.extract_strided_slice %250 {offsets = [0, 0], sizes = [8, 8], strides = [1, 1]} : vector<16x32xf32> to vector<8x8xf32>
    %254 = tpu.transpose %252, [1, 0] : vector<8x8xf32> -> vector<8x8xf32>
    %cst_108 = arith.constant dense<0.000000e+00> : vector<8x8xf32>
    %255 = tpu.matmul %251, %254, %cst_108 {dimension_numbers = #tpu.dot_dimension_numbers<[1], [0], [0], [1], [0, 0, 1, 1], [], []>} : vector<8x8xf32>, vector<8x8xf32>, vector<8x8xf32> -> vector<8x8xf32>
    %cst_109 = arith.constant 0.353553385 : f32
    %256 = vector.broadcast %cst_109 : f32 to vector<8x8xf32>
    %257 = arith.mulf %255, %256 : vector<8x8xf32>
    %258 = vector.broadcast %19 : vector<1x8xf32> to vector<8x8xf32>
    %259 = arith.addf %257, %258 : vector<8x8xf32>
    %cst_110 = arith.constant dense<0xFF800000> : vector<8xf32>
    %260 = vector.multi_reduction <maximumf>, %259, %cst_110 [1] : vector<8x8xf32> to vector<8xf32>
    %261 = vector.shape_cast %260 : vector<8xf32> to vector<8x1xf32>
    %262 = vector.broadcast %261 : vector<8x1xf32> to vector<8x8xf32>
    %263 = arith.subf %259, %262 : vector<8x8xf32>
    %264 = math.exp %263 : vector<8x8xf32>
    %cst_111 = arith.constant dense<0.000000e+00> : vector<8xf32>
    %265 = vector.multi_reduction <add>, %264, %cst_111 [1] : vector<8x8xf32> to vector<8xf32>
    %266 = vector.shape_cast %265 : vector<8xf32> to vector<8x1xf32>
    %267 = vector.broadcast %266 : vector<8x1xf32> to vector<8x8xf32>
    %268 = arith.divf %264, %267 : vector<8x8xf32>
    %c0_112 = arith.constant 0 : index
    %c0_113 = arith.constant 0 : index
    %c0_114 = arith.constant 0 : index
    %c0_115 = arith.constant 0 : index
    %269 = vector.load %arg26[%c0_112, %c0_113, %c0_114, %c0_115] : memref<2x4x8x8xf32, #tpu.memory_space<vmem>>, vector<1x1x8x8xf32>
    %270 = vector.shape_cast %269 : vector<1x1x8x8xf32> to vector<8x8xf32>
    %271 = vector.shape_cast %268 : vector<8x8xf32> to vector<1x1x8x8xf32>
    tpu.vector_store %arg26[%c0_112, %c0_113, %c0_114, %c0_115], %271 {strides = array<i32>} : memref<2x4x8x8xf32, #tpu.memory_space<vmem>>, vector<1x1x8x8xf32>,
    %cst_116 = arith.constant dense<0.000000e+00> : vector<8x8xf32>
    %272 = tpu.matmul %268, %253, %cst_116 {dimension_numbers = #tpu.dot_dimension_numbers<[1], [0], [0], [1], [0, 0, 1, 1], [], []>} : vector<8x8xf32>, vector<8x8xf32>, vector<8x8xf32> -> vector<8x8xf32>
    %c0_117 = arith.constant 0 : index
    %c0_118 = arith.constant 0 : index
    %273 = vector.load %arg15[%c0_117, %c0_118] : memref<32x32xf32, #tpu.memory_space<vmem>>, vector<8x32xf32>
    %cst_119 = arith.constant dense<0.000000e+00> : vector<8x32xf32>
    %274 = tpu.matmul %272, %273, %cst_119 {dimension_numbers = #tpu.dot_dimension_numbers<[1], [0], [0], [1], [0, 0, 1, 1], [], []>} : vector<8x8xf32>, vector<8x32xf32>, vector<8x32xf32> -> vector<8x32xf32>
    %275 = vector.extract_strided_slice %241 {offsets = [0, 8], sizes = [8, 8], strides = [1, 1]} : vector<16x32xf32> to vector<8x8xf32>
    %276 = vector.extract_strided_slice %249 {offsets = [0, 8], sizes = [8, 8], strides = [1, 1]} : vector<16x32xf32> to vector<8x8xf32>
    %277 = vector.extract_strided_slice %250 {offsets = [0, 8], sizes = [8, 8], strides = [1, 1]} : vector<16x32xf32> to vector<8x8xf32>
    %278 = tpu.transpose %276, [1, 0] : vector<8x8xf32> -> vector<8x8xf32>
    %cst_120 = arith.constant dense<0.000000e+00> : vector<8x8xf32>
    %279 = tpu.matmul %275, %278, %cst_120 {dimension_numbers = #tpu.dot_dimension_numbers<[1], [0], [0], [1], [0, 0, 1, 1], [], []>} : vector<8x8xf32>, vector<8x8xf32>, vector<8x8xf32> -> vector<8x8xf32>
    %cst_121 = arith.constant 0.353553385 : f32
    %280 = vector.broadcast %cst_121 : f32 to vector<8x8xf32>
    %281 = arith.mulf %279, %280 : vector<8x8xf32>
    %282 = vector.broadcast %19 : vector<1x8xf32> to vector<8x8xf32>
    %283 = arith.addf %281, %282 : vector<8x8xf32>
    %cst_122 = arith.constant dense<0xFF800000> : vector<8xf32>
    %284 = vector.multi_reduction <maximumf>, %283, %cst_122 [1] : vector<8x8xf32> to vector<8xf32>
    %285 = vector.shape_cast %284 : vector<8xf32> to vector<8x1xf32>
    %286 = vector.broadcast %285 : vector<8x1xf32> to vector<8x8xf32>
    %287 = arith.subf %283, %286 : vector<8x8xf32>
    %288 = math.exp %287 : vector<8x8xf32>
    %cst_123 = arith.constant dense<0.000000e+00> : vector<8xf32>
    %289 = vector.multi_reduction <add>, %288, %cst_123 [1] : vector<8x8xf32> to vector<8xf32>
    %290 = vector.shape_cast %289 : vector<8xf32> to vector<8x1xf32>
    %291 = vector.broadcast %290 : vector<8x1xf32> to vector<8x8xf32>
    %292 = arith.divf %288, %291 : vector<8x8xf32>
    %c0_124 = arith.constant 0 : index
    %c1_125 = arith.constant 1 : index
    %c0_126 = arith.constant 0 : index
    %c0_127 = arith.constant 0 : index
    %293 = vector.load %arg26[%c0_124, %c1_125, %c0_126, %c0_127] : memref<2x4x8x8xf32, #tpu.memory_space<vmem>>, vector<1x1x8x8xf32>
    %294 = vector.shape_cast %293 : vector<1x1x8x8xf32> to vector<8x8xf32>
    %295 = vector.shape_cast %292 : vector<8x8xf32> to vector<1x1x8x8xf32>
    tpu.vector_store %arg26[%c0_124, %c1_125, %c0_126, %c0_127], %295 {strides = array<i32>} : memref<2x4x8x8xf32, #tpu.memory_space<vmem>>, vector<1x1x8x8xf32>,
    %cst_128 = arith.constant dense<0.000000e+00> : vector<8x8xf32>
    %296 = tpu.matmul %292, %277, %cst_128 {dimension_numbers = #tpu.dot_dimension_numbers<[1], [0], [0], [1], [0, 0, 1, 1], [], []>} : vector<8x8xf32>, vector<8x8xf32>, vector<8x8xf32> -> vector<8x8xf32>
    %c8_129 = arith.constant 8 : index
    %c0_130 = arith.constant 0 : index
    %297 = vector.load %arg15[%c8_129, %c0_130] : memref<32x32xf32, #tpu.memory_space<vmem>>, vector<8x32xf32>
    %cst_131 = arith.constant dense<0.000000e+00> : vector<8x32xf32>
    %298 = tpu.matmul %296, %297, %cst_131 {dimension_numbers = #tpu.dot_dimension_numbers<[1], [0], [0], [1], [0, 0, 1, 1], [], []>} : vector<8x8xf32>, vector<8x32xf32>, vector<8x32xf32> -> vector<8x32xf32>
    %299 = arith.addf %274, %298 : vector<8x32xf32>
    %300 = vector.extract_strided_slice %241 {offsets = [0, 16], sizes = [8, 8], strides = [1, 1]} : vector<16x32xf32> to vector<8x8xf32>
    %301 = vector.extract_strided_slice %249 {offsets = [0, 16], sizes = [8, 8], strides = [1, 1]} : vector<16x32xf32> to vector<8x8xf32>
    %302 = vector.extract_strided_slice %250 {offsets = [0, 16], sizes = [8, 8], strides = [1, 1]} : vector<16x32xf32> to vector<8x8xf32>
    %303 = tpu.transpose %301, [1, 0] : vector<8x8xf32> -> vector<8x8xf32>
    %cst_132 = arith.constant dense<0.000000e+00> : vector<8x8xf32>
    %304 = tpu.matmul %300, %303, %cst_132 {dimension_numbers = #tpu.dot_dimension_numbers<[1], [0], [0], [1], [0, 0, 1, 1], [], []>} : vector<8x8xf32>, vector<8x8xf32>, vector<8x8xf32> -> vector<8x8xf32>
    %cst_133 = arith.constant 0.353553385 : f32
    %305 = vector.broadcast %cst_133 : f32 to vector<8x8xf32>
    %306 = arith.mulf %304, %305 : vector<8x8xf32>
    %307 = vector.broadcast %19 : vector<1x8xf32> to vector<8x8xf32>
    %308 = arith.addf %306, %307 : vector<8x8xf32>
    %cst_134 = arith.constant dense<0xFF800000> : vector<8xf32>
    %309 = vector.multi_reduction <maximumf>, %308, %cst_134 [1] : vector<8x8xf32> to vector<8xf32>
    %310 = vector.shape_cast %309 : vector<8xf32> to vector<8x1xf32>
    %311 = vector.broadcast %310 : vector<8x1xf32> to vector<8x8xf32>
    %312 = arith.subf %308, %311 : vector<8x8xf32>
    %313 = math.exp %312 : vector<8x8xf32>
    %cst_135 = arith.constant dense<0.000000e+00> : vector<8xf32>
    %314 = vector.multi_reduction <add>, %313, %cst_135 [1] : vector<8x8xf32> to vector<8xf32>
    %315 = vector.shape_cast %314 : vector<8xf32> to vector<8x1xf32>
    %316 = vector.broadcast %315 : vector<8x1xf32> to vector<8x8xf32>
    %317 = arith.divf %313, %316 : vector<8x8xf32>
    %c0_136 = arith.constant 0 : index
    %c2 = arith.constant 2 : index
    %c0_137 = arith.constant 0 : index
    %c0_138 = arith.constant 0 : index
    %318 = vector.load %arg26[%c0_136, %c2, %c0_137, %c0_138] : memref<2x4x8x8xf32, #tpu.memory_space<vmem>>, vector<1x1x8x8xf32>
    %319 = vector.shape_cast %318 : vector<1x1x8x8xf32> to vector<8x8xf32>
    %320 = vector.shape_cast %317 : vector<8x8xf32> to vector<1x1x8x8xf32>
    tpu.vector_store %arg26[%c0_136, %c2, %c0_137, %c0_138], %320 {strides = array<i32>} : memref<2x4x8x8xf32, #tpu.memory_space<vmem>>, vector<1x1x8x8xf32>,
    %cst_139 = arith.constant dense<0.000000e+00> : vector<8x8xf32>
    %321 = tpu.matmul %317, %302, %cst_139 {dimension_numbers = #tpu.dot_dimension_numbers<[1], [0], [0], [1], [0, 0, 1, 1], [], []>} : vector<8x8xf32>, vector<8x8xf32>, vector<8x8xf32> -> vector<8x8xf32>
    %c16_140 = arith.constant 16 : index
    %c0_141 = arith.constant 0 : index
    %322 = vector.load %arg15[%c16_140, %c0_141] : memref<32x32xf32, #tpu.memory_space<vmem>>, vector<8x32xf32>
    %cst_142 = arith.constant dense<0.000000e+00> : vector<8x32xf32>
    %323 = tpu.matmul %321, %322, %cst_142 {dimension_numbers = #tpu.dot_dimension_numbers<[1], [0], [0], [1], [0, 0, 1, 1], [], []>} : vector<8x8xf32>, vector<8x32xf32>, vector<8x32xf32> -> vector<8x32xf32>
    %324 = arith.addf %299, %323 : vector<8x32xf32>
    %325 = vector.extract_strided_slice %241 {offsets = [0, 24], sizes = [8, 8], strides = [1, 1]} : vector<16x32xf32> to vector<8x8xf32>
    %326 = vector.extract_strided_slice %249 {offsets = [0, 24], sizes = [8, 8], strides = [1, 1]} : vector<16x32xf32> to vector<8x8xf32>
    %327 = vector.extract_strided_slice %250 {offsets = [0, 24], sizes = [8, 8], strides = [1, 1]} : vector<16x32xf32> to vector<8x8xf32>
    %328 = tpu.transpose %326, [1, 0] : vector<8x8xf32> -> vector<8x8xf32>
    %cst_143 = arith.constant dense<0.000000e+00> : vector<8x8xf32>
    %329 = tpu.matmul %325, %328, %cst_143 {dimension_numbers = #tpu.dot_dimension_numbers<[1], [0], [0], [1], [0, 0, 1, 1], [], []>} : vector<8x8xf32>, vector<8x8xf32>, vector<8x8xf32> -> vector<8x8xf32>
    %cst_144 = arith.constant 0.353553385 : f32
    %330 = vector.broadcast %cst_144 : f32 to vector<8x8xf32>
    %331 = arith.mulf %329, %330 : vector<8x8xf32>
    %332 = vector.broadcast %19 : vector<1x8xf32> to vector<8x8xf32>
    %333 = arith.addf %331, %332 : vector<8x8xf32>
    %cst_145 = arith.constant dense<0xFF800000> : vector<8xf32>
    %334 = vector.multi_reduction <maximumf>, %333, %cst_145 [1] : vector<8x8xf32> to vector<8xf32>
    %335 = vector.shape_cast %334 : vector<8xf32> to vector<8x1xf32>
    %336 = vector.broadcast %335 : vector<8x1xf32> to vector<8x8xf32>
    %337 = arith.subf %333, %336 : vector<8x8xf32>
    %338 = math.exp %337 : vector<8x8xf32>
    %cst_146 = arith.constant dense<0.000000e+00> : vector<8xf32>
    %339 = vector.multi_reduction <add>, %338, %cst_146 [1] : vector<8x8xf32> to vector<8xf32>
    %340 = vector.shape_cast %339 : vector<8xf32> to vector<8x1xf32>
    %341 = vector.broadcast %340 : vector<8x1xf32> to vector<8x8xf32>
    %342 = arith.divf %338, %341 : vector<8x8xf32>
    %c0_147 = arith.constant 0 : index
    %c3 = arith.constant 3 : index
    %c0_148 = arith.constant 0 : index
    %c0_149 = arith.constant 0 : index
    %343 = vector.load %arg26[%c0_147, %c3, %c0_148, %c0_149] : memref<2x4x8x8xf32, #tpu.memory_space<vmem>>, vector<1x1x8x8xf32>
    %344 = vector.shape_cast %343 : vector<1x1x8x8xf32> to vector<8x8xf32>
    %345 = vector.shape_cast %342 : vector<8x8xf32> to vector<1x1x8x8xf32>
    tpu.vector_store %arg26[%c0_147, %c3, %c0_148, %c0_149], %345 {strides = array<i32>} : memref<2x4x8x8xf32, #tpu.memory_space<vmem>>, vector<1x1x8x8xf32>,
    %cst_150 = arith.constant dense<0.000000e+00> : vector<8x8xf32>
    %346 = tpu.matmul %342, %327, %cst_150 {dimension_numbers = #tpu.dot_dimension_numbers<[1], [0], [0], [1], [0, 0, 1, 1], [], []>} : vector<8x8xf32>, vector<8x8xf32>, vector<8x8xf32> -> vector<8x8xf32>
    %c24_151 = arith.constant 24 : index
    %c0_152 = arith.constant 0 : index
    %347 = vector.load %arg15[%c24_151, %c0_152] : memref<32x32xf32, #tpu.memory_space<vmem>>, vector<8x32xf32>
    %cst_153 = arith.constant dense<0.000000e+00> : vector<8x32xf32>
    %348 = tpu.matmul %346, %347, %cst_153 {dimension_numbers = #tpu.dot_dimension_numbers<[1], [0], [0], [1], [0, 0, 1, 1], [], []>} : vector<8x8xf32>, vector<8x32xf32>, vector<8x32xf32> -> vector<8x32xf32>
    %349 = arith.addf %324, %348 : vector<8x32xf32>
    %350 = vector.extract_strided_slice %241 {offsets = [8, 0], sizes = [8, 8], strides = [1, 1]} : vector<16x32xf32> to vector<8x8xf32>
    %351 = vector.extract_strided_slice %249 {offsets = [8, 0], sizes = [8, 8], strides = [1, 1]} : vector<16x32xf32> to vector<8x8xf32>
    %352 = vector.extract_strided_slice %250 {offsets = [8, 0], sizes = [8, 8], strides = [1, 1]} : vector<16x32xf32> to vector<8x8xf32>
    %353 = tpu.transpose %351, [1, 0] : vector<8x8xf32> -> vector<8x8xf32>
    %cst_154 = arith.constant dense<0.000000e+00> : vector<8x8xf32>
    %354 = tpu.matmul %350, %353, %cst_154 {dimension_numbers = #tpu.dot_dimension_numbers<[1], [0], [0], [1], [0, 0, 1, 1], [], []>} : vector<8x8xf32>, vector<8x8xf32>, vector<8x8xf32> -> vector<8x8xf32>
    %cst_155 = arith.constant 0.353553385 : f32
    %355 = vector.broadcast %cst_155 : f32 to vector<8x8xf32>
    %356 = arith.mulf %354, %355 : vector<8x8xf32>
    %357 = vector.broadcast %25 : vector<1x8xf32> to vector<8x8xf32>
    %358 = arith.addf %356, %357 : vector<8x8xf32>
    %cst_156 = arith.constant dense<0xFF800000> : vector<8xf32>
    %359 = vector.multi_reduction <maximumf>, %358, %cst_156 [1] : vector<8x8xf32> to vector<8xf32>
    %360 = vector.shape_cast %359 : vector<8xf32> to vector<8x1xf32>
    %361 = vector.broadcast %360 : vector<8x1xf32> to vector<8x8xf32>
    %362 = arith.subf %358, %361 : vector<8x8xf32>
    %363 = math.exp %362 : vector<8x8xf32>
    %cst_157 = arith.constant dense<0.000000e+00> : vector<8xf32>
    %364 = vector.multi_reduction <add>, %363, %cst_157 [1] : vector<8x8xf32> to vector<8xf32>
    %365 = vector.shape_cast %364 : vector<8xf32> to vector<8x1xf32>
    %366 = vector.broadcast %365 : vector<8x1xf32> to vector<8x8xf32>
    %367 = arith.divf %363, %366 : vector<8x8xf32>
    %c1_158 = arith.constant 1 : index
    %c0_159 = arith.constant 0 : index
    %c0_160 = arith.constant 0 : index
    %c0_161 = arith.constant 0 : index
    %368 = vector.load %arg26[%c1_158, %c0_159, %c0_160, %c0_161] : memref<2x4x8x8xf32, #tpu.memory_space<vmem>>, vector<1x1x8x8xf32>
    %369 = vector.shape_cast %368 : vector<1x1x8x8xf32> to vector<8x8xf32>
    %370 = vector.shape_cast %367 : vector<8x8xf32> to vector<1x1x8x8xf32>
    tpu.vector_store %arg26[%c1_158, %c0_159, %c0_160, %c0_161], %370 {strides = array<i32>} : memref<2x4x8x8xf32, #tpu.memory_space<vmem>>, vector<1x1x8x8xf32>,
    %cst_162 = arith.constant dense<0.000000e+00> : vector<8x8xf32>
    %371 = tpu.matmul %367, %352, %cst_162 {dimension_numbers = #tpu.dot_dimension_numbers<[1], [0], [0], [1], [0, 0, 1, 1], [], []>} : vector<8x8xf32>, vector<8x8xf32>, vector<8x8xf32> -> vector<8x8xf32>
    %c0_163 = arith.constant 0 : index
    %c0_164 = arith.constant 0 : index
    %372 = vector.load %arg15[%c0_163, %c0_164] : memref<32x32xf32, #tpu.memory_space<vmem>>, vector<8x32xf32>
    %cst_165 = arith.constant dense<0.000000e+00> : vector<8x32xf32>
    %373 = tpu.matmul %371, %372, %cst_165 {dimension_numbers = #tpu.dot_dimension_numbers<[1], [0], [0], [1], [0, 0, 1, 1], [], []>} : vector<8x8xf32>, vector<8x32xf32>, vector<8x32xf32> -> vector<8x32xf32>
    %374 = vector.extract_strided_slice %241 {offsets = [8, 8], sizes = [8, 8], strides = [1, 1]} : vector<16x32xf32> to vector<8x8xf32>
    %375 = vector.extract_strided_slice %249 {offsets = [8, 8], sizes = [8, 8], strides = [1, 1]} : vector<16x32xf32> to vector<8x8xf32>
    %376 = vector.extract_strided_slice %250 {offsets = [8, 8], sizes = [8, 8], strides = [1, 1]} : vector<16x32xf32> to vector<8x8xf32>
    %377 = tpu.transpose %375, [1, 0] : vector<8x8xf32> -> vector<8x8xf32>
    %cst_166 = arith.constant dense<0.000000e+00> : vector<8x8xf32>
    %378 = tpu.matmul %374, %377, %cst_166 {dimension_numbers = #tpu.dot_dimension_numbers<[1], [0], [0], [1], [0, 0, 1, 1], [], []>} : vector<8x8xf32>, vector<8x8xf32>, vector<8x8xf32> -> vector<8x8xf32>
    %cst_167 = arith.constant 0.353553385 : f32
    %379 = vector.broadcast %cst_167 : f32 to vector<8x8xf32>
    %380 = arith.mulf %378, %379 : vector<8x8xf32>
    %381 = vector.broadcast %25 : vector<1x8xf32> to vector<8x8xf32>
    %382 = arith.addf %380, %381 : vector<8x8xf32>
    %cst_168 = arith.constant dense<0xFF800000> : vector<8xf32>
    %383 = vector.multi_reduction <maximumf>, %382, %cst_168 [1] : vector<8x8xf32> to vector<8xf32>
    %384 = vector.shape_cast %383 : vector<8xf32> to vector<8x1xf32>
    %385 = vector.broadcast %384 : vector<8x1xf32> to vector<8x8xf32>
    %386 = arith.subf %382, %385 : vector<8x8xf32>
    %387 = math.exp %386 : vector<8x8xf32>
    %cst_169 = arith.constant dense<0.000000e+00> : vector<8xf32>
    %388 = vector.multi_reduction <add>, %387, %cst_169 [1] : vector<8x8xf32> to vector<8xf32>
    %389 = vector.shape_cast %388 : vector<8xf32> to vector<8x1xf32>
    %390 = vector.broadcast %389 : vector<8x1xf32> to vector<8x8xf32>
    %391 = arith.divf %387, %390 : vector<8x8xf32>
    %c1_170 = arith.constant 1 : index
    %c1_171 = arith.constant 1 : index
    %c0_172 = arith.constant 0 : index
    %c0_173 = arith.constant 0 : index
    %392 = vector.load %arg26[%c1_170, %c1_171, %c0_172, %c0_173] : memref<2x4x8x8xf32, #tpu.memory_space<vmem>>, vector<1x1x8x8xf32>
    %393 = vector.shape_cast %392 : vector<1x1x8x8xf32> to vector<8x8xf32>
    %394 = vector.shape_cast %391 : vector<8x8xf32> to vector<1x1x8x8xf32>
    tpu.vector_store %arg26[%c1_170, %c1_171, %c0_172, %c0_173], %394 {strides = array<i32>} : memref<2x4x8x8xf32, #tpu.memory_space<vmem>>, vector<1x1x8x8xf32>,
    %cst_174 = arith.constant dense<0.000000e+00> : vector<8x8xf32>
    %395 = tpu.matmul %391, %376, %cst_174 {dimension_numbers = #tpu.dot_dimension_numbers<[1], [0], [0], [1], [0, 0, 1, 1], [], []>} : vector<8x8xf32>, vector<8x8xf32>, vector<8x8xf32> -> vector<8x8xf32>
    %c8_175 = arith.constant 8 : index
    %c0_176 = arith.constant 0 : index
    %396 = vector.load %arg15[%c8_175, %c0_176] : memref<32x32xf32, #tpu.memory_space<vmem>>, vector<8x32xf32>
    %cst_177 = arith.constant dense<0.000000e+00> : vector<8x32xf32>
    %397 = tpu.matmul %395, %396, %cst_177 {dimension_numbers = #tpu.dot_dimension_numbers<[1], [0], [0], [1], [0, 0, 1, 1], [], []>} : vector<8x8xf32>, vector<8x32xf32>, vector<8x32xf32> -> vector<8x32xf32>
    %398 = arith.addf %373, %397 : vector<8x32xf32>
    %399 = vector.extract_strided_slice %241 {offsets = [8, 16], sizes = [8, 8], strides = [1, 1]} : vector<16x32xf32> to vector<8x8xf32>
    %400 = vector.extract_strided_slice %249 {offsets = [8, 16], sizes = [8, 8], strides = [1, 1]} : vector<16x32xf32> to vector<8x8xf32>
    %401 = vector.extract_strided_slice %250 {offsets = [8, 16], sizes = [8, 8], strides = [1, 1]} : vector<16x32xf32> to vector<8x8xf32>
    %402 = tpu.transpose %400, [1, 0] : vector<8x8xf32> -> vector<8x8xf32>
    %cst_178 = arith.constant dense<0.000000e+00> : vector<8x8xf32>
    %403 = tpu.matmul %399, %402, %cst_178 {dimension_numbers = #tpu.dot_dimension_numbers<[1], [0], [0], [1], [0, 0, 1, 1], [], []>} : vector<8x8xf32>, vector<8x8xf32>, vector<8x8xf32> -> vector<8x8xf32>
    %cst_179 = arith.constant 0.353553385 : f32
    %404 = vector.broadcast %cst_179 : f32 to vector<8x8xf32>
    %405 = arith.mulf %403, %404 : vector<8x8xf32>
    %406 = vector.broadcast %25 : vector<1x8xf32> to vector<8x8xf32>
    %407 = arith.addf %405, %406 : vector<8x8xf32>
    %cst_180 = arith.constant dense<0xFF800000> : vector<8xf32>
    %408 = vector.multi_reduction <maximumf>, %407, %cst_180 [1] : vector<8x8xf32> to vector<8xf32>
    %409 = vector.shape_cast %408 : vector<8xf32> to vector<8x1xf32>
    %410 = vector.broadcast %409 : vector<8x1xf32> to vector<8x8xf32>
    %411 = arith.subf %407, %410 : vector<8x8xf32>
    %412 = math.exp %411 : vector<8x8xf32>
    %cst_181 = arith.constant dense<0.000000e+00> : vector<8xf32>
    %413 = vector.multi_reduction <add>, %412, %cst_181 [1] : vector<8x8xf32> to vector<8xf32>
    %414 = vector.shape_cast %413 : vector<8xf32> to vector<8x1xf32>
    %415 = vector.broadcast %414 : vector<8x1xf32> to vector<8x8xf32>
    %416 = arith.divf %412, %415 : vector<8x8xf32>
    %c1_182 = arith.constant 1 : index
    %c2_183 = arith.constant 2 : index
    %c0_184 = arith.constant 0 : index
    %c0_185 = arith.constant 0 : index
    %417 = vector.load %arg26[%c1_182, %c2_183, %c0_184, %c0_185] : memref<2x4x8x8xf32, #tpu.memory_space<vmem>>, vector<1x1x8x8xf32>
    %418 = vector.shape_cast %417 : vector<1x1x8x8xf32> to vector<8x8xf32>
    %419 = vector.shape_cast %416 : vector<8x8xf32> to vector<1x1x8x8xf32>
    tpu.vector_store %arg26[%c1_182, %c2_183, %c0_184, %c0_185], %419 {strides = array<i32>} : memref<2x4x8x8xf32, #tpu.memory_space<vmem>>, vector<1x1x8x8xf32>,
    %cst_186 = arith.constant dense<0.000000e+00> : vector<8x8xf32>
    %420 = tpu.matmul %416, %401, %cst_186 {dimension_numbers = #tpu.dot_dimension_numbers<[1], [0], [0], [1], [0, 0, 1, 1], [], []>} : vector<8x8xf32>, vector<8x8xf32>, vector<8x8xf32> -> vector<8x8xf32>
    %c16_187 = arith.constant 16 : index
    %c0_188 = arith.constant 0 : index
    %421 = vector.load %arg15[%c16_187, %c0_188] : memref<32x32xf32, #tpu.memory_space<vmem>>, vector<8x32xf32>
    %cst_189 = arith.constant dense<0.000000e+00> : vector<8x32xf32>
    %422 = tpu.matmul %420, %421, %cst_189 {dimension_numbers = #tpu.dot_dimension_numbers<[1], [0], [0], [1], [0, 0, 1, 1], [], []>} : vector<8x8xf32>, vector<8x32xf32>, vector<8x32xf32> -> vector<8x32xf32>
    %423 = arith.addf %398, %422 : vector<8x32xf32>
    %424 = vector.extract_strided_slice %241 {offsets = [8, 24], sizes = [8, 8], strides = [1, 1]} : vector<16x32xf32> to vector<8x8xf32>
    %425 = vector.extract_strided_slice %249 {offsets = [8, 24], sizes = [8, 8], strides = [1, 1]} : vector<16x32xf32> to vector<8x8xf32>
    %426 = vector.extract_strided_slice %250 {offsets = [8, 24], sizes = [8, 8], strides = [1, 1]} : vector<16x32xf32> to vector<8x8xf32>
    %427 = tpu.transpose %425, [1, 0] : vector<8x8xf32> -> vector<8x8xf32>
    %cst_190 = arith.constant dense<0.000000e+00> : vector<8x8xf32>
    %428 = tpu.matmul %424, %427, %cst_190 {dimension_numbers = #tpu.dot_dimension_numbers<[1], [0], [0], [1], [0, 0, 1, 1], [], []>} : vector<8x8xf32>, vector<8x8xf32>, vector<8x8xf32> -> vector<8x8xf32>
    %cst_191 = arith.constant 0.353553385 : f32
    %429 = vector.broadcast %cst_191 : f32 to vector<8x8xf32>
    %430 = arith.mulf %428, %429 : vector<8x8xf32>
    %431 = vector.broadcast %25 : vector<1x8xf32> to vector<8x8xf32>
    %432 = arith.addf %430, %431 : vector<8x8xf32>
    %cst_192 = arith.constant dense<0xFF800000> : vector<8xf32>
    %433 = vector.multi_reduction <maximumf>, %432, %cst_192 [1] : vector<8x8xf32> to vector<8xf32>
    %434 = vector.shape_cast %433 : vector<8xf32> to vector<8x1xf32>
    %435 = vector.broadcast %434 : vector<8x1xf32> to vector<8x8xf32>
    %436 = arith.subf %432, %435 : vector<8x8xf32>
    %437 = math.exp %436 : vector<8x8xf32>
    %cst_193 = arith.constant dense<0.000000e+00> : vector<8xf32>
    %438 = vector.multi_reduction <add>, %437, %cst_193 [1] : vector<8x8xf32> to vector<8xf32>
    %439 = vector.shape_cast %438 : vector<8xf32> to vector<8x1xf32>
    %440 = vector.broadcast %439 : vector<8x1xf32> to vector<8x8xf32>
    %441 = arith.divf %437, %440 : vector<8x8xf32>
    %c1_194 = arith.constant 1 : index
    %c3_195 = arith.constant 3 : index
    %c0_196 = arith.constant 0 : index
    %c0_197 = arith.constant 0 : index
    %442 = vector.load %arg26[%c1_194, %c3_195, %c0_196, %c0_197] : memref<2x4x8x8xf32, #tpu.memory_space<vmem>>, vector<1x1x8x8xf32>
    %443 = vector.shape_cast %442 : vector<1x1x8x8xf32> to vector<8x8xf32>
    %444 = vector.shape_cast %441 : vector<8x8xf32> to vector<1x1x8x8xf32>
    tpu.vector_store %arg26[%c1_194, %c3_195, %c0_196, %c0_197], %444 {strides = array<i32>} : memref<2x4x8x8xf32, #tpu.memory_space<vmem>>, vector<1x1x8x8xf32>,
    %cst_198 = arith.constant dense<0.000000e+00> : vector<8x8xf32>
    %445 = tpu.matmul %441, %426, %cst_198 {dimension_numbers = #tpu.dot_dimension_numbers<[1], [0], [0], [1], [0, 0, 1, 1], [], []>} : vector<8x8xf32>, vector<8x8xf32>, vector<8x8xf32> -> vector<8x8xf32>
    %c24_199 = arith.constant 24 : index
    %c0_200 = arith.constant 0 : index
    %446 = vector.load %arg15[%c24_199, %c0_200] : memref<32x32xf32, #tpu.memory_space<vmem>>, vector<8x32xf32>
    %cst_201 = arith.constant dense<0.000000e+00> : vector<8x32xf32>
    %447 = tpu.matmul %445, %446, %cst_201 {dimension_numbers = #tpu.dot_dimension_numbers<[1], [0], [0], [1], [0, 0, 1, 1], [], []>} : vector<8x8xf32>, vector<8x32xf32>, vector<8x32xf32> -> vector<8x32xf32>
    %448 = arith.addf %423, %447 : vector<8x32xf32>
    %449 = tpu.concatenate %349, %448 in 0 : vector<8x32xf32>, vector<8x32xf32> -> vector<16x32xf32>
    %c0_202 = arith.constant 0 : index
    %c0_203 = arith.constant 0 : index
    %450 = vector.load %arg16[%c0_202, %c0_203] : memref<1x32xf32, #tpu.memory_space<vmem>>, vector<1x32xf32>
    %451 = vector.shape_cast %450 : vector<1x32xf32> to vector<32xf32>
    %452 = vector.shape_cast %451 : vector<32xf32> to vector<1x32xf32>
    %453 = vector.broadcast %452 : vector<1x32xf32> to vector<16x32xf32>
    %454 = arith.addf %449, %453 : vector<16x32xf32>
    %455 = arith.addf %234, %454 : vector<16x32xf32>
    %cst_204 = arith.constant dense<0.000000e+00> : vector<16xf32>
    %456 = vector.multi_reduction <add>, %455, %cst_204 [1] : vector<16x32xf32> to vector<16xf32>
    %457 = vector.shape_cast %456 : vector<16xf32> to vector<16x1xf32>
    %cst_205 = arith.constant 3.200000e+01 : f32
    %458 = vector.broadcast %cst_205 : f32 to vector<16x1xf32>
    %459 = arith.divf %457, %458 : vector<16x1xf32>
    %460 = vector.broadcast %459 : vector<16x1xf32> to vector<16x32xf32>
    %461 = arith.subf %455, %460 : vector<16x32xf32>
    %462 = arith.mulf %461, %461 : vector<16x32xf32>
    %cst_206 = arith.constant dense<0.000000e+00> : vector<16xf32>
    %463 = vector.multi_reduction <add>, %462, %cst_206 [1] : vector<16x32xf32> to vector<16xf32>
    %464 = vector.shape_cast %463 : vector<16xf32> to vector<16x1xf32>
    %cst_207 = arith.constant 3.200000e+01 : f32
    %465 = vector.broadcast %cst_207 : f32 to vector<16x1xf32>
    %466 = arith.divf %464, %465 : vector<16x1xf32>
    %cst_208 = arith.constant 9.99999974E-6 : f32
    %467 = vector.broadcast %cst_208 : f32 to vector<16x1xf32>
    %468 = arith.addf %466, %467 : vector<16x1xf32>
    %469 = math.rsqrt %468 : vector<16x1xf32>
    %470 = vector.broadcast %469 : vector<16x1xf32> to vector<16x32xf32>
    %471 = arith.mulf %461, %470 : vector<16x32xf32>
    %c0_209 = arith.constant 0 : index
    %c0_210 = arith.constant 0 : index
    %472 = vector.load %arg17[%c0_209, %c0_210] : memref<1x32xf32, #tpu.memory_space<vmem>>, vector<1x32xf32>
    %473 = vector.shape_cast %472 : vector<1x32xf32> to vector<32xf32>
    %474 = vector.shape_cast %473 : vector<32xf32> to vector<1x32xf32>
    %475 = vector.broadcast %474 : vector<1x32xf32> to vector<16x32xf32>
    %476 = arith.mulf %471, %475 : vector<16x32xf32>
    %c0_211 = arith.constant 0 : index
    %c0_212 = arith.constant 0 : index
    %477 = vector.load %arg18[%c0_211, %c0_212] : memref<1x32xf32, #tpu.memory_space<vmem>>, vector<1x32xf32>
    %478 = vector.shape_cast %477 : vector<1x32xf32> to vector<32xf32>
    %479 = vector.shape_cast %478 : vector<32xf32> to vector<1x32xf32>
    %480 = vector.broadcast %479 : vector<1x32xf32> to vector<16x32xf32>
    %481 = arith.addf %476, %480 : vector<16x32xf32>
    %c0_213 = arith.constant 0 : index
    %c0_214 = arith.constant 0 : index
    %482 = vector.load %arg19[%c0_213, %c0_214] : memref<32x64xf32, #tpu.memory_space<vmem>>, vector<32x64xf32>
    %cst_215 = arith.constant dense<0.000000e+00> : vector<16x64xf32>
    %483 = tpu.matmul %481, %482, %cst_215 {dimension_numbers = #tpu.dot_dimension_numbers<[1], [0], [0], [1], [0, 0, 1, 1], [], []>} : vector<16x32xf32>, vector<32x64xf32>, vector<16x64xf32> -> vector<16x64xf32>
    %c0_216 = arith.constant 0 : index
    %c0_217 = arith.constant 0 : index
    %484 = vector.load %arg20[%c0_216, %c0_217] : memref<1x64xf32, #tpu.memory_space<vmem>>, vector<1x64xf32>
    %485 = vector.shape_cast %484 : vector<1x64xf32> to vector<64xf32>
    %486 = vector.shape_cast %485 : vector<64xf32> to vector<1x64xf32>
    %487 = vector.broadcast %486 : vector<1x64xf32> to vector<16x64xf32>
    %488 = arith.addf %483, %487 : vector<16x64xf32>
    %cst_218 = arith.constant 0.000000e+00 : f32
    %489 = vector.broadcast %cst_218 : f32 to vector<16x64xf32>
    %490 = arith.maximumf %488, %489 : vector<16x64xf32>
    %c0_219 = arith.constant 0 : index
    %c0_220 = arith.constant 0 : index
    %491 = vector.load %arg21[%c0_219, %c0_220] : memref<64x32xf32, #tpu.memory_space<vmem>>, vector<64x32xf32>
    %cst_221 = arith.constant dense<0.000000e+00> : vector<16x32xf32>
    %492 = tpu.matmul %490, %491, %cst_221 {dimension_numbers = #tpu.dot_dimension_numbers<[1], [0], [0], [1], [0, 0, 1, 1], [], []>} : vector<16x64xf32>, vector<64x32xf32>, vector<16x32xf32> -> vector<16x32xf32>
    %c0_222 = arith.constant 0 : index
    %c0_223 = arith.constant 0 : index
    %493 = vector.load %arg22[%c0_222, %c0_223] : memref<1x32xf32, #tpu.memory_space<vmem>>, vector<1x32xf32>
    %494 = vector.shape_cast %493 : vector<1x32xf32> to vector<32xf32>
    %495 = vector.shape_cast %494 : vector<32xf32> to vector<1x32xf32>
    %496 = vector.broadcast %495 : vector<1x32xf32> to vector<16x32xf32>
    %497 = arith.addf %492, %496 : vector<16x32xf32>
    %498 = arith.addf %481, %497 : vector<16x32xf32>
    %cst_224 = arith.constant dense<0.000000e+00> : vector<16xf32>
    %499 = vector.multi_reduction <add>, %498, %cst_224 [1] : vector<16x32xf32> to vector<16xf32>
    %500 = vector.shape_cast %499 : vector<16xf32> to vector<16x1xf32>
    %cst_225 = arith.constant 3.200000e+01 : f32
    %501 = vector.broadcast %cst_225 : f32 to vector<16x1xf32>
    %502 = arith.divf %500, %501 : vector<16x1xf32>
    %503 = vector.broadcast %502 : vector<16x1xf32> to vector<16x32xf32>
    %504 = arith.subf %498, %503 : vector<16x32xf32>
    %505 = arith.mulf %504, %504 : vector<16x32xf32>
    %cst_226 = arith.constant dense<0.000000e+00> : vector<16xf32>
    %506 = vector.multi_reduction <add>, %505, %cst_226 [1] : vector<16x32xf32> to vector<16xf32>
    %507 = vector.shape_cast %506 : vector<16xf32> to vector<16x1xf32>
    %cst_227 = arith.constant 3.200000e+01 : f32
    %508 = vector.broadcast %cst_227 : f32 to vector<16x1xf32>
    %509 = arith.divf %507, %508 : vector<16x1xf32>
    %cst_228 = arith.constant 9.99999974E-6 : f32
    %510 = vector.broadcast %cst_228 : f32 to vector<16x1xf32>
    %511 = arith.addf %509, %510 : vector<16x1xf32>
    %512 = math.rsqrt %511 : vector<16x1xf32>
    %513 = vector.broadcast %512 : vector<16x1xf32> to vector<16x32xf32>
    %514 = arith.mulf %504, %513 : vector<16x32xf32>
    %c0_229 = arith.constant 0 : index
    %c0_230 = arith.constant 0 : index
    %515 = vector.load %arg23[%c0_229, %c0_230] : memref<1x32xf32, #tpu.memory_space<vmem>>, vector<1x32xf32>
    %516 = vector.shape_cast %515 : vector<1x32xf32> to vector<32xf32>
    %517 = vector.shape_cast %516 : vector<32xf32> to vector<1x32xf32>
    %518 = vector.broadcast %517 : vector<1x32xf32> to vector<16x32xf32>
    %519 = arith.mulf %514, %518 : vector<16x32xf32>
    %c0_231 = arith.constant 0 : index
    %c0_232 = arith.constant 0 : index
    %520 = vector.load %arg24[%c0_231, %c0_232] : memref<1x32xf32, #tpu.memory_space<vmem>>, vector<1x32xf32>
    %521 = vector.shape_cast %520 : vector<1x32xf32> to vector<32xf32>
    %522 = vector.shape_cast %521 : vector<32xf32> to vector<1x32xf32>
    %523 = vector.broadcast %522 : vector<1x32xf32> to vector<16x32xf32>
    %524 = arith.addf %519, %523 : vector<16x32xf32>
    %c0_233 = arith.constant 0 : index
    %c0_234 = arith.constant 0 : index
    %525 = vector.load %arg25[%c0_233, %c0_234] : memref<16x32xf32, #tpu.memory_space<vmem>>, vector<16x32xf32>
    tpu.vector_store %arg25[%c0_233, %c0_234], %524 {strides = array<i32>} : memref<16x32xf32, #tpu.memory_space<vmem>>, vector<16x32xf32>,
    return
  }
  func.func @transform_0(%arg0: i32) -> (i32, i32) {
    %c0_i32 = arith.constant 0 : i32
    %c0_i32_0 = arith.constant 0 : i32
    %c0_i32_1 = arith.constant 0 : i32
    return %c0_i32, %c0_i32_0 : i32, i32
  }
  func.func @transform_1(%arg0: i32) -> (i32, i32) {
    %c0_i32 = arith.constant 0 : i32
    %c0_i32_0 = arith.constant 0 : i32
    %c0_i32_1 = arith.constant 0 : i32
    return %c0_i32, %c0_i32_0 : i32, i32
  }
  func.func @transform_2(%arg0: i32) -> (i32, i32, i32) {
    %c0_i32 = arith.constant 0 : i32
    %c0_i32_0 = arith.constant 0 : i32
    %c0_i32_1 = arith.constant 0 : i32
    %c0_i32_2 = arith.constant 0 : i32
    return %c0_i32, %c0_i32_0, %c0_i32_1 : i32, i32, i32
  }
  func.func @transform_3(%arg0: i32) -> (i32, i32, i32) {
    %c0_i32 = arith.constant 0 : i32
    %c0_i32_0 = arith.constant 0 : i32
    %c0_i32_1 = arith.constant 0 : i32
    %c0_i32_2 = arith.constant 0 : i32
    return %c0_i32, %c0_i32_0, %c0_i32_1 : i32, i32, i32
  }
  func.func @transform_4(%arg0: i32) -> (i32, i32) {
    %c0_i32 = arith.constant 0 : i32
    %c0_i32_0 = arith.constant 0 : i32
    %c0_i32_1 = arith.constant 0 : i32
    return %c0_i32, %c0_i32_0 : i32, i32
  }
  func.func @transform_5(%arg0: i32) -> (i32, i32) {
    %c0_i32 = arith.constant 0 : i32
    %c0_i32_0 = arith.constant 0 : i32
    %c0_i32_1 = arith.constant 0 : i32
    return %c0_i32, %c0_i32_0 : i32, i32
  }
  func.func @transform_6(%arg0: i32) -> (i32, i32) {
    %c0_i32 = arith.constant 0 : i32
    %c0_i32_0 = arith.constant 0 : i32
    %c0_i32_1 = arith.constant 0 : i32
    return %c0_i32, %c0_i32_0 : i32, i32
  }
  func.func @transform_7(%arg0: i32) -> (i32, i32) {
    %c0_i32 = arith.constant 0 : i32
    %c0_i32_0 = arith.constant 0 : i32
    %c0_i32_1 = arith.constant 0 : i32
    return %c0_i32, %c0_i32_0 : i32, i32
  }
  func.func @transform_8(%arg0: i32) -> (i32, i32) {
    %c0_i32 = arith.constant 0 : i32
    %c0_i32_0 = arith.constant 0 : i32
    %c0_i32_1 = arith.constant 0 : i32
    return %c0_i32, %c0_i32_0 : i32, i32
  }
  func.func @transform_9(%arg0: i32) -> (i32, i32) {
    %c0_i32 = arith.constant 0 : i32
    %c0_i32_0 = arith.constant 0 : i32
    %c0_i32_1 = arith.constant 0 : i32
    return %c0_i32, %c0_i32_0 : i32, i32
  }
  func.func @transform_10(%arg0: i32) -> (i32, i32) {
    %c0_i32 = arith.constant 0 : i32
    %c0_i32_0 = arith.constant 0 : i32
    %c0_i32_1 = arith.constant 0 : i32
    return %c0_i32, %c0_i32_0 : i32, i32
  }
  func.func @transform_11(%arg0: i32) -> (i32, i32) {
    %c0_i32 = arith.constant 0 : i32
    %c0_i32_0 = arith.constant 0 : i32
    %c0_i32_1 = arith.constant 0 : i32
    return %c0_i32, %c0_i32_0 : i32, i32
  }
  func.func @transform_12(%arg0: i32) -> (i32, i32) {
    %c0_i32 = arith.constant 0 : i32
    %c0_i32_0 = arith.constant 0 : i32
    %c0_i32_1 = arith.constant 0 : i32
    return %c0_i32, %c0_i32_0 : i32, i32
  }
  func.func @transform_13(%arg0: i32) -> (i32, i32) {
    %c0_i32 = arith.constant 0 : i32
    %c0_i32_0 = arith.constant 0 : i32
    %c0_i32_1 = arith.constant 0 : i32
    return %c0_i32, %c0_i32_0 : i32, i32
  }
  func.func @transform_14(%arg0: i32) -> (i32, i32) {
    %c0_i32 = arith.constant 0 : i32
    %c0_i32_0 = arith.constant 0 : i32
    %c0_i32_1 = arith.constant 0 : i32
    return %c0_i32, %c0_i32_0 : i32, i32
  }
  func.func @transform_15(%arg0: i32) -> (i32, i32) {
    %c0_i32 = arith.constant 0 : i32
    %c0_i32_0 = arith.constant 0 : i32
    %c0_i32_1 = arith.constant 0 : i32
    return %c0_i32, %c0_i32_0 : i32, i32
  }
  func.func @transform_16(%arg0: i32) -> (i32, i32) {
    %c0_i32 = arith.constant 0 : i32
    %c0_i32_0 = arith.constant 0 : i32
    %c0_i32_1 = arith.constant 0 : i32
    return %c0_i32, %c0_i32_0 : i32, i32
  }
  func.func @transform_17(%arg0: i32) -> (i32, i32) {
    %c0_i32 = arith.constant 0 : i32
    %c0_i32_0 = arith.constant 0 : i32
    %c0_i32_1 = arith.constant 0 : i32
    return %c0_i32, %c0_i32_0 : i32, i32
  }
  func.func @transform_18(%arg0: i32) -> (i32, i32) {
    %c0_i32 = arith.constant 0 : i32
    %c0_i32_0 = arith.constant 0 : i32
    %c0_i32_1 = arith.constant 0 : i32
    return %c0_i32, %c0_i32_0 : i32, i32
  }
  func.func @transform_19(%arg0: i32) -> (i32, i32) {
    %c0_i32 = arith.constant 0 : i32
    %c0_i32_0 = arith.constant 0 : i32
    %c0_i32_1 = arith.constant 0 : i32
    return %c0_i32, %c0_i32_0 : i32, i32
  }
  func.func @transform_20(%arg0: i32) -> (i32, i32) {
    %c0_i32 = arith.constant 0 : i32
    %c0_i32_0 = arith.constant 0 : i32
    %c0_i32_1 = arith.constant 0 : i32
    return %c0_i32, %c0_i32_0 : i32, i32
  }
  func.func @transform_21(%arg0: i32) -> (i32, i32) {
    %c0_i32 = arith.constant 0 : i32
    %c0_i32_0 = arith.constant 0 : i32
    %c0_i32_1 = arith.constant 0 : i32
    return %c0_i32, %c0_i32_0 : i32, i32
  }
  func.func @transform_22(%arg0: i32) -> (i32, i32) {
    %c0_i32 = arith.constant 0 : i32
    %c0_i32_0 = arith.constant 0 : i32
    %c0_i32_1 = arith.constant 0 : i32
    return %c0_i32, %c0_i32_0 : i32, i32
  }
  func.func @transform_23(%arg0: i32) -> (i32, i32) {
    %c0_i32 = arith.constant 0 : i32
    %c0_i32_0 = arith.constant 0 : i32
    %c0_i32_1 = arith.constant 0 : i32
    return %c0_i32, %c0_i32_0 : i32, i32
  }
  func.func @transform_24(%arg0: i32) -> (i32, i32) {
    %c0_i32 = arith.constant 0 : i32
    %c0_i32_0 = arith.constant 0 : i32
    %c0_i32_1 = arith.constant 0 : i32
    return %c0_i32, %c0_i32_0 : i32, i32
  }
  func.func @transform_25(%arg0: i32) -> (i32, i32, i32, i32) {
    %c0_i32 = arith.constant 0 : i32
    %c0_i32_0 = arith.constant 0 : i32
    %c0_i32_1 = arith.constant 0 : i32
    %c0_i32_2 = arith.constant 0 : i32
    %c0_i32_3 = arith.constant 0 : i32
    return %c0_i32, %c0_i32_0, %c0_i32_1, %c0_i32_2 : i32, i32, i32, i32
  }
}

</mosaic_0001>

<llo_original>
// kernel: decoder_layer.1
$region0: #{decoder_layer.1}
  #allocation0 [shape = 'u32[]', space=smem, size = 0x4, offset = 0x4, fixed_abs, tag = 'smem constant byte address 0x4 - core index']
  #allocation1 [shape = 'u32[144,128]{1,0:T(1,128)}', space=vmem, size = 0x12000, scoped, tag = 'internal scratch']
  %s0 = inlined_call_operand.hbm [shape: f32[16,32], index: 0, kind: input, shape index: {}]
  %s1 = inlined_call_operand.vmem [shape: f32[16,32], index: 1, kind: input, shape index: {}]
  %s2 = inlined_call_operand.hbm [shape: f32[2,8,8], index: 2, kind: input, shape index: {}]
  %s3 = inlined_call_operand.vmem [shape: f32[2,1,8], index: 3, kind: input, shape index: {}]
  %s4 = inlined_call_operand.vmem [shape: f32[32,96], index: 4, kind: input, shape index: {}]
  %s5 = inlined_call_operand.vmem [shape: f32[1,96], index: 5, kind: input, shape index: {}]
  %s6 = inlined_call_operand.vmem [shape: f32[32,32], index: 6, kind: input, shape index: {}]
  %s7 = inlined_call_operand.vmem [shape: f32[1,32], index: 7, kind: input, shape index: {}]
  %s8 = inlined_call_operand.vmem [shape: f32[1,32], index: 8, kind: input, shape index: {}]
  %s9 = inlined_call_operand.vmem [shape: f32[1,32], index: 9, kind: input, shape index: {}]
  %s10 = inlined_call_operand.vmem [shape: f32[32,32], index: 10, kind: input, shape index: {}]
  %s11 = inlined_call_operand.vmem [shape: f32[1,32], index: 11, kind: input, shape index: {}]
  %s12 = inlined_call_operand.hbm [shape: f32[32,64], index: 12, kind: input, shape index: {}]
  %s13 = inlined_call_operand.vmem [shape: f32[1,64], index: 13, kind: input, shape index: {}]
  %s14 = inlined_call_operand.hbm [shape: f32[32,32], index: 14, kind: input, shape index: {}]
  %s15 = inlined_call_operand.vmem [shape: f32[1,32], index: 15, kind: input, shape index: {}]
  %s16 = inlined_call_operand.vmem [shape: f32[1,32], index: 16, kind: input, shape index: {}]
  %s17 = inlined_call_operand.vmem [shape: f32[1,32], index: 17, kind: input, shape index: {}]
  %s18 = inlined_call_operand.hbm [shape: f32[32,64], index: 18, kind: input, shape index: {}]
  %s19 = inlined_call_operand.vmem [shape: f32[1,64], index: 19, kind: input, shape index: {}]
  %s20 = inlined_call_operand.vmem [shape: f32[64,32], index: 20, kind: input, shape index: {}]
  %s21 = inlined_call_operand.vmem [shape: f32[1,32], index: 21, kind: input, shape index: {}]
  %s22 = inlined_call_operand.vmem [shape: f32[1,32], index: 22, kind: input, shape index: {}]
  %s23 = inlined_call_operand.vmem [shape: f32[1,32], index: 23, kind: input, shape index: {}]
  %s24 = inlined_call_operand.hbm [shape: f32[16,32], index: 24, kind: output, shape index: {0}]
  %s25 = inlined_call_operand.hbm [shape: f32[2,4,8,8], index: 25, kind: output, shape index: {1}]
  %26 = xla_tuple %s24, %s25
  %s27 = sld [smem:[#allocation0]]
  $region134: #{decoder_layer.1} parent=0
    _
  %s29 = ssub.s32 1, %s27
  %s30 = scalar_select 0, %s29, %s27
  $region1: #{decoder_layer.1} parent=0
    #allocation2 [shape = 'u8[8192]{0}', space=vmem, size = 0x2000, scoped, tag = 'input window, operand 0, single buffered']
    #allocation3 [shape = 's32[1]{0}', space=sflag, size = 0x4, scoped, tag = 'scoped memory for decoder_layer.1']
    #allocation4 [shape = 's32[1]{0}', space=sflag, size = 0x4, scoped, tag = 'scoped memory for decoder_layer.1']
    #allocation5 [shape = 'u8[8192]{0}', space=vmem, size = 0x2000, scoped, tag = 'input window, operand 2, single buffered']
    #allocation6 [shape = 's32[1]{0}', space=sflag, size = 0x4, scoped, tag = 'scoped memory for decoder_layer.1']
    #allocation7 [shape = 'u8[16384]{0}', space=vmem, size = 0x4000, scoped, tag = 'input window, operand 12, single buffered']
    #allocation8 [shape = 'u8[16384]{0}', space=vmem, size = 0x4000, scoped, tag = 'input window, operand 14, single buffered']
    #allocation9 [shape = 's32[1]{0}', space=sflag, size = 0x4, scoped, tag = 'scoped memory for decoder_layer.1']
    #allocation10 [shape = 'u8[16384]{0}', space=vmem, size = 0x4000, scoped, tag = 'input window, operand 18, single buffered']
    #allocation11 [shape = 'u8[8192]{0}', space=vmem, size = 0x2000, scoped, tag = 'output window, operand 0, single buffered']
    #allocation12 [shape = 'u8[32768]{0}', space=vmem, size = 0x8000, scoped, tag = 'output window, operand 1, single buffered']
    #allocation13 [shape = 's32[1]{0}', space=sflag, size = 0x4, scoped, tag = 'scoped memory for decoder_layer.1']
    %31 = vsyncpa [#allocation3], 0
    %32 = vsyncpa [#allocation6], 0
    %33 = vsyncpa [#allocation9], 0
    %34 = vsyncpa [#allocation4], 0
    %35 = vsyncpa [#allocation13], 0
    // Predicated region
    $region2: #{decoder_layer.1} parent=1 // pred_check
      _
    $region3: #{decoder_layer.1} parent=1 // pred_check_branch
      %37 = sbr.rel (0) target = $region5
    $region4: #{decoder_layer.1} parent=1 // pred_region
      %s39 = ssub.s32 256, 256
      %40 = vsyncadd [#allocation3], %s39
      %s41 = sshll.u32 [#allocation2], 4
      %s42 = int_to_ptr.vmem [resolvable:$true] %s41
      %47 = dma.hbm_to_vmem [thread:$0]  %s0, 256, %s42, [#allocation3], 128, 128, 8
    $region5: #{decoder_layer.1} parent=1 // pred_fallthru
      _
    // Predicated region
    $region6: #{decoder_layer.1} parent=1 // pred_check
      _
    $region7: #{decoder_layer.1} parent=1 // pred_check_branch
      %49 = sbr.rel (0) target = $region9
    $region8: #{decoder_layer.1} parent=1 // pred_region
      _
    $region9: #{decoder_layer.1} parent=1 // pred_fallthru
      _
    // Predicated region
    $region10: #{decoder_layer.1} parent=1 // pred_check
      _
    $region11: #{decoder_layer.1} parent=1 // pred_check_branch
      %51 = sbr.rel (0) target = $region13
    $region12: #{decoder_layer.1} parent=1 // pred_region
      %s53 = ssub.s32 256, 256
      %54 = vsyncadd [#allocation6], %s53
      %s55 = sshll.u32 [#allocation5], 4
      %s56 = int_to_ptr.vmem [resolvable:$true] %s55
      %61 = dma.hbm_to_vmem [thread:$0]  %s2, 256, %s56, [#allocation6], 128, 128, 8
    $region13: #{decoder_layer.1} parent=1 // pred_fallthru
      _
    // Predicated region
    $region14: #{decoder_layer.1} parent=1 // pred_check
      _
    $region15: #{decoder_layer.1} parent=1 // pred_check_branch
      %63 = sbr.rel (0) target = $region17
    $region16: #{decoder_layer.1} parent=1 // pred_region
      _
    $region17: #{decoder_layer.1} parent=1 // pred_fallthru
      _
    // Predicated region
    $region18: #{decoder_layer.1} parent=1 // pred_check
      _
    $region19: #{decoder_layer.1} parent=1 // pred_check_branch
      %65 = sbr.rel (0) target = $region21
    $region20: #{decoder_layer.1} parent=1 // pred_region
      _
    $region21: #{decoder_layer.1} parent=1 // pred_fallthru
      _
    // Predicated region
    $region22: #{decoder_layer.1} parent=1 // pred_check
      _
    $region23: #{decoder_layer.1} parent=1 // pred_check_branch
      %67 = sbr.rel (0) target = $region25
    $region24: #{decoder_layer.1} parent=1 // pred_region
      _
    $region25: #{decoder_layer.1} parent=1 // pred_fallthru
      _
    // Predicated region
    $region26: #{decoder_layer.1} parent=1 // pred_check
      _
    $region27: #{decoder_layer.1} parent=1 // pred_check_branch
      %69 = sbr.rel (0) target = $region29
    $region28: #{decoder_layer.1} parent=1 // pred_region
      _
    $region29: #{decoder_layer.1} parent=1 // pred_fallthru
      _
    // Predicated region
    $region30: #{decoder_layer.1} parent=1 // pred_check
      _
    $region31: #{decoder_layer.1} parent=1 // pred_check_branch
      %71 = sbr.rel (0) target = $region33
    $region32: #{decoder_layer.1} parent=1 // pred_region
      _
    $region33: #{decoder_layer.1} parent=1 // pred_fallthru
      _
    // Predicated region
    $region34: #{decoder_layer.1} parent=1 // pred_check
      _
    $region35: #{decoder_layer.1} parent=1 // pred_check_branch
      %73 = sbr.rel (0) target = $region37
    $region36: #{decoder_layer.1} parent=1 // pred_region
      _
    $region37: #{decoder_layer.1} parent=1 // pred_fallthru
      _
    // Predicated region
    $region38: #{decoder_layer.1} parent=1 // pred_check
      _
    $region39: #{decoder_layer.1} parent=1 // pred_check_branch
      %75 = sbr.rel (0) target = $region41
    $region40: #{decoder_layer.1} parent=1 // pred_region
      _
    $region41: #{decoder_layer.1} parent=1 // pred_fallthru
      _
    // Predicated region
    $region42: #{decoder_layer.1} parent=1 // pred_check
      _
    $region43: #{decoder_layer.1} parent=1 // pred_check_branch
      %77 = sbr.rel (0) target = $region45
    $region44: #{decoder_layer.1} parent=1 // pred_region
      _
    $region45: #{decoder_layer.1} parent=1 // pred_fallthru
      _
    // Predicated region
    $region46: #{decoder_layer.1} parent=1 // pred_check
      _
    $region47: #{decoder_layer.1} parent=1 // pred_check_branch
      %79 = sbr.rel (0) target = $region49
    $region48: #{decoder_layer.1} parent=1 // pred_region
      _
    $region49: #{decoder_layer.1} parent=1 // pred_fallthru
      _
    // Predicated region
    $region50: #{decoder_layer.1} parent=1 // pred_check
      _
    $region51: #{decoder_layer.1} parent=1 // pred_check_branch
      %81 = sbr.rel (0) target = $region53
    $region52: #{decoder_layer.1} parent=1 // pred_region
      %s83 = ssub.s32 512, 512
      %84 = vsyncadd [#allocation6], %s83
      %s85 = sshll.u32 [#allocation7], 4
      %s86 = int_to_ptr.vmem [resolvable:$true] %s85
      %91 = dma.hbm_to_vmem [thread:$0]  %s12, 512, %s86, [#allocation6], 128, 128, 8
    $region53: #{decoder_layer.1} parent=1 // pred_fallthru
      _
    // Predicated region
    $region54: #{decoder_layer.1} parent=1 // pred_check
      _
    $region55: #{decoder_layer.1} parent=1 // pred_check_branch
      %93 = sbr.rel (0) target = $region57
    $region56: #{decoder_layer.1} parent=1 // pred_region
      _
    $region57: #{decoder_layer.1} parent=1 // pred_fallthru
      _
    // Predicated region
    $region58: #{decoder_layer.1} parent=1 // pred_check
      _
    $region59: #{decoder_layer.1} parent=1 // pred_check_branch
      %95 = sbr.rel (0) target = $region61
    $region60: #{decoder_layer.1} parent=1 // pred_region
      %s97 = ssub.s32 512, 512
      %98 = vsyncadd [#allocation9], %s97
      %s99 = sshll.u32 [#allocation8], 4
      %s100 = int_to_ptr.vmem [resolvable:$true] %s99
      %105 = dma.hbm_to_vmem [thread:$0]  %s14, 512, %s100, [#allocation9], 128, 128, 8
    $region61: #{decoder_layer.1} parent=1 // pred_fallthru
      _
    // Predicated region
    $region62: #{decoder_layer.1} parent=1 // pred_check
      _
    $region63: #{decoder_layer.1} parent=1 // pred_check_branch
      %107 = sbr.rel (0) target = $region65
    $region64: #{decoder_layer.1} parent=1 // pred_region
      _
    $region65: #{decoder_layer.1} parent=1 // pred_fallthru
      _
    // Predicated region
    $region66: #{decoder_layer.1} parent=1 // pred_check
      _
    $region67: #{decoder_layer.1} parent=1 // pred_check_branch
      %109 = sbr.rel (0) target = $region69
    $region68: #{decoder_layer.1} parent=1 // pred_region
      _
    $region69: #{decoder_layer.1} parent=1 // pred_fallthru
      _
    // Predicated region
    $region70: #{decoder_layer.1} parent=1 // pred_check
      _
    $region71: #{decoder_layer.1} parent=1 // pred_check_branch
      %111 = sbr.rel (0) target = $region73
    $region72: #{decoder_layer.1} parent=1 // pred_region
      _
    $region73: #{decoder_layer.1} parent=1 // pred_fallthru
      _
    // Predicated region
    $region74: #{decoder_layer.1} parent=1 // pred_check
      _
    $region75: #{decoder_layer.1} parent=1 // pred_check_branch
      %113 = sbr.rel (0) target = $region77
    $region76: #{decoder_layer.1} parent=1 // pred_region
      %s115 = ssub.s32 512, 512
      %116 = vsyncadd [#allocation9], %s115
      %s117 = sshll.u32 [#allocation10], 4
      %s118 = int_to_ptr.vmem [resolvable:$true] %s117
      %123 = dma.hbm_to_vmem [thread:$0]  %s18, 512, %s118, [#allocation9], 128, 128, 8
    $region77: #{decoder_layer.1} parent=1 // pred_fallthru
      _
    // Predicated region
    $region78: #{decoder_layer.1} parent=1 // pred_check
      _
    $region79: #{decoder_layer.1} parent=1 // pred_check_branch
      %125 = sbr.rel (0) target = $region81
    $region80: #{decoder_layer.1} parent=1 // pred_region
      _
    $region81: #{decoder_layer.1} parent=1 // pred_fallthru
      _
    // Predicated region
    $region82: #{decoder_layer.1} parent=1 // pred_check
      _
    $region83: #{decoder_layer.1} parent=1 // pred_check_branch
      %127 = sbr.rel (0) target = $region85
    $region84: #{decoder_layer.1} parent=1 // pred_region
      _
    $region85: #{decoder_layer.1} parent=1 // pred_fallthru
      _
    // Predicated region
    $region86: #{decoder_layer.1} parent=1 // pred_check
      _
    $region87: #{decoder_layer.1} parent=1 // pred_check_branch
      %129 = sbr.rel (0) target = $region89
    $region88: #{decoder_layer.1} parent=1 // pred_region
      _
    $region89: #{decoder_layer.1} parent=1 // pred_fallthru
      _
    // Predicated region
    $region90: #{decoder_layer.1} parent=1 // pred_check
      _
    $region91: #{decoder_layer.1} parent=1 // pred_check_branch
      %131 = sbr.rel (0) target = $region93
    $region92: #{decoder_layer.1} parent=1 // pred_region
      _
    $region93: #{decoder_layer.1} parent=1 // pred_fallthru
      _
    // Predicated region
    $region94: #{decoder_layer.1} parent=1 // pred_check
      _
    $region95: #{decoder_layer.1} parent=1 // pred_check_branch
      %133 = sbr.rel (0) target = $region97
    $region96: #{decoder_layer.1} parent=1 // pred_region
      _
    $region97: #{decoder_layer.1} parent=1 // pred_fallthru
      _
    // Predicated region
    $region98: #{decoder_layer.1} parent=1 // pred_check
      _
    $region99: #{decoder_layer.1} parent=1 // pred_check_branch
      %135 = sbr.rel (0) target = $region101
    $region100: #{decoder_layer.1} parent=1 // pred_region
      %136 = dma.done [#allocation3], 256
    $region101: #{decoder_layer.1} parent=1 // pred_fallthru
      _
    // Predicated region
    $region102: #{decoder_layer.1} parent=1 // pred_check
      _
    $region103: #{decoder_layer.1} parent=1 // pred_check_branch
      %138 = sbr.rel (0) target = $region105
    $region104: #{decoder_layer.1} parent=1 // pred_region
      %139 = dma.done [#allocation6], 256
    $region105: #{decoder_layer.1} parent=1 // pred_fallthru
      _
    // Predicated region
    $region106: #{decoder_layer.1} parent=1 // pred_check
      _
    $region107: #{decoder_layer.1} parent=1 // pred_check_branch
      %141 = sbr.rel (0) target = $region109
    $region108: #{decoder_layer.1} parent=1 // pred_region
      %142 = dma.done [#allocation6], 512
    $region109: #{decoder_layer.1} parent=1 // pred_fallthru
      _
    // Predicated region
    $region110: #{decoder_layer.1} parent=1 // pred_check
      _
    $region111: #{decoder_layer.1} parent=1 // pred_check_branch
      %144 = sbr.rel (0) target = $region113
    $region112: #{decoder_layer.1} parent=1 // pred_region
      %145 = dma.done [#allocation9], 512
    $region113: #{decoder_layer.1} parent=1 // pred_fallthru
      _
    // Predicated region
    $region114: #{decoder_layer.1} parent=1 // pred_check
      _
    $region115: #{decoder_layer.1} parent=1 // pred_check_branch
      %147 = sbr.rel (0) target = $region117
    $region116: #{decoder_layer.1} parent=1 // pred_region
      %148 = dma.done [#allocation9], 512
    $region117: #{decoder_layer.1} parent=1 // pred_fallthru
      _
    %v149 = vld [vmem:[#allocation2] sm:$0xff]
    %v150 = vld [vmem:[#allocation2 + $0x8] sm:$0xff]
    %v151 = vld [vmem:[%s1] sm:$0xff]
    %v152 = vld [vmem:[%s1 + $0x8] sm:$0xff]
    %v153 = vld [vmem:[#allocation5] sm:$0xff]
    %v154 = vsub.f32 %v153, 1.0
    %v155 = vmul.f32 %v154, 1e+10
    %s156 = scalar_lea.vmem [#allocation5], 8
    %v157 = vld [vmem:[%s156] sm:$0xff]
    %v158 = vsub.f32 %v157, 1.0
    %v159 = vmul.f32 %v158, 1e+10
    %v160 = vld [vmem:[%s3] sm:$0x1]
    %v161 = vsub.f32 %v160, 1.0
    %v162 = vmul.f32 %v161, 1e+10
    %s163 = scalar_lea.vmem %s3, 1
    %v164 = vld [vmem:[%s163] sm:$0x1]
    %v165 = vsub.f32 %v164, 1.0
    %v166 = vmul.f32 %v165, 1e+10
    %v167 = vld [vmem:[%s4] sm:$0xff]
    %v168 = vld [vmem:[%s4 + $0x8] sm:$0xff]
    %v169 = vld [vmem:[%s4 + $0x10] sm:$0xff]
    %v170 = vld [vmem:[%s4 + $0x18] sm:$0xff]
    %v171 = vld [vmem:[%s5] sm:$0x1]
    %v173 = vlaneseq
    %v174 = vshrl.u32 %v173, 7
    %v175 = vsub.s32 0, %v174
    %v176 = vrot.slane %v171, %v175
    %vm178 = vcmask 261120
    %v180 = vsel %vm178, %v149, 0
    %v183 = vsel %vm178, %v150, 0
    %185 = vmatprep.subr.mxu0 0.0
    %186 = vmatpush1.msra.mxu0 %v167
    %187 = vmatprep.subr.mxu0 0.0
    %188 = vmatpush1.msra.mxu0 %v168
    %189 = vmatprep.subr.mxu0 0.0
    %190 = vmatpush1.msra.mxu0 %v169
    %191 = vmatprep.subr.mxu0 0.0
    %192 = vmatpush1.msra.mxu0 %v170
    %193 = vmatprep.subr.mxu0 0.0
    %194 = vmatpush1.msra.mxu0 0.0
    %195 = vmatprep.subr.mxu0 0.0
    %196 = vmatpush1.msra.mxu0 0.0
    %197 = vmatprep.subr.mxu0 0.0
    %198 = vmatpush1.msra.mxu0 0.0
    %199 = vmatprep.subr.mxu0 0.0
    %200 = vmatpush1.msra.mxu0 0.0
    %201 = vmatprep.subr.mxu0 0.0
    %202 = vmatpush1.msra.mxu0 0.0
    %203 = vmatprep.subr.mxu0 0.0
    %204 = vmatpush1.msra.mxu0 0.0
    %205 = vmatprep.subr.mxu0 0.0
    %206 = vmatpush1.msra.mxu0 0.0
    %207 = vmatprep.subr.mxu0 0.0
    %208 = vmatpush1.msra.mxu0 0.0
    %209 = vmatprep.subr.mxu0 0.0
    %210 = vmatpush1.msra.mxu0 0.0
    %211 = vmatprep.subr.mxu0 0.0
    %212 = vmatpush1.msra.mxu0 0.0
    %213 = vmatprep.subr.mxu0 0.0
    %214 = vmatpush1.msra.mxu0 0.0
    %215 = vmatprep.subr.mxu0 0.0
    %216 = vmatpush1.msra.mxu0 0.0
    %217 = vmatprep.subr.mxu0 0.0
    %218 = vmatpush1.msra.mxu0 0.0
    %219 = vmatprep.subr.mxu0 0.0
    %220 = vmatpush1.msra.mxu0 0.0
    %221 = vmatprep.subr.mxu0 0.0
    %222 = vmatpush1.msra.mxu0 0.0
    %223 = vmatprep.subr.mxu0 0.0
    %224 = vmatpush1.msra.mxu0 0.0
    %225 = vmatprep.subr.mxu0 0.0
    %226 = vmatpush1.msra.mxu0 0.0
    %227 = vmatprep.subr.mxu0 0.0
    %228 = vmatpush1.msra.mxu0 0.0
    %229 = vmatprep.subr.mxu0 0.0
    %230 = vmatpush1.msra.mxu0 0.0
    %231 = vmatprep.subr.mxu0 0.0
    %232 = vmatpush1.msra.mxu0 0.0
    %233 = vmatprep.subr.mxu0 0.0
    %234 = vmatpush1.msra.mxu0 0.0
    %235 = vmatprep.subr.mxu0 0.0
    %236 = vmatpush1.msra.mxu0 0.0
    %237 = vmatprep.subr.mxu0 0.0
    %238 = vmatpush1.msra.mxu0 0.0
    %239 = vmatprep.subr.mxu0 0.0
    %240 = vmatpush1.msra.mxu0 0.0
    %241 = vmatprep.subr.mxu0 0.0
    %242 = vmatpush1.msra.mxu0 0.0
    %243 = vmatprep.subr.mxu0 0.0
    %244 = vmatpush1.msra.mxu0 0.0
    %245 = vmatprep.subr.mxu0 0.0
    %246 = vmatpush1.msra.mxu0 0.0
    %247 = vmatprep.subr.mxu0 0.0
    %248 = vmatpush1.msra.mxu0 0.0
    %249 = vmatprep.mubr.f32.mxu0 0.0
    %250 = vmatmul.mubr.f32.gmra.mrb[0].mxu0 %v180
    %v251 = vpop.f32.mrb[0].mxu0
    %v252 = vadd.f32 %v176, %v251
    %v253 = vpop.f32.mrb[0].mxu0
    %254 = vmatprep.mubr.f32.mxu0 0.0
    %255 = vmatmul.mubr.f32.gmra.mrb[0].mxu0 %v183
    %v256 = vpop.f32.mrb[0].mxu0
    %v257 = vadd.f32 %v176, %v256
    %v258 = vpop.f32.mrb[0].mxu0
    %259 = vdwg.mxu0
    %261 = vrot.lane.b32.xlu0 %v252, 96
    %v262 = vpop.permute.xlu0 %261
    %vm263 = vcmask 64512
    %v264 = vsel %vm263, %v252, 0
    %v266 = vsel %vm263, %v262, 0
    %268 = vmatprep.subr.mxu0 0.0
    %269 = vmatpush1.xpose.msra.mxu0 %v266
    %270 = vmatprep.subr.mxu0 0.0
    %271 = vmatpush1.xpose.msra.mxu0 0.0
    %272 = vmatprep.subr.mxu0 0.0
    %273 = vmatpush1.xpose.msra.mxu0 0.0
    %274 = vmatprep.subr.mxu0 0.0
    %275 = vmatpush1.xpose.msra.mxu0 0.0
    %276 = vmatprep.subr.mxu0 0.0
    %277 = vmatpush1.xpose.msra.mxu0 0.0
    %278 = vmatprep.subr.mxu0 0.0
    %279 = vmatpush1.xpose.msra.mxu0 0.0
    %280 = vmatprep.subr.mxu0 0.0
    %281 = vmatpush1.xpose.msra.mxu0 0.0
    %282 = vmatprep.subr.mxu0 0.0
    %283 = vmatpush1.xpose.msra.mxu0 0.0
    %284 = vmatprep.subr.mxu0 0.0
    %285 = vmatpush1.xpose.msra.mxu0 0.0
    %286 = vmatprep.subr.mxu0 0.0
    %287 = vmatpush1.xpose.msra.mxu0 0.0
    %288 = vmatprep.subr.mxu0 0.0
    %289 = vmatpush1.xpose.msra.mxu0 0.0
    %290 = vmatprep.subr.mxu0 0.0
    %291 = vmatpush1.xpose.msra.mxu0 0.0
    %292 = vmatprep.subr.mxu0 0.0
    %293 = vmatpush1.xpose.msra.mxu0 0.0
    %294 = vmatprep.subr.mxu0 0.0
    %295 = vmatpush1.xpose.msra.mxu0 0.0
    %296 = vmatprep.subr.mxu0 0.0
    %297 = vmatpush1.xpose.msra.mxu0 0.0
    %298 = vmatprep.subr.mxu0 0.0
    %299 = vmatpush1.xpose.msra.mxu0 0.0
    %300 = vmatprep.subr.mxu0 0.0
    %301 = vmatpush1.xpose.msra.mxu0 0.0
    %302 = vmatprep.subr.mxu0 0.0
    %303 = vmatpush1.xpose.msra.mxu0 0.0
    %304 = vmatprep.subr.mxu0 0.0
    %305 = vmatpush1.xpose.msra.mxu0 0.0
    %306 = vmatprep.subr.mxu0 0.0
    %307 = vmatpush1.xpose.msra.mxu0 0.0
    %308 = vmatprep.subr.mxu0 0.0
    %309 = vmatpush1.xpose.msra.mxu0 0.0
    %310 = vmatprep.subr.mxu0 0.0
    %311 = vmatpush1.xpose.msra.mxu0 0.0
    %312 = vmatprep.subr.mxu0 0.0
    %313 = vmatpush1.xpose.msra.mxu0 0.0
    %314 = vmatprep.subr.mxu0 0.0
    %315 = vmatpush1.xpose.msra.mxu0 0.0
    %316 = vmatprep.subr.mxu0 0.0
    %317 = vmatpush1.xpose.msra.mxu0 0.0
    %318 = vmatprep.subr.mxu0 0.0
    %319 = vmatpush1.xpose.msra.mxu0 0.0
    %320 = vmatprep.subr.mxu0 0.0
    %321 = vmatpush1.xpose.msra.mxu0 0.0
    %322 = vmatprep.subr.mxu0 0.0
    %323 = vmatpush1.xpose.msra.mxu0 0.0
    %324 = vmatprep.subr.mxu0 0.0
    %325 = vmatpush1.xpose.msra.mxu0 0.0
    %326 = vmatprep.subr.mxu0 0.0
    %327 = vmatpush1.xpose.msra.mxu0 0.0
    %328 = vmatprep.subr.mxu0 0.0
    %329 = vmatpush1.xpose.msra.mxu0 0.0
    %330 = vmatprep.subr.mxu0 0.0
    %331 = vmatpush1.xpose.msra.mxu0 0.0
    %332 = vmatprep.mubr.f32.mxu0 0.0
    %333 = vmatmul.mubr.f32.gmra.mrb[0].mxu0 %v264
    %v334 = vpop.f32.mrb[0].mxu0
    %v335 = vadd.f32 0.0, %v334
    %v336 = vpop.f32.mrb[0].mxu0
    %337 = vdwg.mxu0
    %v338 = vmul.f32 %v335, 0.35355338
    %v339 = vadd.f32 %v338, %v155
    %v340 = vsel %vm263, %v339, -inf
    %341 = vmax.xlane.f32.xlu0 %v340
    %v342 = vpop.xlane.xlu0 %341
    %v343 = vsub.f32 %v339, %v342
    %v344 = vmul.f32 %v343, 1.442695
    %v345 = vpow.pop %v344
    %v346 = vsel %vm263, %v345, 0.0
    %347 = vadd.xlane.f32.xlu0 %v346
    %v348 = vpop.xlane.xlu0 %347
    %v349 = vrcp.pop %v348
    %v350 = vmul.f32 %v345, %v349
    %351 = vrot.lane.b32.xlu0 %v252, 64
    %v352 = vpop.permute.xlu0 %351
    %v355 = vsel %vm263, %v350, 0
    %357 = vmatprep.subr.mxu0 0.0
    %358 = vmatpush1.msra.mxu0 %v352
    %359 = vmatprep.subr.mxu0 0.0
    %360 = vmatpush1.msra.mxu0 0.0
    %361 = vmatprep.subr.mxu0 0.0
    %362 = vmatpush1.msra.mxu0 0.0
    %363 = vmatprep.subr.mxu0 0.0
    %364 = vmatpush1.msra.mxu0 0.0
    %365 = vmatprep.subr.mxu0 0.0
    %366 = vmatpush1.msra.mxu0 0.0
    %367 = vmatprep.subr.mxu0 0.0
    %368 = vmatpush1.msra.mxu0 0.0
    %369 = vmatprep.subr.mxu0 0.0
    %370 = vmatpush1.msra.mxu0 0.0
    %371 = vmatprep.subr.mxu0 0.0
    %372 = vmatpush1.msra.mxu0 0.0
    %373 = vmatprep.subr.mxu0 0.0
    %374 = vmatpush1.msra.mxu0 0.0
    %375 = vmatprep.subr.mxu0 0.0
    %376 = vmatpush1.msra.mxu0 0.0
    %377 = vmatprep.subr.mxu0 0.0
    %378 = vmatpush1.msra.mxu0 0.0
    %379 = vmatprep.subr.mxu0 0.0
    %380 = vmatpush1.msra.mxu0 0.0
    %381 = vmatprep.subr.mxu0 0.0
    %382 = vmatpush1.msra.mxu0 0.0
    %383 = vmatprep.subr.mxu0 0.0
    %384 = vmatpush1.msra.mxu0 0.0
    %385 = vmatprep.subr.mxu0 0.0
    %386 = vmatpush1.msra.mxu0 0.0
    %387 = vmatprep.subr.mxu0 0.0
    %388 = vmatpush1.msra.mxu0 0.0
    %389 = vmatprep.subr.mxu0 0.0
    %390 = vmatpush1.msra.mxu0 0.0
    %391 = vmatprep.subr.mxu0 0.0
    %392 = vmatpush1.msra.mxu0 0.0
    %393 = vmatprep.subr.mxu0 0.0
    %394 = vmatpush1.msra.mxu0 0.0
    %395 = vmatprep.subr.mxu0 0.0
    %396 = vmatpush1.msra.mxu0 0.0
    %397 = vmatprep.subr.mxu0 0.0
    %398 = vmatpush1.msra.mxu0 0.0
    %399 = vmatprep.subr.mxu0 0.0
    %400 = vmatpush1.msra.mxu0 0.0
    %401 = vmatprep.subr.mxu0 0.0
    %402 = vmatpush1.msra.mxu0 0.0
    %403 = vmatprep.subr.mxu0 0.0
    %404 = vmatpush1.msra.mxu0 0.0
    %405 = vmatprep.subr.mxu0 0.0
    %406 = vmatpush1.msra.mxu0 0.0
    %407 = vmatprep.subr.mxu0 0.0
    %408 = vmatpush1.msra.mxu0 0.0
    %409 = vmatprep.subr.mxu0 0.0
    %410 = vmatpush1.msra.mxu0 0.0
    %411 = vmatprep.subr.mxu0 0.0
    %412 = vmatpush1.msra.mxu0 0.0
    %413 = vmatprep.subr.mxu0 0.0
    %414 = vmatpush1.msra.mxu0 0.0
    %415 = vmatprep.subr.mxu0 0.0
    %416 = vmatpush1.msra.mxu0 0.0
    %417 = vmatprep.subr.mxu0 0.0
    %418 = vmatpush1.msra.mxu0 0.0
    %419 = vmatprep.subr.mxu0 0.0
    %420 = vmatpush1.msra.mxu0 0.0
    %421 = vmatprep.mubr.f32.mxu0 0.0
    %422 = vmatmul.mubr.f32.gmra.mrb[0].mxu0 %v355
    %v423 = vpop.f32.mrb[0].mxu0
    %v424 = vadd.f32 0.0, %v423
    %v425 = vpop.f32.mrb[0].mxu0
    %426 = vdwg.mxu0
    %v427 = vld [vmem:[%s6] sm:$0xff]
    %428 = vrot.lane.b32.xlu0 %v252, 120
    %v429 = vpop.permute.xlu0 %428
    %430 = vrot.lane.b32.xlu0 %v252, 88
    %v431 = vpop.permute.xlu0 %430
    %v432 = vsel %vm263, %v429, 0
    %v434 = vsel %vm263, %v431, 0
    %436 = vmatprep.subr.mxu0 0.0
    %437 = vmatpush1.xpose.msra.mxu0 %v434
    %438 = vmatprep.subr.mxu0 0.0
    %439 = vmatpush1.xpose.msra.mxu0 0.0
    %440 = vmatprep.subr.mxu0 0.0
    %441 = vmatpush1.xpose.msra.mxu0 0.0
    %442 = vmatprep.subr.mxu0 0.0
    %443 = vmatpush1.xpose.msra.mxu0 0.0
    %444 = vmatprep.subr.mxu0 0.0
    %445 = vmatpush1.xpose.msra.mxu0 0.0
    %446 = vmatprep.subr.mxu0 0.0
    %447 = vmatpush1.xpose.msra.mxu0 0.0
    %448 = vmatprep.subr.mxu0 0.0
    %449 = vmatpush1.xpose.msra.mxu0 0.0
    %450 = vmatprep.subr.mxu0 0.0
    %451 = vmatpush1.xpose.msra.mxu0 0.0
    %452 = vmatprep.subr.mxu0 0.0
    %453 = vmatpush1.xpose.msra.mxu0 0.0
    %454 = vmatprep.subr.mxu0 0.0
    %455 = vmatpush1.xpose.msra.mxu0 0.0
    %456 = vmatprep.subr.mxu0 0.0
    %457 = vmatpush1.xpose.msra.mxu0 0.0
    %458 = vmatprep.subr.mxu0 0.0
    %459 = vmatpush1.xpose.msra.mxu0 0.0
    %460 = vmatprep.subr.mxu0 0.0
    %461 = vmatpush1.xpose.msra.mxu0 0.0
    %462 = vmatprep.subr.mxu0 0.0
    %463 = vmatpush1.xpose.msra.mxu0 0.0
    %464 = vmatprep.subr.mxu0 0.0
    %465 = vmatpush1.xpose.msra.mxu0 0.0
    %466 = vmatprep.subr.mxu0 0.0
    %467 = vmatpush1.xpose.msra.mxu0 0.0
    %468 = vmatprep.subr.mxu0 0.0
    %469 = vmatpush1.xpose.msra.mxu0 0.0
    %470 = vmatprep.subr.mxu0 0.0
    %471 = vmatpush1.xpose.msra.mxu0 0.0
    %472 = vmatprep.subr.mxu0 0.0
    %473 = vmatpush1.xpose.msra.mxu0 0.0
    %474 = vmatprep.subr.mxu0 0.0
    %475 = vmatpush1.xpose.msra.mxu0 0.0
    %476 = vmatprep.subr.mxu0 0.0
    %477 = vmatpush1.xpose.msra.mxu0 0.0
    %478 = vmatprep.subr.mxu0 0.0
    %479 = vmatpush1.xpose.msra.mxu0 0.0
    %480 = vmatprep.subr.mxu0 0.0
    %481 = vmatpush1.xpose.msra.mxu0 0.0
    %482 = vmatprep.subr.mxu0 0.0
    %483 = vmatpush1.xpose.msra.mxu0 0.0
    %484 = vmatprep.subr.mxu0 0.0
    %485 = vmatpush1.xpose.msra.mxu0 0.0
    %486 = vmatprep.subr.mxu0 0.0
    %487 = vmatpush1.xpose.msra.mxu0 0.0
    %488 = vmatprep.subr.mxu0 0.0
    %489 = vmatpush1.xpose.msra.mxu0 0.0
    %490 = vmatprep.subr.mxu0 0.0
    %491 = vmatpush1.xpose.msra.mxu0 0.0
    %492 = vmatprep.subr.mxu0 0.0
    %493 = vmatpush1.xpose.msra.mxu0 0.0
    %494 = vmatprep.subr.mxu0 0.0
    %495 = vmatpush1.xpose.msra.mxu0 0.0
    %496 = vmatprep.subr.mxu0 0.0
    %497 = vmatpush1.xpose.msra.mxu0 0.0
    %498 = vmatprep.subr.mxu0 0.0
    %499 = vmatpush1.xpose.msra.mxu0 0.0
    %500 = vmatprep.mubr.f32.mxu0 0.0
    %501 = vmatmul.mubr.f32.gmra.mrb[0].mxu0 %v432
    %v502 = vpop.f32.mrb[0].mxu0
    %v503 = vadd.f32 0.0, %v502
    %v504 = vpop.f32.mrb[0].mxu0
    %505 = vdwg.mxu0
    %v506 = vmul.f32 %v503, 0.35355338
    %v507 = vadd.f32 %v506, %v155
    %v508 = vsel %vm263, %v507, -inf
    %509 = vmax.xlane.f32.xlu0 %v508
    %v510 = vpop.xlane.xlu0 %509
    %v511 = vsub.f32 %v507, %v510
    %v512 = vmul.f32 %v511, 1.442695
    %v513 = vpow.pop %v512
    %v514 = vsel %vm263, %v513, 0.0
    %515 = vadd.xlane.f32.xlu0 %v514
    %v516 = vpop.xlane.xlu0 %515
    %v517 = vrcp.pop %v516
    %v518 = vmul.f32 %v513, %v517
    %519 = vrot.lane.b32.xlu0 %v252, 56
    %v520 = vpop.permute.xlu0 %519
    %v523 = vsel %vm263, %v518, 0
    %525 = vmatprep.subr.mxu0 0.0
    %526 = vmatpush1.msra.mxu0 %v520
    %527 = vmatprep.subr.mxu0 0.0
    %528 = vmatpush1.msra.mxu0 0.0
    %529 = vmatprep.subr.mxu0 0.0
    %530 = vmatpush1.msra.mxu0 0.0
    %531 = vmatprep.subr.mxu0 0.0
    %532 = vmatpush1.msra.mxu0 0.0
    %533 = vmatprep.subr.mxu0 0.0
    %534 = vmatpush1.msra.mxu0 0.0
    %535 = vmatprep.subr.mxu0 0.0
    %536 = vmatpush1.msra.mxu0 0.0
    %537 = vmatprep.subr.mxu0 0.0
    %538 = vmatpush1.msra.mxu0 0.0
    %539 = vmatprep.subr.mxu0 0.0
    %540 = vmatpush1.msra.mxu0 0.0
    %541 = vmatprep.subr.mxu0 0.0
    %542 = vmatpush1.msra.mxu0 0.0
    %543 = vmatprep.subr.mxu0 0.0
    %544 = vmatpush1.msra.mxu0 0.0
    %545 = vmatprep.subr.mxu0 0.0
    %546 = vmatpush1.msra.mxu0 0.0
    %547 = vmatprep.subr.mxu0 0.0
    %548 = vmatpush1.msra.mxu0 0.0
    %549 = vmatprep.subr.mxu0 0.0
    %550 = vmatpush1.msra.mxu0 0.0
    %551 = vmatprep.subr.mxu0 0.0
    %552 = vmatpush1.msra.mxu0 0.0
    %553 = vmatprep.subr.mxu0 0.0
    %554 = vmatpush1.msra.mxu0 0.0
    %555 = vmatprep.subr.mxu0 0.0
    %556 = vmatpush1.msra.mxu0 0.0
    %557 = vmatprep.subr.mxu0 0.0
    %558 = vmatpush1.msra.mxu0 0.0
    %559 = vmatprep.subr.mxu0 0.0
    %560 = vmatpush1.msra.mxu0 0.0
    %561 = vmatprep.subr.mxu0 0.0
    %562 = vmatpush1.msra.mxu0 0.0
    %563 = vmatprep.subr.mxu0 0.0
    %564 = vmatpush1.msra.mxu0 0.0
    %565 = vmatprep.subr.mxu0 0.0
    %566 = vmatpush1.msra.mxu0 0.0
    %567 = vmatprep.subr.mxu0 0.0
    %568 = vmatpush1.msra.mxu0 0.0
    %569 = vmatprep.subr.mxu0 0.0
    %570 = vmatpush1.msra.mxu0 0.0
    %571 = vmatprep.subr.mxu0 0.0
    %572 = vmatpush1.msra.mxu0 0.0
    %573 = vmatprep.subr.mxu0 0.0
    %574 = vmatpush1.msra.mxu0 0.0
    %575 = vmatprep.subr.mxu0 0.0
    %576 = vmatpush1.msra.mxu0 0.0
    %577 = vmatprep.subr.mxu0 0.0
    %578 = vmatpush1.msra.mxu0 0.0
    %579 = vmatprep.subr.mxu0 0.0
    %580 = vmatpush1.msra.mxu0 0.0
    %581 = vmatprep.subr.mxu0 0.0
    %582 = vmatpush1.msra.mxu0 0.0
    %583 = vmatprep.subr.mxu0 0.0
    %584 = vmatpush1.msra.mxu0 0.0
    %585 = vmatprep.subr.mxu0 0.0
    %586 = vmatpush1.msra.mxu0 0.0
    %587 = vmatprep.subr.mxu0 0.0
    %588 = vmatpush1.msra.mxu0 0.0
    %589 = vmatprep.mubr.f32.mxu0 0.0
    %590 = vmatmul.mubr.f32.gmra.mrb[0].mxu0 %v523
    %v591 = vpop.f32.mrb[0].mxu0
    %v592 = vadd.f32 0.0, %v591
    %v593 = vpop.f32.mrb[0].mxu0
    %594 = vdwg.mxu0
    %v595 = vld [vmem:[%s6 + $0x8] sm:$0xff]
    %v597 = vsel %vm263, %v592, 0
    %599 = vmatprep.subr.mxu0 0.0
    %600 = vmatpush1.msra.mxu0 %v595
    %601 = vmatprep.subr.mxu0 0.0
    %602 = vmatpush1.msra.mxu0 0.0
    %603 = vmatprep.subr.mxu0 0.0
    %604 = vmatpush1.msra.mxu0 0.0
    %605 = vmatprep.subr.mxu0 0.0
    %606 = vmatpush1.msra.mxu0 0.0
    %607 = vmatprep.subr.mxu0 0.0
    %608 = vmatpush1.msra.mxu0 0.0
    %609 = vmatprep.subr.mxu0 0.0
    %610 = vmatpush1.msra.mxu0 0.0
    %611 = vmatprep.subr.mxu0 0.0
    %612 = vmatpush1.msra.mxu0 0.0
    %613 = vmatprep.subr.mxu0 0.0
    %614 = vmatpush1.msra.mxu0 0.0
    %615 = vmatprep.subr.mxu0 0.0
    %616 = vmatpush1.msra.mxu0 0.0
    %617 = vmatprep.subr.mxu0 0.0
    %618 = vmatpush1.msra.mxu0 0.0
    %619 = vmatprep.subr.mxu0 0.0
    %620 = vmatpush1.msra.mxu0 0.0
    %621 = vmatprep.subr.mxu0 0.0
    %622 = vmatpush1.msra.mxu0 0.0
    %623 = vmatprep.subr.mxu0 0.0
    %624 = vmatpush1.msra.mxu0 0.0
    %625 = vmatprep.subr.mxu0 0.0
    %626 = vmatpush1.msra.mxu0 0.0
    %627 = vmatprep.subr.mxu0 0.0
    %628 = vmatpush1.msra.mxu0 0.0
    %629 = vmatprep.subr.mxu0 0.0
    %630 = vmatpush1.msra.mxu0 0.0
    %631 = vmatprep.subr.mxu0 0.0
    %632 = vmatpush1.msra.mxu0 0.0
    %633 = vmatprep.subr.mxu0 0.0
    %634 = vmatpush1.msra.mxu0 0.0
    %635 = vmatprep.subr.mxu0 0.0
    %636 = vmatpush1.msra.mxu0 0.0
    %637 = vmatprep.subr.mxu0 0.0
    %638 = vmatpush1.msra.mxu0 0.0
    %639 = vmatprep.subr.mxu0 0.0
    %640 = vmatpush1.msra.mxu0 0.0
    %641 = vmatprep.subr.mxu0 0.0
    %642 = vmatpush1.msra.mxu0 0.0
    %643 = vmatprep.subr.mxu0 0.0
    %644 = vmatpush1.msra.mxu0 0.0
    %645 = vmatprep.subr.mxu0 0.0
    %646 = vmatpush1.msra.mxu0 0.0
    %647 = vmatprep.subr.mxu0 0.0
    %648 = vmatpush1.msra.mxu0 0.0
    %649 = vmatprep.subr.mxu0 0.0
    %650 = vmatpush1.msra.mxu0 0.0
    %651 = vmatprep.subr.mxu0 0.0
    %652 = vmatpush1.msra.mxu0 0.0
    %653 = vmatprep.subr.mxu0 0.0
    %654 = vmatpush1.msra.mxu0 0.0
    %655 = vmatprep.subr.mxu0 0.0
    %656 = vmatpush1.msra.mxu0 0.0
    %657 = vmatprep.subr.mxu0 0.0
    %658 = vmatpush1.msra.mxu0 0.0
    %659 = vmatprep.subr.mxu0 0.0
    %660 = vmatpush1.msra.mxu0 0.0
    %661 = vmatprep.subr.mxu0 0.0
    %662 = vmatpush1.msra.mxu0 0.0
    %663 = vmatprep.mubr.f32.mxu0 0.0
    %664 = vmatmul.mubr.f32.gmra.mrb[0].mxu0 %v597
    %v665 = vpop.f32.mrb[0].mxu0
    %v666 = vadd.f32 0.0, %v665
    %v667 = vpop.f32.mrb[0].mxu0
    %668 = vdwg.mxu0
    %v670 = vsel %vm263, %v424, 0
    %672 = vmatprep.subr.mxu0 0.0
    %673 = vmatpush1.msra.mxu0 %v427
    %674 = vmatprep.subr.mxu0 0.0
    %675 = vmatpush1.msra.mxu0 0.0
    %676 = vmatprep.subr.mxu0 0.0
    %677 = vmatpush1.msra.mxu0 0.0
    %678 = vmatprep.subr.mxu0 0.0
    %679 = vmatpush1.msra.mxu0 0.0
    %680 = vmatprep.subr.mxu0 0.0
    %681 = vmatpush1.msra.mxu0 0.0
    %682 = vmatprep.subr.mxu0 0.0
    %683 = vmatpush1.msra.mxu0 0.0
    %684 = vmatprep.subr.mxu0 0.0
    %685 = vmatpush1.msra.mxu0 0.0
    %686 = vmatprep.subr.mxu0 0.0
    %687 = vmatpush1.msra.mxu0 0.0
    %688 = vmatprep.subr.mxu0 0.0
    %689 = vmatpush1.msra.mxu0 0.0
    %690 = vmatprep.subr.mxu0 0.0
    %691 = vmatpush1.msra.mxu0 0.0
    %692 = vmatprep.subr.mxu0 0.0
    %693 = vmatpush1.msra.mxu0 0.0
    %694 = vmatprep.subr.mxu0 0.0
    %695 = vmatpush1.msra.mxu0 0.0
    %696 = vmatprep.subr.mxu0 0.0
    %697 = vmatpush1.msra.mxu0 0.0
    %698 = vmatprep.subr.mxu0 0.0
    %699 = vmatpush1.msra.mxu0 0.0
    %700 = vmatprep.subr.mxu0 0.0
    %701 = vmatpush1.msra.mxu0 0.0
    %702 = vmatprep.subr.mxu0 0.0
    %703 = vmatpush1.msra.mxu0 0.0
    %704 = vmatprep.subr.mxu0 0.0
    %705 = vmatpush1.msra.mxu0 0.0
    %706 = vmatprep.subr.mxu0 0.0
    %707 = vmatpush1.msra.mxu0 0.0
    %708 = vmatprep.subr.mxu0 0.0
    %709 = vmatpush1.msra.mxu0 0.0
    %710 = vmatprep.subr.mxu0 0.0
    %711 = vmatpush1.msra.mxu0 0.0
    %712 = vmatprep.subr.mxu0 0.0
    %713 = vmatpush1.msra.mxu0 0.0
    %714 = vmatprep.subr.mxu0 0.0
    %715 = vmatpush1.msra.mxu0 0.0
    %716 = vmatprep.subr.mxu0 0.0
    %717 = vmatpush1.msra.mxu0 0.0
    %718 = vmatprep.subr.mxu0 0.0
    %719 = vmatpush1.msra.mxu0 0.0
    %720 = vmatprep.subr.mxu0 0.0
    %721 = vmatpush1.msra.mxu0 0.0
    %722 = vmatprep.subr.mxu0 0.0
    %723 = vmatpush1.msra.mxu0 0.0
    %724 = vmatprep.subr.mxu0 0.0
    %725 = vmatpush1.msra.mxu0 0.0
    %726 = vmatprep.subr.mxu0 0.0
    %727 = vmatpush1.msra.mxu0 0.0
    %728 = vmatprep.subr.mxu0 0.0
    %729 = vmatpush1.msra.mxu0 0.0
    %730 = vmatprep.subr.mxu0 0.0
    %731 = vmatpush1.msra.mxu0 0.0
    %732 = vmatprep.subr.mxu0 0.0
    %733 = vmatpush1.msra.mxu0 0.0
    %734 = vmatprep.subr.mxu0 0.0
    %735 = vmatpush1.msra.mxu0 0.0
    %736 = vmatprep.mubr.f32.mxu0 0.0
    %737 = vmatmul.mubr.f32.gmra.mrb[0].mxu0 %v670
    %v738 = vpop.f32.mrb[0].mxu0
    %v739 = vadd.f32 %v666, %v738
    %v740 = vpop.f32.mrb[0].mxu0
    %741 = vdwg.mxu0
    %742 = vrot.lane.b32.xlu0 %v252, 112
    %v743 = vpop.permute.xlu0 %742
    %744 = vrot.lane.b32.xlu0 %v252, 80
    %v745 = vpop.permute.xlu0 %744
    %v746 = vsel %vm263, %v743, 0
    %v748 = vsel %vm263, %v745, 0
    %750 = vmatprep.subr.mxu0 0.0
    %751 = vmatpush1.xpose.msra.mxu0 %v748
    %752 = vmatprep.subr.mxu0 0.0
    %753 = vmatpush1.xpose.msra.mxu0 0.0
    %754 = vmatprep.subr.mxu0 0.0
    %755 = vmatpush1.xpose.msra.mxu0 0.0
    %756 = vmatprep.subr.mxu0 0.0
    %757 = vmatpush1.xpose.msra.mxu0 0.0
    %758 = vmatprep.subr.mxu0 0.0
    %759 = vmatpush1.xpose.msra.mxu0 0.0
    %760 = vmatprep.subr.mxu0 0.0
    %761 = vmatpush1.xpose.msra.mxu0 0.0
    %762 = vmatprep.subr.mxu0 0.0
    %763 = vmatpush1.xpose.msra.mxu0 0.0
    %764 = vmatprep.subr.mxu0 0.0
    %765 = vmatpush1.xpose.msra.mxu0 0.0
    %766 = vmatprep.subr.mxu0 0.0
    %767 = vmatpush1.xpose.msra.mxu0 0.0
    %768 = vmatprep.subr.mxu0 0.0
    %769 = vmatpush1.xpose.msra.mxu0 0.0
    %770 = vmatprep.subr.mxu0 0.0
    %771 = vmatpush1.xpose.msra.mxu0 0.0
    %772 = vmatprep.subr.mxu0 0.0
    %773 = vmatpush1.xpose.msra.mxu0 0.0
    %774 = vmatprep.subr.mxu0 0.0
    %775 = vmatpush1.xpose.msra.mxu0 0.0
    %776 = vmatprep.subr.mxu0 0.0
    %777 = vmatpush1.xpose.msra.mxu0 0.0
    %778 = vmatprep.subr.mxu0 0.0
    %779 = vmatpush1.xpose.msra.mxu0 0.0
    %780 = vmatprep.subr.mxu0 0.0
    %781 = vmatpush1.xpose.msra.mxu0 0.0
    %782 = vmatprep.subr.mxu0 0.0
    %783 = vmatpush1.xpose.msra.mxu0 0.0
    %784 = vmatprep.subr.mxu0 0.0
    %785 = vmatpush1.xpose.msra.mxu0 0.0
    %786 = vmatprep.subr.mxu0 0.0
    %787 = vmatpush1.xpose.msra.mxu0 0.0
    %788 = vmatprep.subr.mxu0 0.0
    %789 = vmatpush1.xpose.msra.mxu0 0.0
    %790 = vmatprep.subr.mxu0 0.0
    %791 = vmatpush1.xpose.msra.mxu0 0.0
    %792 = vmatprep.subr.mxu0 0.0
    %793 = vmatpush1.xpose.msra.mxu0 0.0
    %794 = vmatprep.subr.mxu0 0.0
    %795 = vmatpush1.xpose.msra.mxu0 0.0
    %796 = vmatprep.subr.mxu0 0.0
    %797 = vmatpush1.xpose.msra.mxu0 0.0
    %798 = vmatprep.subr.mxu0 0.0
    %799 = vmatpush1.xpose.msra.mxu0 0.0
    %800 = vmatprep.subr.mxu0 0.0
    %801 = vmatpush1.xpose.msra.mxu0 0.0
    %802 = vmatprep.subr.mxu0 0.0
    %803 = vmatpush1.xpose.msra.mxu0 0.0
    %804 = vmatprep.subr.mxu0 0.0
    %805 = vmatpush1.xpose.msra.mxu0 0.0
    %806 = vmatprep.subr.mxu0 0.0
    %807 = vmatpush1.xpose.msra.mxu0 0.0
    %808 = vmatprep.subr.mxu0 0.0
    %809 = vmatpush1.xpose.msra.mxu0 0.0
    %810 = vmatprep.subr.mxu0 0.0
    %811 = vmatpush1.xpose.msra.mxu0 0.0
    %812 = vmatprep.subr.mxu0 0.0
    %813 = vmatpush1.xpose.msra.mxu0 0.0
    %814 = vmatprep.mubr.f32.mxu0 0.0
    %815 = vmatmul.mubr.f32.gmra.mrb[0].mxu0 %v746
    %v816 = vpop.f32.mrb[0].mxu0
    %v817 = vadd.f32 0.0, %v816
    %v818 = vpop.f32.mrb[0].mxu0
    %819 = vdwg.mxu0
    %v820 = vmul.f32 %v817, 0.35355338
    %v821 = vadd.f32 %v820, %v155
    %v822 = vsel %vm263, %v821, -inf
    %823 = vmax.xlane.f32.xlu0 %v822
    %v824 = vpop.xlane.xlu0 %823
    %v825 = vsub.f32 %v821, %v824
    %v826 = vmul.f32 %v825, 1.442695
    %v827 = vpow.pop %v826
    %v828 = vsel %vm263, %v827, 0.0
    %829 = vadd.xlane.f32.xlu0 %v828
    %v830 = vpop.xlane.xlu0 %829
    %v831 = vrcp.pop %v830
    %v832 = vmul.f32 %v827, %v831
    %833 = vrot.lane.b32.xlu0 %v252, 48
    %v834 = vpop.permute.xlu0 %833
    %v837 = vsel %vm263, %v832, 0
    %839 = vmatprep.subr.mxu0 0.0
    %840 = vmatpush1.msra.mxu0 %v834
    %841 = vmatprep.subr.mxu0 0.0
    %842 = vmatpush1.msra.mxu0 0.0
    %843 = vmatprep.subr.mxu0 0.0
    %844 = vmatpush1.msra.mxu0 0.0
    %845 = vmatprep.subr.mxu0 0.0
    %846 = vmatpush1.msra.mxu0 0.0
    %847 = vmatprep.subr.mxu0 0.0
    %848 = vmatpush1.msra.mxu0 0.0
    %849 = vmatprep.subr.mxu0 0.0
    %850 = vmatpush1.msra.mxu0 0.0
    %851 = vmatprep.subr.mxu0 0.0
    %852 = vmatpush1.msra.mxu0 0.0
    %853 = vmatprep.subr.mxu0 0.0
    %854 = vmatpush1.msra.mxu0 0.0
    %855 = vmatprep.subr.mxu0 0.0
    %856 = vmatpush1.msra.mxu0 0.0
    %857 = vmatprep.subr.mxu0 0.0
    %858 = vmatpush1.msra.mxu0 0.0
    %859 = vmatprep.subr.mxu0 0.0
    %860 = vmatpush1.msra.mxu0 0.0
    %861 = vmatprep.subr.mxu0 0.0
    %862 = vmatpush1.msra.mxu0 0.0
    %863 = vmatprep.subr.mxu0 0.0
    %864 = vmatpush1.msra.mxu0 0.0
    %865 = vmatprep.subr.mxu0 0.0
    %866 = vmatpush1.msra.mxu0 0.0
    %867 = vmatprep.subr.mxu0 0.0
    %868 = vmatpush1.msra.mxu0 0.0
    %869 = vmatprep.subr.mxu0 0.0
    %870 = vmatpush1.msra.mxu0 0.0
    %871 = vmatprep.subr.mxu0 0.0
    %872 = vmatpush1.msra.mxu0 0.0
    %873 = vmatprep.subr.mxu0 0.0
    %874 = vmatpush1.msra.mxu0 0.0
    %875 = vmatprep.subr.mxu0 0.0
    %876 = vmatpush1.msra.mxu0 0.0
    %877 = vmatprep.subr.mxu0 0.0
    %878 = vmatpush1.msra.mxu0 0.0
    %879 = vmatprep.subr.mxu0 0.0
    %880 = vmatpush1.msra.mxu0 0.0
    %881 = vmatprep.subr.mxu0 0.0
    %882 = vmatpush1.msra.mxu0 0.0
    %883 = vmatprep.subr.mxu0 0.0
    %884 = vmatpush1.msra.mxu0 0.0
    %885 = vmatprep.subr.mxu0 0.0
    %886 = vmatpush1.msra.mxu0 0.0
    %887 = vmatprep.subr.mxu0 0.0
    %888 = vmatpush1.msra.mxu0 0.0
    %889 = vmatprep.subr.mxu0 0.0
    %890 = vmatpush1.msra.mxu0 0.0
    %891 = vmatprep.subr.mxu0 0.0
    %892 = vmatpush1.msra.mxu0 0.0
    %893 = vmatprep.subr.mxu0 0.0
    %894 = vmatpush1.msra.mxu0 0.0
    %895 = vmatprep.subr.mxu0 0.0
    %896 = vmatpush1.msra.mxu0 0.0
    %897 = vmatprep.subr.mxu0 0.0
    %898 = vmatpush1.msra.mxu0 0.0
    %899 = vmatprep.subr.mxu0 0.0
    %900 = vmatpush1.msra.mxu0 0.0
    %901 = vmatprep.subr.mxu0 0.0
    %902 = vmatpush1.msra.mxu0 0.0
    %903 = vmatprep.mubr.f32.mxu0 0.0
    %904 = vmatmul.mubr.f32.gmra.mrb[0].mxu0 %v837
    %v905 = vpop.f32.mrb[0].mxu0
    %v906 = vadd.f32 0.0, %v905
    %v907 = vpop.f32.mrb[0].mxu0
    %908 = vdwg.mxu0
    %v909 = vld [vmem:[%s6 + $0x10] sm:$0xff]
    %v911 = vsel %vm263, %v906, 0
    %913 = vmatprep.subr.mxu0 0.0
    %914 = vmatpush1.msra.mxu0 %v909
    %915 = vmatprep.subr.mxu0 0.0
    %916 = vmatpush1.msra.mxu0 0.0
    %917 = vmatprep.subr.mxu0 0.0
    %918 = vmatpush1.msra.mxu0 0.0
    %919 = vmatprep.subr.mxu0 0.0
    %920 = vmatpush1.msra.mxu0 0.0
    %921 = vmatprep.subr.mxu0 0.0
    %922 = vmatpush1.msra.mxu0 0.0
    %923 = vmatprep.subr.mxu0 0.0
    %924 = vmatpush1.msra.mxu0 0.0
    %925 = vmatprep.subr.mxu0 0.0
    %926 = vmatpush1.msra.mxu0 0.0
    %927 = vmatprep.subr.mxu0 0.0
    %928 = vmatpush1.msra.mxu0 0.0
    %929 = vmatprep.subr.mxu0 0.0
    %930 = vmatpush1.msra.mxu0 0.0
    %931 = vmatprep.subr.mxu0 0.0
    %932 = vmatpush1.msra.mxu0 0.0
    %933 = vmatprep.subr.mxu0 0.0
    %934 = vmatpush1.msra.mxu0 0.0
    %935 = vmatprep.subr.mxu0 0.0
    %936 = vmatpush1.msra.mxu0 0.0
    %937 = vmatprep.subr.mxu0 0.0
    %938 = vmatpush1.msra.mxu0 0.0
    %939 = vmatprep.subr.mxu0 0.0
    %940 = vmatpush1.msra.mxu0 0.0
    %941 = vmatprep.subr.mxu0 0.0
    %942 = vmatpush1.msra.mxu0 0.0
    %943 = vmatprep.subr.mxu0 0.0
    %944 = vmatpush1.msra.mxu0 0.0
    %945 = vmatprep.subr.mxu0 0.0
    %946 = vmatpush1.msra.mxu0 0.0
    %947 = vmatprep.subr.mxu0 0.0
    %948 = vmatpush1.msra.mxu0 0.0
    %949 = vmatprep.subr.mxu0 0.0
    %950 = vmatpush1.msra.mxu0 0.0
    %951 = vmatprep.subr.mxu0 0.0
    %952 = vmatpush1.msra.mxu0 0.0
    %953 = vmatprep.subr.mxu0 0.0
    %954 = vmatpush1.msra.mxu0 0.0
    %955 = vmatprep.subr.mxu0 0.0
    %956 = vmatpush1.msra.mxu0 0.0
    %957 = vmatprep.subr.mxu0 0.0
    %958 = vmatpush1.msra.mxu0 0.0
    %959 = vmatprep.subr.mxu0 0.0
    %960 = vmatpush1.msra.mxu0 0.0
    %961 = vmatprep.subr.mxu0 0.0
    %962 = vmatpush1.msra.mxu0 0.0
    %963 = vmatprep.subr.mxu0 0.0
    %964 = vmatpush1.msra.mxu0 0.0
    %965 = vmatprep.subr.mxu0 0.0
    %966 = vmatpush1.msra.mxu0 0.0
    %967 = vmatprep.subr.mxu0 0.0
    %968 = vmatpush1.msra.mxu0 0.0
    %969 = vmatprep.subr.mxu0 0.0
    %970 = vmatpush1.msra.mxu0 0.0
    %971 = vmatprep.subr.mxu0 0.0
    %972 = vmatpush1.msra.mxu0 0.0
    %973 = vmatprep.subr.mxu0 0.0
    %974 = vmatpush1.msra.mxu0 0.0
    %975 = vmatprep.subr.mxu0 0.0
    %976 = vmatpush1.msra.mxu0 0.0
    %977 = vmatprep.mubr.f32.mxu0 0.0
    %978 = vmatmul.mubr.f32.gmra.mrb[0].mxu0 %v911
    %v979 = vpop.f32.mrb[0].mxu0
    %v980 = vadd.f32 0.0, %v979
    %v981 = vpop.f32.mrb[0].mxu0
    %982 = vdwg.mxu0
    %v983 = vadd.f32 %v739, %v980
    %984 = vrot.lane.b32.xlu0 %v252, 104
    %v985 = vpop.permute.xlu0 %984
    %986 = vrot.lane.b32.xlu0 %v252, 72
    %v987 = vpop.permute.xlu0 %986
    %v988 = vsel %vm263, %v985, 0
    %v990 = vsel %vm263, %v987, 0
    %992 = vmatprep.subr.mxu0 0.0
    %993 = vmatpush1.xpose.msra.mxu0 %v990
    %994 = vmatprep.subr.mxu0 0.0
    %995 = vmatpush1.xpose.msra.mxu0 0.0
    %996 = vmatprep.subr.mxu0 0.0
    %997 = vmatpush1.xpose.msra.mxu0 0.0
    %998 = vmatprep.subr.mxu0 0.0
    %999 = vmatpush1.xpose.msra.mxu0 0.0
    %1000 = vmatprep.subr.mxu0 0.0
    %1001 = vmatpush1.xpose.msra.mxu0 0.0
    %1002 = vmatprep.subr.mxu0 0.0
    %1003 = vmatpush1.xpose.msra.mxu0 0.0
    %1004 = vmatprep.subr.mxu0 0.0
    %1005 = vmatpush1.xpose.msra.mxu0 0.0
    %1006 = vmatprep.subr.mxu0 0.0
    %1007 = vmatpush1.xpose.msra.mxu0 0.0
    %1008 = vmatprep.subr.mxu0 0.0
    %1009 = vmatpush1.xpose.msra.mxu0 0.0
    %1010 = vmatprep.subr.mxu0 0.0
    %1011 = vmatpush1.xpose.msra.mxu0 0.0
    %1012 = vmatprep.subr.mxu0 0.0
    %1013 = vmatpush1.xpose.msra.mxu0 0.0
    %1014 = vmatprep.subr.mxu0 0.0
    %1015 = vmatpush1.xpose.msra.mxu0 0.0
    %1016 = vmatprep.subr.mxu0 0.0
    %1017 = vmatpush1.xpose.msra.mxu0 0.0
    %1018 = vmatprep.subr.mxu0 0.0
    %1019 = vmatpush1.xpose.msra.mxu0 0.0
    %1020 = vmatprep.subr.mxu0 0.0
    %1021 = vmatpush1.xpose.msra.mxu0 0.0
    %1022 = vmatprep.subr.mxu0 0.0
    %1023 = vmatpush1.xpose.msra.mxu0 0.0
    %1024 = vmatprep.subr.mxu0 0.0
    %1025 = vmatpush1.xpose.msra.mxu0 0.0
    %1026 = vmatprep.subr.mxu0 0.0
    %1027 = vmatpush1.xpose.msra.mxu0 0.0
    %1028 = vmatprep.subr.mxu0 0.0
    %1029 = vmatpush1.xpose.msra.mxu0 0.0
    %1030 = vmatprep.subr.mxu0 0.0
    %1031 = vmatpush1.xpose.msra.mxu0 0.0
    %1032 = vmatprep.subr.mxu0 0.0
    %1033 = vmatpush1.xpose.msra.mxu0 0.0
    %1034 = vmatprep.subr.mxu0 0.0
    %1035 = vmatpush1.xpose.msra.mxu0 0.0
    %1036 = vmatprep.subr.mxu0 0.0
    %1037 = vmatpush1.xpose.msra.mxu0 0.0
    %1038 = vmatprep.subr.mxu0 0.0
    %1039 = vmatpush1.xpose.msra.mxu0 0.0
    %1040 = vmatprep.subr.mxu0 0.0
    %1041 = vmatpush1.xpose.msra.mxu0 0.0
    %1042 = vmatprep.subr.mxu0 0.0
    %1043 = vmatpush1.xpose.msra.mxu0 0.0
    %1044 = vmatprep.subr.mxu0 0.0
    %1045 = vmatpush1.xpose.msra.mxu0 0.0
    %1046 = vmatprep.subr.mxu0 0.0
    %1047 = vmatpush1.xpose.msra.mxu0 0.0
    %1048 = vmatprep.subr.mxu0 0.0
    %1049 = vmatpush1.xpose.msra.mxu0 0.0
    %1050 = vmatprep.subr.mxu0 0.0
    %1051 = vmatpush1.xpose.msra.mxu0 0.0
    %1052 = vmatprep.subr.mxu0 0.0
    %1053 = vmatpush1.xpose.msra.mxu0 0.0
    %1054 = vmatprep.subr.mxu0 0.0
    %1055 = vmatpush1.xpose.msra.mxu0 0.0
    %1056 = vmatprep.mubr.f32.mxu0 0.0
    %1057 = vmatmul.mubr.f32.gmra.mrb[0].mxu0 %v988
    %v1058 = vpop.f32.mrb[0].mxu0
    %v1059 = vadd.f32 0.0, %v1058
    %v1060 = vpop.f32.mrb[0].mxu0
    %1061 = vdwg.mxu0
    %v1062 = vmul.f32 %v1059, 0.35355338
    %v1063 = vadd.f32 %v1062, %v155
    %v1064 = vsel %vm263, %v1063, -inf
    %1065 = vmax.xlane.f32.xlu0 %v1064
    %v1066 = vpop.xlane.xlu0 %1065
    %v1067 = vsub.f32 %v1063, %v1066
    %v1068 = vmul.f32 %v1067, 1.442695
    %v1069 = vpow.pop %v1068
    %v1070 = vsel %vm263, %v1069, 0.0
    %1071 = vadd.xlane.f32.xlu0 %v1070
    %v1072 = vpop.xlane.xlu0 %1071
    %v1073 = vrcp.pop %v1072
    %v1074 = vmul.f32 %v1069, %v1073
    %1075 = vrot.lane.b32.xlu0 %v252, 40
    %v1076 = vpop.permute.xlu0 %1075
    %v1079 = vsel %vm263, %v1074, 0
    %1081 = vmatprep.subr.mxu0 0.0
    %1082 = vmatpush1.msra.mxu0 %v1076
    %1083 = vmatprep.subr.mxu0 0.0
    %1084 = vmatpush1.msra.mxu0 0.0
    %1085 = vmatprep.subr.mxu0 0.0
    %1086 = vmatpush1.msra.mxu0 0.0
    %1087 = vmatprep.subr.mxu0 0.0
    %1088 = vmatpush1.msra.mxu0 0.0
    %1089 = vmatprep.subr.mxu0 0.0
    %1090 = vmatpush1.msra.mxu0 0.0
    %1091 = vmatprep.subr.mxu0 0.0
    %1092 = vmatpush1.msra.mxu0 0.0
    %1093 = vmatprep.subr.mxu0 0.0
    %1094 = vmatpush1.msra.mxu0 0.0
    %1095 = vmatprep.subr.mxu0 0.0
    %1096 = vmatpush1.msra.mxu0 0.0
    %1097 = vmatprep.subr.mxu0 0.0
    %1098 = vmatpush1.msra.mxu0 0.0
    %1099 = vmatprep.subr.mxu0 0.0
    %1100 = vmatpush1.msra.mxu0 0.0
    %1101 = vmatprep.subr.mxu0 0.0
    %1102 = vmatpush1.msra.mxu0 0.0
    %1103 = vmatprep.subr.mxu0 0.0
    %1104 = vmatpush1.msra.mxu0 0.0
    %1105 = vmatprep.subr.mxu0 0.0
    %1106 = vmatpush1.msra.mxu0 0.0
    %1107 = vmatprep.subr.mxu0 0.0
    %1108 = vmatpush1.msra.mxu0 0.0
    %1109 = vmatprep.subr.mxu0 0.0
    %1110 = vmatpush1.msra.mxu0 0.0
    %1111 = vmatprep.subr.mxu0 0.0
    %1112 = vmatpush1.msra.mxu0 0.0
    %1113 = vmatprep.subr.mxu0 0.0
    %1114 = vmatpush1.msra.mxu0 0.0
    %1115 = vmatprep.subr.mxu0 0.0
    %1116 = vmatpush1.msra.mxu0 0.0
    %1117 = vmatprep.subr.mxu0 0.0
    %1118 = vmatpush1.msra.mxu0 0.0
    %1119 = vmatprep.subr.mxu0 0.0
    %1120 = vmatpush1.msra.mxu0 0.0
    %1121 = vmatprep.subr.mxu0 0.0
    %1122 = vmatpush1.msra.mxu0 0.0
    %1123 = vmatprep.subr.mxu0 0.0
    %1124 = vmatpush1.msra.mxu0 0.0
    %1125 = vmatprep.subr.mxu0 0.0
    %1126 = vmatpush1.msra.mxu0 0.0
    %1127 = vmatprep.subr.mxu0 0.0
    %1128 = vmatpush1.msra.mxu0 0.0
    %1129 = vmatprep.subr.mxu0 0.0
    %1130 = vmatpush1.msra.mxu0 0.0
    %1131 = vmatprep.subr.mxu0 0.0
    %1132 = vmatpush1.msra.mxu0 0.0
    %1133 = vmatprep.subr.mxu0 0.0
    %1134 = vmatpush1.msra.mxu0 0.0
    %1135 = vmatprep.subr.mxu0 0.0
    %1136 = vmatpush1.msra.mxu0 0.0
    %1137 = vmatprep.subr.mxu0 0.0
    %1138 = vmatpush1.msra.mxu0 0.0
    %1139 = vmatprep.subr.mxu0 0.0
    %1140 = vmatpush1.msra.mxu0 0.0
    %1141 = vmatprep.subr.mxu0 0.0
    %1142 = vmatpush1.msra.mxu0 0.0
    %1143 = vmatprep.subr.mxu0 0.0
    %1144 = vmatpush1.msra.mxu0 0.0
    %1145 = vmatprep.mubr.f32.mxu0 0.0
    %1146 = vmatmul.mubr.f32.gmra.mrb[0].mxu0 %v1079
    %v1147 = vpop.f32.mrb[0].mxu0
    %v1148 = vadd.f32 0.0, %v1147
    %v1149 = vpop.f32.mrb[0].mxu0
    %1150 = vdwg.mxu0
    %v1151 = vld [vmem:[%s6 + $0x18] sm:$0xff]
    %v1153 = vsel %vm263, %v1148, 0
    %1155 = vmatprep.subr.mxu0 0.0
    %1156 = vmatpush1.msra.mxu0 %v1151
    %1157 = vmatprep.subr.mxu0 0.0
    %1158 = vmatpush1.msra.mxu0 0.0
    %1159 = vmatprep.subr.mxu0 0.0
    %1160 = vmatpush1.msra.mxu0 0.0
    %1161 = vmatprep.subr.mxu0 0.0
    %1162 = vmatpush1.msra.mxu0 0.0
    %1163 = vmatprep.subr.mxu0 0.0
    %1164 = vmatpush1.msra.mxu0 0.0
    %1165 = vmatprep.subr.mxu0 0.0
    %1166 = vmatpush1.msra.mxu0 0.0
    %1167 = vmatprep.subr.mxu0 0.0
    %1168 = vmatpush1.msra.mxu0 0.0
    %1169 = vmatprep.subr.mxu0 0.0
    %1170 = vmatpush1.msra.mxu0 0.0
    %1171 = vmatprep.subr.mxu0 0.0
    %1172 = vmatpush1.msra.mxu0 0.0
    %1173 = vmatprep.subr.mxu0 0.0
    %1174 = vmatpush1.msra.mxu0 0.0
    %1175 = vmatprep.subr.mxu0 0.0
    %1176 = vmatpush1.msra.mxu0 0.0
    %1177 = vmatprep.subr.mxu0 0.0
    %1178 = vmatpush1.msra.mxu0 0.0
    %1179 = vmatprep.subr.mxu0 0.0
    %1180 = vmatpush1.msra.mxu0 0.0
    %1181 = vmatprep.subr.mxu0 0.0
    %1182 = vmatpush1.msra.mxu0 0.0
    %1183 = vmatprep.subr.mxu0 0.0
    %1184 = vmatpush1.msra.mxu0 0.0
    %1185 = vmatprep.subr.mxu0 0.0
    %1186 = vmatpush1.msra.mxu0 0.0
    %1187 = vmatprep.subr.mxu0 0.0
    %1188 = vmatpush1.msra.mxu0 0.0
    %1189 = vmatprep.subr.mxu0 0.0
    %1190 = vmatpush1.msra.mxu0 0.0
    %1191 = vmatprep.subr.mxu0 0.0
    %1192 = vmatpush1.msra.mxu0 0.0
    %1193 = vmatprep.subr.mxu0 0.0
    %1194 = vmatpush1.msra.mxu0 0.0
    %1195 = vmatprep.subr.mxu0 0.0
    %1196 = vmatpush1.msra.mxu0 0.0
    %1197 = vmatprep.subr.mxu0 0.0
    %1198 = vmatpush1.msra.mxu0 0.0
    %1199 = vmatprep.subr.mxu0 0.0
    %1200 = vmatpush1.msra.mxu0 0.0
    %1201 = vmatprep.subr.mxu0 0.0
    %1202 = vmatpush1.msra.mxu0 0.0
    %1203 = vmatprep.subr.mxu0 0.0
    %1204 = vmatpush1.msra.mxu0 0.0
    %1205 = vmatprep.subr.mxu0 0.0
    %1206 = vmatpush1.msra.mxu0 0.0
    %1207 = vmatprep.subr.mxu0 0.0
    %1208 = vmatpush1.msra.mxu0 0.0
    %1209 = vmatprep.subr.mxu0 0.0
    %1210 = vmatpush1.msra.mxu0 0.0
    %1211 = vmatprep.subr.mxu0 0.0
    %1212 = vmatpush1.msra.mxu0 0.0
    %1213 = vmatprep.subr.mxu0 0.0
    %1214 = vmatpush1.msra.mxu0 0.0
    %1215 = vmatprep.subr.mxu0 0.0
    %1216 = vmatpush1.msra.mxu0 0.0
    %1217 = vmatprep.subr.mxu0 0.0
    %1218 = vmatpush1.msra.mxu0 0.0
    %1219 = vmatprep.mubr.f32.mxu0 0.0
    %1220 = vmatmul.mubr.f32.gmra.mrb[0].mxu0 %v1153
    %v1221 = vpop.f32.mrb[0].mxu0
    %v1222 = vadd.f32 0.0, %v1221
    %v1223 = vpop.f32.mrb[0].mxu0
    %1224 = vdwg.mxu0
    %v1225 = vadd.f32 %v983, %v1222
    %1227 = vrot.lane.b32.xlu0 %v257, 96
    %v1228 = vpop.permute.xlu0 %1227
    %v1229 = vsel %vm263, %v257, 0
    %v1231 = vsel %vm263, %v1228, 0
    %1233 = vmatprep.subr.mxu0 0.0
    %1234 = vmatpush1.xpose.msra.mxu0 %v1231
    %1235 = vmatprep.subr.mxu0 0.0
    %1236 = vmatpush1.xpose.msra.mxu0 0.0
    %1237 = vmatprep.subr.mxu0 0.0
    %1238 = vmatpush1.xpose.msra.mxu0 0.0
    %1239 = vmatprep.subr.mxu0 0.0
    %1240 = vmatpush1.xpose.msra.mxu0 0.0
    %1241 = vmatprep.subr.mxu0 0.0
    %1242 = vmatpush1.xpose.msra.mxu0 0.0
    %1243 = vmatprep.subr.mxu0 0.0
    %1244 = vmatpush1.xpose.msra.mxu0 0.0
    %1245 = vmatprep.subr.mxu0 0.0
    %1246 = vmatpush1.xpose.msra.mxu0 0.0
    %1247 = vmatprep.subr.mxu0 0.0
    %1248 = vmatpush1.xpose.msra.mxu0 0.0
    %1249 = vmatprep.subr.mxu0 0.0
    %1250 = vmatpush1.xpose.msra.mxu0 0.0
    %1251 = vmatprep.subr.mxu0 0.0
    %1252 = vmatpush1.xpose.msra.mxu0 0.0
    %1253 = vmatprep.subr.mxu0 0.0
    %1254 = vmatpush1.xpose.msra.mxu0 0.0
    %1255 = vmatprep.subr.mxu0 0.0
    %1256 = vmatpush1.xpose.msra.mxu0 0.0
    %1257 = vmatprep.subr.mxu0 0.0
    %1258 = vmatpush1.xpose.msra.mxu0 0.0
    %1259 = vmatprep.subr.mxu0 0.0
    %1260 = vmatpush1.xpose.msra.mxu0 0.0
    %1261 = vmatprep.subr.mxu0 0.0
    %1262 = vmatpush1.xpose.msra.mxu0 0.0
    %1263 = vmatprep.subr.mxu0 0.0
    %1264 = vmatpush1.xpose.msra.mxu0 0.0
    %1265 = vmatprep.subr.mxu0 0.0
    %1266 = vmatpush1.xpose.msra.mxu0 0.0
    %1267 = vmatprep.subr.mxu0 0.0
    %1268 = vmatpush1.xpose.msra.mxu0 0.0
    %1269 = vmatprep.subr.mxu0 0.0
    %1270 = vmatpush1.xpose.msra.mxu0 0.0
    %1271 = vmatprep.subr.mxu0 0.0
    %1272 = vmatpush1.xpose.msra.mxu0 0.0
    %1273 = vmatprep.subr.mxu0 0.0
    %1274 = vmatpush1.xpose.msra.mxu0 0.0
    %1275 = vmatprep.subr.mxu0 0.0
    %1276 = vmatpush1.xpose.msra.mxu0 0.0
    %1277 = vmatprep.subr.mxu0 0.0
    %1278 = vmatpush1.xpose.msra.mxu0 0.0
    %1279 = vmatprep.subr.mxu0 0.0
    %1280 = vmatpush1.xpose.msra.mxu0 0.0
    %1281 = vmatprep.subr.mxu0 0.0
    %1282 = vmatpush1.xpose.msra.mxu0 0.0
    %1283 = vmatprep.subr.mxu0 0.0
    %1284 = vmatpush1.xpose.msra.mxu0 0.0
    %1285 = vmatprep.subr.mxu0 0.0
    %1286 = vmatpush1.xpose.msra.mxu0 0.0
    %1287 = vmatprep.subr.mxu0 0.0
    %1288 = vmatpush1.xpose.msra.mxu0 0.0
    %1289 = vmatprep.subr.mxu0 0.0
    %1290 = vmatpush1.xpose.msra.mxu0 0.0
    %1291 = vmatprep.subr.mxu0 0.0
    %1292 = vmatpush1.xpose.msra.mxu0 0.0
    %1293 = vmatprep.subr.mxu0 0.0
    %1294 = vmatpush1.xpose.msra.mxu0 0.0
    %1295 = vmatprep.subr.mxu0 0.0
    %1296 = vmatpush1.xpose.msra.mxu0 0.0
    %1297 = vmatprep.mubr.f32.mxu0 0.0
    %1298 = vmatmul.mubr.f32.gmra.mrb[0].mxu0 %v1229
    %v1299 = vpop.f32.mrb[0].mxu0
    %v1300 = vadd.f32 0.0, %v1299
    %v1301 = vpop.f32.mrb[0].mxu0
    %1302 = vdwg.mxu0
    %v1303 = vmul.f32 %v1300, 0.35355338
    %v1304 = vadd.f32 %v1303, %v159
    %v1305 = vsel %vm263, %v1304, -inf
    %1306 = vmax.xlane.f32.xlu0 %v1305
    %v1307 = vpop.xlane.xlu0 %1306
    %v1308 = vsub.f32 %v1304, %v1307
    %v1309 = vmul.f32 %v1308, 1.442695
    %v1310 = vpow.pop %v1309
    %v1311 = vsel %vm263, %v1310, 0.0
    %1312 = vadd.xlane.f32.xlu0 %v1311
    %v1313 = vpop.xlane.xlu0 %1312
    %v1314 = vrcp.pop %v1313
    %v1315 = vmul.f32 %v1310, %v1314
    %1316 = vrot.lane.b32.xlu0 %v257, 64
    %v1317 = vpop.permute.xlu0 %1316
    %v1320 = vsel %vm263, %v1315, 0
    %1322 = vmatprep.subr.mxu0 0.0
    %1323 = vmatpush1.msra.mxu0 %v1317
    %1324 = vmatprep.subr.mxu0 0.0
    %1325 = vmatpush1.msra.mxu0 0.0
    %1326 = vmatprep.subr.mxu0 0.0
    %1327 = vmatpush1.msra.mxu0 0.0
    %1328 = vmatprep.subr.mxu0 0.0
    %1329 = vmatpush1.msra.mxu0 0.0
    %1330 = vmatprep.subr.mxu0 0.0
    %1331 = vmatpush1.msra.mxu0 0.0
    %1332 = vmatprep.subr.mxu0 0.0
    %1333 = vmatpush1.msra.mxu0 0.0
    %1334 = vmatprep.subr.mxu0 0.0
    %1335 = vmatpush1.msra.mxu0 0.0
    %1336 = vmatprep.subr.mxu0 0.0
    %1337 = vmatpush1.msra.mxu0 0.0
    %1338 = vmatprep.subr.mxu0 0.0
    %1339 = vmatpush1.msra.mxu0 0.0
    %1340 = vmatprep.subr.mxu0 0.0
    %1341 = vmatpush1.msra.mxu0 0.0
    %1342 = vmatprep.subr.mxu0 0.0
    %1343 = vmatpush1.msra.mxu0 0.0
    %1344 = vmatprep.subr.mxu0 0.0
    %1345 = vmatpush1.msra.mxu0 0.0
    %1346 = vmatprep.subr.mxu0 0.0
    %1347 = vmatpush1.msra.mxu0 0.0
    %1348 = vmatprep.subr.mxu0 0.0
    %1349 = vmatpush1.msra.mxu0 0.0
    %1350 = vmatprep.subr.mxu0 0.0
    %1351 = vmatpush1.msra.mxu0 0.0
    %1352 = vmatprep.subr.mxu0 0.0
    %1353 = vmatpush1.msra.mxu0 0.0
    %1354 = vmatprep.subr.mxu0 0.0
    %1355 = vmatpush1.msra.mxu0 0.0
    %1356 = vmatprep.subr.mxu0 0.0
    %1357 = vmatpush1.msra.mxu0 0.0
    %1358 = vmatprep.subr.mxu0 0.0
    %1359 = vmatpush1.msra.mxu0 0.0
    %1360 = vmatprep.subr.mxu0 0.0
    %1361 = vmatpush1.msra.mxu0 0.0
    %1362 = vmatprep.subr.mxu0 0.0
    %1363 = vmatpush1.msra.mxu0 0.0
    %1364 = vmatprep.subr.mxu0 0.0
    %1365 = vmatpush1.msra.mxu0 0.0
    %1366 = vmatprep.subr.mxu0 0.0
    %1367 = vmatpush1.msra.mxu0 0.0
    %1368 = vmatprep.subr.mxu0 0.0
    %1369 = vmatpush1.msra.mxu0 0.0
    %1370 = vmatprep.subr.mxu0 0.0
    %1371 = vmatpush1.msra.mxu0 0.0
    %1372 = vmatprep.subr.mxu0 0.0
    %1373 = vmatpush1.msra.mxu0 0.0
    %1374 = vmatprep.subr.mxu0 0.0
    %1375 = vmatpush1.msra.mxu0 0.0
    %1376 = vmatprep.subr.mxu0 0.0
    %1377 = vmatpush1.msra.mxu0 0.0
    %1378 = vmatprep.subr.mxu0 0.0
    %1379 = vmatpush1.msra.mxu0 0.0
    %1380 = vmatprep.subr.mxu0 0.0
    %1381 = vmatpush1.msra.mxu0 0.0
    %1382 = vmatprep.subr.mxu0 0.0
    %1383 = vmatpush1.msra.mxu0 0.0
    %1384 = vmatprep.subr.mxu0 0.0
    %1385 = vmatpush1.msra.mxu0 0.0
    %1386 = vmatprep.mubr.f32.mxu0 0.0
    %1387 = vmatmul.mubr.f32.gmra.mrb[0].mxu0 %v1320
    %v1388 = vpop.f32.mrb[0].mxu0
    %v1389 = vadd.f32 0.0, %v1388
    %v1390 = vpop.f32.mrb[0].mxu0
    %1391 = vdwg.mxu0
    %1392 = vrot.lane.b32.xlu0 %v257, 120
    %v1393 = vpop.permute.xlu0 %1392
    %1394 = vrot.lane.b32.xlu0 %v257, 88
    %v1395 = vpop.permute.xlu0 %1394
    %v1396 = vsel %vm263, %v1393, 0
    %v1398 = vsel %vm263, %v1395, 0
    %1400 = vmatprep.subr.mxu0 0.0
    %1401 = vmatpush1.xpose.msra.mxu0 %v1398
    %1402 = vmatprep.subr.mxu0 0.0
    %1403 = vmatpush1.xpose.msra.mxu0 0.0
    %1404 = vmatprep.subr.mxu0 0.0
    %1405 = vmatpush1.xpose.msra.mxu0 0.0
    %1406 = vmatprep.subr.mxu0 0.0
    %1407 = vmatpush1.xpose.msra.mxu0 0.0
    %1408 = vmatprep.subr.mxu0 0.0
    %1409 = vmatpush1.xpose.msra.mxu0 0.0
    %1410 = vmatprep.subr.mxu0 0.0
    %1411 = vmatpush1.xpose.msra.mxu0 0.0
    %1412 = vmatprep.subr.mxu0 0.0
    %1413 = vmatpush1.xpose.msra.mxu0 0.0
    %1414 = vmatprep.subr.mxu0 0.0
    %1415 = vmatpush1.xpose.msra.mxu0 0.0
    %1416 = vmatprep.subr.mxu0 0.0
    %1417 = vmatpush1.xpose.msra.mxu0 0.0
    %1418 = vmatprep.subr.mxu0 0.0
    %1419 = vmatpush1.xpose.msra.mxu0 0.0
    %1420 = vmatprep.subr.mxu0 0.0
    %1421 = vmatpush1.xpose.msra.mxu0 0.0
    %1422 = vmatprep.subr.mxu0 0.0
    %1423 = vmatpush1.xpose.msra.mxu0 0.0
    %1424 = vmatprep.subr.mxu0 0.0
    %1425 = vmatpush1.xpose.msra.mxu0 0.0
    %1426 = vmatprep.subr.mxu0 0.0
    %1427 = vmatpush1.xpose.msra.mxu0 0.0
    %1428 = vmatprep.subr.mxu0 0.0
    %1429 = vmatpush1.xpose.msra.mxu0 0.0
    %1430 = vmatprep.subr.mxu0 0.0
    %1431 = vmatpush1.xpose.msra.mxu0 0.0
    %1432 = vmatprep.subr.mxu0 0.0
    %1433 = vmatpush1.xpose.msra.mxu0 0.0
    %1434 = vmatprep.subr.mxu0 0.0
    %1435 = vmatpush1.xpose.msra.mxu0 0.0
    %1436 = vmatprep.subr.mxu0 0.0
    %1437 = vmatpush1.xpose.msra.mxu0 0.0
    %1438 = vmatprep.subr.mxu0 0.0
    %1439 = vmatpush1.xpose.msra.mxu0 0.0
    %1440 = vmatprep.subr.mxu0 0.0
    %1441 = vmatpush1.xpose.msra.mxu0 0.0
    %1442 = vmatprep.subr.mxu0 0.0
    %1443 = vmatpush1.xpose.msra.mxu0 0.0
    %1444 = vmatprep.subr.mxu0 0.0
    %1445 = vmatpush1.xpose.msra.mxu0 0.0
    %1446 = vmatprep.subr.mxu0 0.0
    %1447 = vmatpush1.xpose.msra.mxu0 0.0
    %1448 = vmatprep.subr.mxu0 0.0
    %1449 = vmatpush1.xpose.msra.mxu0 0.0
    %1450 = vmatprep.subr.mxu0 0.0
    %1451 = vmatpush1.xpose.msra.mxu0 0.0
    %1452 = vmatprep.subr.mxu0 0.0
    %1453 = vmatpush1.xpose.msra.mxu0 0.0
    %1454 = vmatprep.subr.mxu0 0.0
    %1455 = vmatpush1.xpose.msra.mxu0 0.0
    %1456 = vmatprep.subr.mxu0 0.0
    %1457 = vmatpush1.xpose.msra.mxu0 0.0
    %1458 = vmatprep.subr.mxu0 0.0
    %1459 = vmatpush1.xpose.msra.mxu0 0.0
    %1460 = vmatprep.subr.mxu0 0.0
    %1461 = vmatpush1.xpose.msra.mxu0 0.0
    %1462 = vmatprep.subr.mxu0 0.0
    %1463 = vmatpush1.xpose.msra.mxu0 0.0
    %1464 = vmatprep.mubr.f32.mxu0 0.0
    %1465 = vmatmul.mubr.f32.gmra.mrb[0].mxu0 %v1396
    %v1466 = vpop.f32.mrb[0].mxu0
    %v1467 = vadd.f32 0.0, %v1466
    %v1468 = vpop.f32.mrb[0].mxu0
    %1469 = vdwg.mxu0
    %v1470 = vmul.f32 %v1467, 0.35355338
    %v1471 = vadd.f32 %v1470, %v159
    %v1472 = vsel %vm263, %v1471, -inf
    %1473 = vmax.xlane.f32.xlu0 %v1472
    %v1474 = vpop.xlane.xlu0 %1473
    %v1475 = vsub.f32 %v1471, %v1474
    %v1476 = vmul.f32 %v1475, 1.442695
    %v1477 = vpow.pop %v1476
    %v1478 = vsel %vm263, %v1477, 0.0
    %1479 = vadd.xlane.f32.xlu0 %v1478
    %v1480 = vpop.xlane.xlu0 %1479
    %v1481 = vrcp.pop %v1480
    %v1482 = vmul.f32 %v1477, %v1481
    %1483 = vrot.lane.b32.xlu0 %v257, 56
    %v1484 = vpop.permute.xlu0 %1483
    %v1487 = vsel %vm263, %v1482, 0
    %1489 = vmatprep.subr.mxu0 0.0
    %1490 = vmatpush1.msra.mxu0 %v1484
    %1491 = vmatprep.subr.mxu0 0.0
    %1492 = vmatpush1.msra.mxu0 0.0
    %1493 = vmatprep.subr.mxu0 0.0
    %1494 = vmatpush1.msra.mxu0 0.0
    %1495 = vmatprep.subr.mxu0 0.0
    %1496 = vmatpush1.msra.mxu0 0.0
    %1497 = vmatprep.subr.mxu0 0.0
    %1498 = vmatpush1.msra.mxu0 0.0
    %1499 = vmatprep.subr.mxu0 0.0
    %1500 = vmatpush1.msra.mxu0 0.0
    %1501 = vmatprep.subr.mxu0 0.0
    %1502 = vmatpush1.msra.mxu0 0.0
    %1503 = vmatprep.subr.mxu0 0.0
    %1504 = vmatpush1.msra.mxu0 0.0
    %1505 = vmatprep.subr.mxu0 0.0
    %1506 = vmatpush1.msra.mxu0 0.0
    %1507 = vmatprep.subr.mxu0 0.0
    %1508 = vmatpush1.msra.mxu0 0.0
    %1509 = vmatprep.subr.mxu0 0.0
    %1510 = vmatpush1.msra.mxu0 0.0
    %1511 = vmatprep.subr.mxu0 0.0
    %1512 = vmatpush1.msra.mxu0 0.0
    %1513 = vmatprep.subr.mxu0 0.0
    %1514 = vmatpush1.msra.mxu0 0.0
    %1515 = vmatprep.subr.mxu0 0.0
    %1516 = vmatpush1.msra.mxu0 0.0
    %1517 = vmatprep.subr.mxu0 0.0
    %1518 = vmatpush1.msra.mxu0 0.0
    %1519 = vmatprep.subr.mxu0 0.0
    %1520 = vmatpush1.msra.mxu0 0.0
    %1521 = vmatprep.subr.mxu0 0.0
    %1522 = vmatpush1.msra.mxu0 0.0
    %1523 = vmatprep.subr.mxu0 0.0
    %1524 = vmatpush1.msra.mxu0 0.0
    %1525 = vmatprep.subr.mxu0 0.0
    %1526 = vmatpush1.msra.mxu0 0.0
    %1527 = vmatprep.subr.mxu0 0.0
    %1528 = vmatpush1.msra.mxu0 0.0
    %1529 = vmatprep.subr.mxu0 0.0
    %1530 = vmatpush1.msra.mxu0 0.0
    %1531 = vmatprep.subr.mxu0 0.0
    %1532 = vmatpush1.msra.mxu0 0.0
    %1533 = vmatprep.subr.mxu0 0.0
    %1534 = vmatpush1.msra.mxu0 0.0
    %1535 = vmatprep.subr.mxu0 0.0
    %1536 = vmatpush1.msra.mxu0 0.0
    %1537 = vmatprep.subr.mxu0 0.0
    %1538 = vmatpush1.msra.mxu0 0.0
    %1539 = vmatprep.subr.mxu0 0.0
    %1540 = vmatpush1.msra.mxu0 0.0
    %1541 = vmatprep.subr.mxu0 0.0
    %1542 = vmatpush1.msra.mxu0 0.0
    %1543 = vmatprep.subr.mxu0 0.0
    %1544 = vmatpush1.msra.mxu0 0.0
    %1545 = vmatprep.subr.mxu0 0.0
    %1546 = vmatpush1.msra.mxu0 0.0
    %1547 = vmatprep.subr.mxu0 0.0
    %1548 = vmatpush1.msra.mxu0 0.0
    %1549 = vmatprep.subr.mxu0 0.0
    %1550 = vmatpush1.msra.mxu0 0.0
    %1551 = vmatprep.subr.mxu0 0.0
    %1552 = vmatpush1.msra.mxu0 0.0
    %1553 = vmatprep.mubr.f32.mxu0 0.0
    %1554 = vmatmul.mubr.f32.gmra.mrb[0].mxu0 %v1487
    %v1555 = vpop.f32.mrb[0].mxu0
    %v1556 = vadd.f32 0.0, %v1555
    %v1557 = vpop.f32.mrb[0].mxu0
    %1558 = vdwg.mxu0
    %v1560 = vsel %vm263, %v1556, 0
    %1562 = vmatprep.subr.mxu0 0.0
    %1563 = vmatpush1.msra.mxu0 %v595
    %1564 = vmatprep.subr.mxu0 0.0
    %1565 = vmatpush1.msra.mxu0 0.0
    %1566 = vmatprep.subr.mxu0 0.0
    %1567 = vmatpush1.msra.mxu0 0.0
    %1568 = vmatprep.subr.mxu0 0.0
    %1569 = vmatpush1.msra.mxu0 0.0
    %1570 = vmatprep.subr.mxu0 0.0
    %1571 = vmatpush1.msra.mxu0 0.0
    %1572 = vmatprep.subr.mxu0 0.0
    %1573 = vmatpush1.msra.mxu0 0.0
    %1574 = vmatprep.subr.mxu0 0.0
    %1575 = vmatpush1.msra.mxu0 0.0
    %1576 = vmatprep.subr.mxu0 0.0
    %1577 = vmatpush1.msra.mxu0 0.0
    %1578 = vmatprep.subr.mxu0 0.0
    %1579 = vmatpush1.msra.mxu0 0.0
    %1580 = vmatprep.subr.mxu0 0.0
    %1581 = vmatpush1.msra.mxu0 0.0
    %1582 = vmatprep.subr.mxu0 0.0
    %1583 = vmatpush1.msra.mxu0 0.0
    %1584 = vmatprep.subr.mxu0 0.0
    %1585 = vmatpush1.msra.mxu0 0.0
    %1586 = vmatprep.subr.mxu0 0.0
    %1587 = vmatpush1.msra.mxu0 0.0
    %1588 = vmatprep.subr.mxu0 0.0
    %1589 = vmatpush1.msra.mxu0 0.0
    %1590 = vmatprep.subr.mxu0 0.0
    %1591 = vmatpush1.msra.mxu0 0.0
    %1592 = vmatprep.subr.mxu0 0.0
    %1593 = vmatpush1.msra.mxu0 0.0
    %1594 = vmatprep.subr.mxu0 0.0
    %1595 = vmatpush1.msra.mxu0 0.0
    %1596 = vmatprep.subr.mxu0 0.0
    %1597 = vmatpush1.msra.mxu0 0.0
    %1598 = vmatprep.subr.mxu0 0.0
    %1599 = vmatpush1.msra.mxu0 0.0
    %1600 = vmatprep.subr.mxu0 0.0
    %1601 = vmatpush1.msra.mxu0 0.0
    %1602 = vmatprep.subr.mxu0 0.0
    %1603 = vmatpush1.msra.mxu0 0.0
    %1604 = vmatprep.subr.mxu0 0.0
    %1605 = vmatpush1.msra.mxu0 0.0
    %1606 = vmatprep.subr.mxu0 0.0
    %1607 = vmatpush1.msra.mxu0 0.0
    %1608 = vmatprep.subr.mxu0 0.0
    %1609 = vmatpush1.msra.mxu0 0.0
    %1610 = vmatprep.subr.mxu0 0.0
    %1611 = vmatpush1.msra.mxu0 0.0
    %1612 = vmatprep.subr.mxu0 0.0
    %1613 = vmatpush1.msra.mxu0 0.0
    %1614 = vmatprep.subr.mxu0 0.0
    %1615 = vmatpush1.msra.mxu0 0.0
    %1616 = vmatprep.subr.mxu0 0.0
    %1617 = vmatpush1.msra.mxu0 0.0
    %1618 = vmatprep.subr.mxu0 0.0
    %1619 = vmatpush1.msra.mxu0 0.0
    %1620 = vmatprep.subr.mxu0 0.0
    %1621 = vmatpush1.msra.mxu0 0.0
    %1622 = vmatprep.subr.mxu0 0.0
    %1623 = vmatpush1.msra.mxu0 0.0
    %1624 = vmatprep.subr.mxu0 0.0
    %1625 = vmatpush1.msra.mxu0 0.0
    %1626 = vmatprep.mubr.f32.mxu0 0.0
    %1627 = vmatmul.mubr.f32.gmra.mrb[0].mxu0 %v1560
    %v1628 = vpop.f32.mrb[0].mxu0
    %v1629 = vadd.f32 0.0, %v1628
    %v1630 = vpop.f32.mrb[0].mxu0
    %1631 = vdwg.mxu0
    %v1633 = vsel %vm263, %v1389, 0
    %1635 = vmatprep.subr.mxu0 0.0
    %1636 = vmatpush1.msra.mxu0 %v427
    %1637 = vmatprep.subr.mxu0 0.0
    %1638 = vmatpush1.msra.mxu0 0.0
    %1639 = vmatprep.subr.mxu0 0.0
    %1640 = vmatpush1.msra.mxu0 0.0
    %1641 = vmatprep.subr.mxu0 0.0
    %1642 = vmatpush1.msra.mxu0 0.0
    %1643 = vmatprep.subr.mxu0 0.0
    %1644 = vmatpush1.msra.mxu0 0.0
    %1645 = vmatprep.subr.mxu0 0.0
    %1646 = vmatpush1.msra.mxu0 0.0
    %1647 = vmatprep.subr.mxu0 0.0
    %1648 = vmatpush1.msra.mxu0 0.0
    %1649 = vmatprep.subr.mxu0 0.0
    %1650 = vmatpush1.msra.mxu0 0.0
    %1651 = vmatprep.subr.mxu0 0.0
    %1652 = vmatpush1.msra.mxu0 0.0
    %1653 = vmatprep.subr.mxu0 0.0
    %1654 = vmatpush1.msra.mxu0 0.0
    %1655 = vmatprep.subr.mxu0 0.0
    %1656 = vmatpush1.msra.mxu0 0.0
    %1657 = vmatprep.subr.mxu0 0.0
    %1658 = vmatpush1.msra.mxu0 0.0
    %1659 = vmatprep.subr.mxu0 0.0
    %1660 = vmatpush1.msra.mxu0 0.0
    %1661 = vmatprep.subr.mxu0 0.0
    %1662 = vmatpush1.msra.mxu0 0.0
    %1663 = vmatprep.subr.mxu0 0.0
    %1664 = vmatpush1.msra.mxu0 0.0
    %1665 = vmatprep.subr.mxu0 0.0
    %1666 = vmatpush1.msra.mxu0 0.0
    %1667 = vmatprep.subr.mxu0 0.0
    %1668 = vmatpush1.msra.mxu0 0.0
    %1669 = vmatprep.subr.mxu0 0.0
    %1670 = vmatpush1.msra.mxu0 0.0
    %1671 = vmatprep.subr.mxu0 0.0
    %1672 = vmatpush1.msra.mxu0 0.0
    %1673 = vmatprep.subr.mxu0 0.0
    %1674 = vmatpush1.msra.mxu0 0.0
    %1675 = vmatprep.subr.mxu0 0.0
    %1676 = vmatpush1.msra.mxu0 0.0
    %1677 = vmatprep.subr.mxu0 0.0
    %1678 = vmatpush1.msra.mxu0 0.0
    %1679 = vmatprep.subr.mxu0 0.0
    %1680 = vmatpush1.msra.mxu0 0.0
    %1681 = vmatprep.subr.mxu0 0.0
    %1682 = vmatpush1.msra.mxu0 0.0
    %1683 = vmatprep.subr.mxu0 0.0
    %1684 = vmatpush1.msra.mxu0 0.0
    %1685 = vmatprep.subr.mxu0 0.0
    %1686 = vmatpush1.msra.mxu0 0.0
    %1687 = vmatprep.subr.mxu0 0.0
    %1688 = vmatpush1.msra.mxu0 0.0
    %1689 = vmatprep.subr.mxu0 0.0
    %1690 = vmatpush1.msra.mxu0 0.0
    %1691 = vmatprep.subr.mxu0 0.0
    %1692 = vmatpush1.msra.mxu0 0.0
    %1693 = vmatprep.subr.mxu0 0.0
    %1694 = vmatpush1.msra.mxu0 0.0
    %1695 = vmatprep.subr.mxu0 0.0
    %1696 = vmatpush1.msra.mxu0 0.0
    %1697 = vmatprep.subr.mxu0 0.0
    %1698 = vmatpush1.msra.mxu0 0.0
    %1699 = vmatprep.mubr.f32.mxu0 0.0
    %1700 = vmatmul.mubr.f32.gmra.mrb[0].mxu0 %v1633
    %v1701 = vpop.f32.mrb[0].mxu0
    %v1702 = vadd.f32 %v1629, %v1701
    %v1703 = vpop.f32.mrb[0].mxu0
    %1704 = vdwg.mxu0
    %1705 = vrot.lane.b32.xlu0 %v257, 112
    %v1706 = vpop.permute.xlu0 %1705
    %1707 = vrot.lane.b32.xlu0 %v257, 80
    %v1708 = vpop.permute.xlu0 %1707
    %v1709 = vsel %vm263, %v1706, 0
    %v1711 = vsel %vm263, %v1708, 0
    %1713 = vmatprep.subr.mxu0 0.0
    %1714 = vmatpush1.xpose.msra.mxu0 %v1711
    %1715 = vmatprep.subr.mxu0 0.0
    %1716 = vmatpush1.xpose.msra.mxu0 0.0
    %1717 = vmatprep.subr.mxu0 0.0
    %1718 = vmatpush1.xpose.msra.mxu0 0.0
    %1719 = vmatprep.subr.mxu0 0.0
    %1720 = vmatpush1.xpose.msra.mxu0 0.0
    %1721 = vmatprep.subr.mxu0 0.0
    %1722 = vmatpush1.xpose.msra.mxu0 0.0
    %1723 = vmatprep.subr.mxu0 0.0
    %1724 = vmatpush1.xpose.msra.mxu0 0.0
    %1725 = vmatprep.subr.mxu0 0.0
    %1726 = vmatpush1.xpose.msra.mxu0 0.0
    %1727 = vmatprep.subr.mxu0 0.0
    %1728 = vmatpush1.xpose.msra.mxu0 0.0
    %1729 = vmatprep.subr.mxu0 0.0
    %1730 = vmatpush1.xpose.msra.mxu0 0.0
    %1731 = vmatprep.subr.mxu0 0.0
    %1732 = vmatpush1.xpose.msra.mxu0 0.0
    %1733 = vmatprep.subr.mxu0 0.0
    %1734 = vmatpush1.xpose.msra.mxu0 0.0
    %1735 = vmatprep.subr.mxu0 0.0
    %1736 = vmatpush1.xpose.msra.mxu0 0.0
    %1737 = vmatprep.subr.mxu0 0.0
    %1738 = vmatpush1.xpose.msra.mxu0 0.0
    %1739 = vmatprep.subr.mxu0 0.0
    %1740 = vmatpush1.xpose.msra.mxu0 0.0
    %1741 = vmatprep.subr.mxu0 0.0
    %1742 = vmatpush1.xpose.msra.mxu0 0.0
    %1743 = vmatprep.subr.mxu0 0.0
    %1744 = vmatpush1.xpose.msra.mxu0 0.0
    %1745 = vmatprep.subr.mxu0 0.0
    %1746 = vmatpush1.xpose.msra.mxu0 0.0
    %1747 = vmatprep.subr.mxu0 0.0
    %1748 = vmatpush1.xpose.msra.mxu0 0.0
    %1749 = vmatprep.subr.mxu0 0.0
    %1750 = vmatpush1.xpose.msra.mxu0 0.0
    %1751 = vmatprep.subr.mxu0 0.0
    %1752 = vmatpush1.xpose.msra.mxu0 0.0
    %1753 = vmatprep.subr.mxu0 0.0
    %1754 = vmatpush1.xpose.msra.mxu0 0.0
    %1755 = vmatprep.subr.mxu0 0.0
    %1756 = vmatpush1.xpose.msra.mxu0 0.0
    %1757 = vmatprep.subr.mxu0 0.0
    %1758 = vmatpush1.xpose.msra.mxu0 0.0
    %1759 = vmatprep.subr.mxu0 0.0
    %1760 = vmatpush1.xpose.msra.mxu0 0.0
    %1761 = vmatprep.subr.mxu0 0.0
    %1762 = vmatpush1.xpose.msra.mxu0 0.0
    %1763 = vmatprep.subr.mxu0 0.0
    %1764 = vmatpush1.xpose.msra.mxu0 0.0
    %1765 = vmatprep.subr.mxu0 0.0
    %1766 = vmatpush1.xpose.msra.mxu0 0.0
    %1767 = vmatprep.subr.mxu0 0.0
    %1768 = vmatpush1.xpose.msra.mxu0 0.0
    %1769 = vmatprep.subr.mxu0 0.0
    %1770 = vmatpush1.xpose.msra.mxu0 0.0
    %1771 = vmatprep.subr.mxu0 0.0
    %1772 = vmatpush1.xpose.msra.mxu0 0.0
    %1773 = vmatprep.subr.mxu0 0.0
    %1774 = vmatpush1.xpose.msra.mxu0 0.0
    %1775 = vmatprep.subr.mxu0 0.0
    %1776 = vmatpush1.xpose.msra.mxu0 0.0
    %1777 = vmatprep.mubr.f32.mxu0 0.0
    %1778 = vmatmul.mubr.f32.gmra.mrb[0].mxu0 %v1709
    %v1779 = vpop.f32.mrb[0].mxu0
    %v1780 = vadd.f32 0.0, %v1779
    %v1781 = vpop.f32.mrb[0].mxu0
    %1782 = vdwg.mxu0
    %v1783 = vmul.f32 %v1780, 0.35355338
    %v1784 = vadd.f32 %v1783, %v159
    %v1785 = vsel %vm263, %v1784, -inf
    %1786 = vmax.xlane.f32.xlu0 %v1785
    %v1787 = vpop.xlane.xlu0 %1786
    %v1788 = vsub.f32 %v1784, %v1787
    %v1789 = vmul.f32 %v1788, 1.442695
    %v1790 = vpow.pop %v1789
    %v1791 = vsel %vm263, %v1790, 0.0
    %1792 = vadd.xlane.f32.xlu0 %v1791
    %v1793 = vpop.xlane.xlu0 %1792
    %v1794 = vrcp.pop %v1793
    %v1795 = vmul.f32 %v1790, %v1794
    %1796 = vrot.lane.b32.xlu0 %v257, 48
    %v1797 = vpop.permute.xlu0 %1796
    %v1800 = vsel %vm263, %v1795, 0
    %1802 = vmatprep.subr.mxu0 0.0
    %1803 = vmatpush1.msra.mxu0 %v1797
    %1804 = vmatprep.subr.mxu0 0.0
    %1805 = vmatpush1.msra.mxu0 0.0
    %1806 = vmatprep.subr.mxu0 0.0
    %1807 = vmatpush1.msra.mxu0 0.0
    %1808 = vmatprep.subr.mxu0 0.0
    %1809 = vmatpush1.msra.mxu0 0.0
    %1810 = vmatprep.subr.mxu0 0.0
    %1811 = vmatpush1.msra.mxu0 0.0
    %1812 = vmatprep.subr.mxu0 0.0
    %1813 = vmatpush1.msra.mxu0 0.0
    %1814 = vmatprep.subr.mxu0 0.0
    %1815 = vmatpush1.msra.mxu0 0.0
    %1816 = vmatprep.subr.mxu0 0.0
    %1817 = vmatpush1.msra.mxu0 0.0
    %1818 = vmatprep.subr.mxu0 0.0
    %1819 = vmatpush1.msra.mxu0 0.0
    %1820 = vmatprep.subr.mxu0 0.0
    %1821 = vmatpush1.msra.mxu0 0.0
    %1822 = vmatprep.subr.mxu0 0.0
    %1823 = vmatpush1.msra.mxu0 0.0
    %1824 = vmatprep.subr.mxu0 0.0
    %1825 = vmatpush1.msra.mxu0 0.0
    %1826 = vmatprep.subr.mxu0 0.0
    %1827 = vmatpush1.msra.mxu0 0.0
    %1828 = vmatprep.subr.mxu0 0.0
    %1829 = vmatpush1.msra.mxu0 0.0
    %1830 = vmatprep.subr.mxu0 0.0
    %1831 = vmatpush1.msra.mxu0 0.0
    %1832 = vmatprep.subr.mxu0 0.0
    %1833 = vmatpush1.msra.mxu0 0.0
    %1834 = vmatprep.subr.mxu0 0.0
    %1835 = vmatpush1.msra.mxu0 0.0
    %1836 = vmatprep.subr.mxu0 0.0
    %1837 = vmatpush1.msra.mxu0 0.0
    %1838 = vmatprep.subr.mxu0 0.0
    %1839 = vmatpush1.msra.mxu0 0.0
    %1840 = vmatprep.subr.mxu0 0.0
    %1841 = vmatpush1.msra.mxu0 0.0
    %1842 = vmatprep.subr.mxu0 0.0
    %1843 = vmatpush1.msra.mxu0 0.0
    %1844 = vmatprep.subr.mxu0 0.0
    %1845 = vmatpush1.msra.mxu0 0.0
    %1846 = vmatprep.subr.mxu0 0.0
    %1847 = vmatpush1.msra.mxu0 0.0
    %1848 = vmatprep.subr.mxu0 0.0
    %1849 = vmatpush1.msra.mxu0 0.0
    %1850 = vmatprep.subr.mxu0 0.0
    %1851 = vmatpush1.msra.mxu0 0.0
    %1852 = vmatprep.subr.mxu0 0.0
    %1853 = vmatpush1.msra.mxu0 0.0
    %1854 = vmatprep.subr.mxu0 0.0
    %1855 = vmatpush1.msra.mxu0 0.0
    %1856 = vmatprep.subr.mxu0 0.0
    %1857 = vmatpush1.msra.mxu0 0.0
    %1858 = vmatprep.subr.mxu0 0.0
    %1859 = vmatpush1.msra.mxu0 0.0
    %1860 = vmatprep.subr.mxu0 0.0
    %1861 = vmatpush1.msra.mxu0 0.0
    %1862 = vmatprep.subr.mxu0 0.0
    %1863 = vmatpush1.msra.mxu0 0.0
    %1864 = vmatprep.subr.mxu0 0.0
    %1865 = vmatpush1.msra.mxu0 0.0
    %1866 = vmatprep.mubr.f32.mxu0 0.0
    %1867 = vmatmul.mubr.f32.gmra.mrb[0].mxu0 %v1800
    %v1868 = vpop.f32.mrb[0].mxu0
    %v1869 = vadd.f32 0.0, %v1868
    %v1870 = vpop.f32.mrb[0].mxu0
    %1871 = vdwg.mxu0
    %v1873 = vsel %vm263, %v1869, 0
    %1875 = vmatprep.subr.mxu0 0.0
    %1876 = vmatpush1.msra.mxu0 %v909
    %1877 = vmatprep.subr.mxu0 0.0
    %1878 = vmatpush1.msra.mxu0 0.0
    %1879 = vmatprep.subr.mxu0 0.0
    %1880 = vmatpush1.msra.mxu0 0.0
    %1881 = vmatprep.subr.mxu0 0.0
    %1882 = vmatpush1.msra.mxu0 0.0
    %1883 = vmatprep.subr.mxu0 0.0
    %1884 = vmatpush1.msra.mxu0 0.0
    %1885 = vmatprep.subr.mxu0 0.0
    %1886 = vmatpush1.msra.mxu0 0.0
    %1887 = vmatprep.subr.mxu0 0.0
    %1888 = vmatpush1.msra.mxu0 0.0
    %1889 = vmatprep.subr.mxu0 0.0
    %1890 = vmatpush1.msra.mxu0 0.0
    %1891 = vmatprep.subr.mxu0 0.0
    %1892 = vmatpush1.msra.mxu0 0.0
    %1893 = vmatprep.subr.mxu0 0.0
    %1894 = vmatpush1.msra.mxu0 0.0
    %1895 = vmatprep.subr.mxu0 0.0
    %1896 = vmatpush1.msra.mxu0 0.0
    %1897 = vmatprep.subr.mxu0 0.0
    %1898 = vmatpush1.msra.mxu0 0.0
    %1899 = vmatprep.subr.mxu0 0.0
    %1900 = vmatpush1.msra.mxu0 0.0
    %1901 = vmatprep.subr.mxu0 0.0
    %1902 = vmatpush1.msra.mxu0 0.0
    %1903 = vmatprep.subr.mxu0 0.0
    %1904 = vmatpush1.msra.mxu0 0.0
    %1905 = vmatprep.subr.mxu0 0.0
    %1906 = vmatpush1.msra.mxu0 0.0
    %1907 = vmatprep.subr.mxu0 0.0
    %1908 = vmatpush1.msra.mxu0 0.0
    %1909 = vmatprep.subr.mxu0 0.0
    %1910 = vmatpush1.msra.mxu0 0.0
    %1911 = vmatprep.subr.mxu0 0.0
    %1912 = vmatpush1.msra.mxu0 0.0
    %1913 = vmatprep.subr.mxu0 0.0
    %1914 = vmatpush1.msra.mxu0 0.0
    %1915 = vmatprep.subr.mxu0 0.0
    %1916 = vmatpush1.msra.mxu0 0.0
    %1917 = vmatprep.subr.mxu0 0.0
    %1918 = vmatpush1.msra.mxu0 0.0
    %1919 = vmatprep.subr.mxu0 0.0
    %1920 = vmatpush1.msra.mxu0 0.0
    %1921 = vmatprep.subr.mxu0 0.0
    %1922 = vmatpush1.msra.mxu0 0.0
    %1923 = vmatprep.subr.mxu0 0.0
    %1924 = vmatpush1.msra.mxu0 0.0
    %1925 = vmatprep.subr.mxu0 0.0
    %1926 = vmatpush1.msra.mxu0 0.0
    %1927 = vmatprep.subr.mxu0 0.0
    %1928 = vmatpush1.msra.mxu0 0.0
    %1929 = vmatprep.subr.mxu0 0.0
    %1930 = vmatpush1.msra.mxu0 0.0
    %1931 = vmatprep.subr.mxu0 0.0
    %1932 = vmatpush1.msra.mxu0 0.0
    %1933 = vmatprep.subr.mxu0 0.0
    %1934 = vmatpush1.msra.mxu0 0.0
    %1935 = vmatprep.subr.mxu0 0.0
    %1936 = vmatpush1.msra.mxu0 0.0
    %1937 = vmatprep.subr.mxu0 0.0
    %1938 = vmatpush1.msra.mxu0 0.0
    %1939 = vmatprep.mubr.f32.mxu0 0.0
    %1940 = vmatmul.mubr.f32.gmra.mrb[0].mxu0 %v1873
    %v1941 = vpop.f32.mrb[0].mxu0
    %v1942 = vadd.f32 0.0, %v1941
    %v1943 = vpop.f32.mrb[0].mxu0
    %1944 = vdwg.mxu0
    %v1945 = vadd.f32 %v1702, %v1942
    %1946 = vrot.lane.b32.xlu0 %v257, 104
    %v1947 = vpop.permute.xlu0 %1946
    %1948 = vrot.lane.b32.xlu0 %v257, 72
    %v1949 = vpop.permute.xlu0 %1948
    %v1950 = vsel %vm263, %v1947, 0
    %v1952 = vsel %vm263, %v1949, 0
    %1954 = vmatprep.subr.mxu0 0.0
    %1955 = vmatpush1.xpose.msra.mxu0 %v1952
    %1956 = vmatprep.subr.mxu0 0.0
    %1957 = vmatpush1.xpose.msra.mxu0 0.0
    %1958 = vmatprep.subr.mxu0 0.0
    %1959 = vmatpush1.xpose.msra.mxu0 0.0
    %1960 = vmatprep.subr.mxu0 0.0
    %1961 = vmatpush1.xpose.msra.mxu0 0.0
    %1962 = vmatprep.subr.mxu0 0.0
    %1963 = vmatpush1.xpose.msra.mxu0 0.0
    %1964 = vmatprep.subr.mxu0 0.0
    %1965 = vmatpush1.xpose.msra.mxu0 0.0
    %1966 = vmatprep.subr.mxu0 0.0
    %1967 = vmatpush1.xpose.msra.mxu0 0.0
    %1968 = vmatprep.subr.mxu0 0.0
    %1969 = vmatpush1.xpose.msra.mxu0 0.0
    %1970 = vmatprep.subr.mxu0 0.0
    %1971 = vmatpush1.xpose.msra.mxu0 0.0
    %1972 = vmatprep.subr.mxu0 0.0
    %1973 = vmatpush1.xpose.msra.mxu0 0.0
    %1974 = vmatprep.subr.mxu0 0.0
    %1975 = vmatpush1.xpose.msra.mxu0 0.0
    %1976 = vmatprep.subr.mxu0 0.0
    %1977 = vmatpush1.xpose.msra.mxu0 0.0
    %1978 = vmatprep.subr.mxu0 0.0
    %1979 = vmatpush1.xpose.msra.mxu0 0.0
    %1980 = vmatprep.subr.mxu0 0.0
    %1981 = vmatpush1.xpose.msra.mxu0 0.0
    %1982 = vmatprep.subr.mxu0 0.0
    %1983 = vmatpush1.xpose.msra.mxu0 0.0
    %1984 = vmatprep.subr.mxu0 0.0
    %1985 = vmatpush1.xpose.msra.mxu0 0.0
    %1986 = vmatprep.subr.mxu0 0.0
    %1987 = vmatpush1.xpose.msra.mxu0 0.0
    %1988 = vmatprep.subr.mxu0 0.0
    %1989 = vmatpush1.xpose.msra.mxu0 0.0
    %1990 = vmatprep.subr.mxu0 0.0
    %1991 = vmatpush1.xpose.msra.mxu0 0.0
    %1992 = vmatprep.subr.mxu0 0.0
    %1993 = vmatpush1.xpose.msra.mxu0 0.0
    %1994 = vmatprep.subr.mxu0 0.0
    %1995 = vmatpush1.xpose.msra.mxu0 0.0
    %1996 = vmatprep.subr.mxu0 0.0
    %1997 = vmatpush1.xpose.msra.mxu0 0.0
    %1998 = vmatprep.subr.mxu0 0.0
    %1999 = vmatpush1.xpose.msra.mxu0 0.0
    %2000 = vmatprep.subr.mxu0 0.0
    %2001 = vmatpush1.xpose.msra.mxu0 0.0
    %2002 = vmatprep.subr.mxu0 0.0
    %2003 = vmatpush1.xpose.msra.mxu0 0.0
    %2004 = vmatprep.subr.mxu0 0.0
    %2005 = vmatpush1.xpose.msra.mxu0 0.0
    %2006 = vmatprep.subr.mxu0 0.0
    %2007 = vmatpush1.xpose.msra.mxu0 0.0
    %2008 = vmatprep.subr.mxu0 0.0
    %2009 = vmatpush1.xpose.msra.mxu0 0.0
    %2010 = vmatprep.subr.mxu0 0.0
    %2011 = vmatpush1.xpose.msra.mxu0 0.0
    %2012 = vmatprep.subr.mxu0 0.0
    %2013 = vmatpush1.xpose.msra.mxu0 0.0
    %2014 = vmatprep.subr.mxu0 0.0
    %2015 = vmatpush1.xpose.msra.mxu0 0.0
    %2016 = vmatprep.subr.mxu0 0.0
    %2017 = vmatpush1.xpose.msra.mxu0 0.0
    %2018 = vmatprep.mubr.f32.mxu0 0.0
    %2019 = vmatmul.mubr.f32.gmra.mrb[0].mxu0 %v1950
    %v2020 = vpop.f32.mrb[0].mxu0
    %v2021 = vadd.f32 0.0, %v2020
    %v2022 = vpop.f32.mrb[0].mxu0
    %2023 = vdwg.mxu0
    %v2024 = vmul.f32 %v2021, 0.35355338
    %v2025 = vadd.f32 %v2024, %v159
    %v2026 = vsel %vm263, %v2025, -inf
    %2027 = vmax.xlane.f32.xlu0 %v2026
    %v2028 = vpop.xlane.xlu0 %2027
    %v2029 = vsub.f32 %v2025, %v2028
    %v2030 = vmul.f32 %v2029, 1.442695
    %v2031 = vpow.pop %v2030
    %v2032 = vsel %vm263, %v2031, 0.0
    %2033 = vadd.xlane.f32.xlu0 %v2032
    %v2034 = vpop.xlane.xlu0 %2033
    %v2035 = vrcp.pop %v2034
    %v2036 = vmul.f32 %v2031, %v2035
    %2037 = vrot.lane.b32.xlu0 %v257, 40
    %v2038 = vpop.permute.xlu0 %2037
    %v2041 = vsel %vm263, %v2036, 0
    %2043 = vmatprep.subr.mxu0 0.0
    %2044 = vmatpush1.msra.mxu0 %v2038
    %2045 = vmatprep.subr.mxu0 0.0
    %2046 = vmatpush1.msra.mxu0 0.0
    %2047 = vmatprep.subr.mxu0 0.0
    %2048 = vmatpush1.msra.mxu0 0.0
    %2049 = vmatprep.subr.mxu0 0.0
    %2050 = vmatpush1.msra.mxu0 0.0
    %2051 = vmatprep.subr.mxu0 0.0
    %2052 = vmatpush1.msra.mxu0 0.0
    %2053 = vmatprep.subr.mxu0 0.0
    %2054 = vmatpush1.msra.mxu0 0.0
    %2055 = vmatprep.subr.mxu0 0.0
    %2056 = vmatpush1.msra.mxu0 0.0
    %2057 = vmatprep.subr.mxu0 0.0
    %2058 = vmatpush1.msra.mxu0 0.0
    %2059 = vmatprep.subr.mxu0 0.0
    %2060 = vmatpush1.msra.mxu0 0.0
    %2061 = vmatprep.subr.mxu0 0.0
    %2062 = vmatpush1.msra.mxu0 0.0
    %2063 = vmatprep.subr.mxu0 0.0
    %2064 = vmatpush1.msra.mxu0 0.0
    %2065 = vmatprep.subr.mxu0 0.0
    %2066 = vmatpush1.msra.mxu0 0.0
    %2067 = vmatprep.subr.mxu0 0.0
    %2068 = vmatpush1.msra.mxu0 0.0
    %2069 = vmatprep.subr.mxu0 0.0
    %2070 = vmatpush1.msra.mxu0 0.0
    %2071 = vmatprep.subr.mxu0 0.0
    %2072 = vmatpush1.msra.mxu0 0.0
    %2073 = vmatprep.subr.mxu0 0.0
    %2074 = vmatpush1.msra.mxu0 0.0
    %2075 = vmatprep.subr.mxu0 0.0
    %2076 = vmatpush1.msra.mxu0 0.0
    %2077 = vmatprep.subr.mxu0 0.0
    %2078 = vmatpush1.msra.mxu0 0.0
    %2079 = vmatprep.subr.mxu0 0.0
    %2080 = vmatpush1.msra.mxu0 0.0
    %2081 = vmatprep.subr.mxu0 0.0
    %2082 = vmatpush1.msra.mxu0 0.0
    %2083 = vmatprep.subr.mxu0 0.0
    %2084 = vmatpush1.msra.mxu0 0.0
    %2085 = vmatprep.subr.mxu0 0.0
    %2086 = vmatpush1.msra.mxu0 0.0
    %2087 = vmatprep.subr.mxu0 0.0
    %2088 = vmatpush1.msra.mxu0 0.0
    %2089 = vmatprep.subr.mxu0 0.0
    %2090 = vmatpush1.msra.mxu0 0.0
    %2091 = vmatprep.subr.mxu0 0.0
    %2092 = vmatpush1.msra.mxu0 0.0
    %2093 = vmatprep.subr.mxu0 0.0
    %2094 = vmatpush1.msra.mxu0 0.0
    %2095 = vmatprep.subr.mxu0 0.0
    %2096 = vmatpush1.msra.mxu0 0.0
    %2097 = vmatprep.subr.mxu0 0.0
    %2098 = vmatpush1.msra.mxu0 0.0
    %2099 = vmatprep.subr.mxu0 0.0
    %2100 = vmatpush1.msra.mxu0 0.0
    %2101 = vmatprep.subr.mxu0 0.0
    %2102 = vmatpush1.msra.mxu0 0.0
    %2103 = vmatprep.subr.mxu0 0.0
    %2104 = vmatpush1.msra.mxu0 0.0
    %2105 = vmatprep.subr.mxu0 0.0
    %2106 = vmatpush1.msra.mxu0 0.0
    %2107 = vmatprep.mubr.f32.mxu0 0.0
    %2108 = vmatmul.mubr.f32.gmra.mrb[0].mxu0 %v2041
    %v2109 = vpop.f32.mrb[0].mxu0
    %v2110 = vadd.f32 0.0, %v2109
    %v2111 = vpop.f32.mrb[0].mxu0
    %2112 = vdwg.mxu0
    %v2114 = vsel %vm263, %v2110, 0
    %2116 = vmatprep.subr.mxu0 0.0
    %2117 = vmatpush1.msra.mxu0 %v1151
    %2118 = vmatprep.subr.mxu0 0.0
    %2119 = vmatpush1.msra.mxu0 0.0
    %2120 = vmatprep.subr.mxu0 0.0
    %2121 = vmatpush1.msra.mxu0 0.0
    %2122 = vmatprep.subr.mxu0 0.0
    %2123 = vmatpush1.msra.mxu0 0.0
    %2124 = vmatprep.subr.mxu0 0.0
    %2125 = vmatpush1.msra.mxu0 0.0
    %2126 = vmatprep.subr.mxu0 0.0
    %2127 = vmatpush1.msra.mxu0 0.0
    %2128 = vmatprep.subr.mxu0 0.0
    %2129 = vmatpush1.msra.mxu0 0.0
    %2130 = vmatprep.subr.mxu0 0.0
    %2131 = vmatpush1.msra.mxu0 0.0
    %2132 = vmatprep.subr.mxu0 0.0
    %2133 = vmatpush1.msra.mxu0 0.0
    %2134 = vmatprep.subr.mxu0 0.0
    %2135 = vmatpush1.msra.mxu0 0.0
    %2136 = vmatprep.subr.mxu0 0.0
    %2137 = vmatpush1.msra.mxu0 0.0
    %2138 = vmatprep.subr.mxu0 0.0
    %2139 = vmatpush1.msra.mxu0 0.0
    %2140 = vmatprep.subr.mxu0 0.0
    %2141 = vmatpush1.msra.mxu0 0.0
    %2142 = vmatprep.subr.mxu0 0.0
    %2143 = vmatpush1.msra.mxu0 0.0
    %2144 = vmatprep.subr.mxu0 0.0
    %2145 = vmatpush1.msra.mxu0 0.0
    %2146 = vmatprep.subr.mxu0 0.0
    %2147 = vmatpush1.msra.mxu0 0.0
    %2148 = vmatprep.subr.mxu0 0.0
    %2149 = vmatpush1.msra.mxu0 0.0
    %2150 = vmatprep.subr.mxu0 0.0
    %2151 = vmatpush1.msra.mxu0 0.0
    %2152 = vmatprep.subr.mxu0 0.0
    %2153 = vmatpush1.msra.mxu0 0.0
    %2154 = vmatprep.subr.mxu0 0.0
    %2155 = vmatpush1.msra.mxu0 0.0
    %2156 = vmatprep.subr.mxu0 0.0
    %2157 = vmatpush1.msra.mxu0 0.0
    %2158 = vmatprep.subr.mxu0 0.0
    %2159 = vmatpush1.msra.mxu0 0.0
    %2160 = vmatprep.subr.mxu0 0.0
    %2161 = vmatpush1.msra.mxu0 0.0
    %2162 = vmatprep.subr.mxu0 0.0
    %2163 = vmatpush1.msra.mxu0 0.0
    %2164 = vmatprep.subr.mxu0 0.0
    %2165 = vmatpush1.msra.mxu0 0.0
    %2166 = vmatprep.subr.mxu0 0.0
    %2167 = vmatpush1.msra.mxu0 0.0
    %2168 = vmatprep.subr.mxu0 0.0
    %2169 = vmatpush1.msra.mxu0 0.0
    %2170 = vmatprep.subr.mxu0 0.0
    %2171 = vmatpush1.msra.mxu0 0.0
    %2172 = vmatprep.subr.mxu0 0.0
    %2173 = vmatpush1.msra.mxu0 0.0
    %2174 = vmatprep.subr.mxu0 0.0
    %2175 = vmatpush1.msra.mxu0 0.0
    %2176 = vmatprep.subr.mxu0 0.0
    %2177 = vmatpush1.msra.mxu0 0.0
    %2178 = vmatprep.subr.mxu0 0.0
    %2179 = vmatpush1.msra.mxu0 0.0
    %2180 = vmatprep.mubr.f32.mxu0 0.0
    %2181 = vmatmul.mubr.f32.gmra.mrb[0].mxu0 %v2114
    %v2182 = vpop.f32.mrb[0].mxu0
    %v2183 = vadd.f32 0.0, %v2182
    %v2184 = vpop.f32.mrb[0].mxu0
    %2185 = vdwg.mxu0
    %v2186 = vadd.f32 %v1945, %v2183
    %v2187 = vld [vmem:[%s7] sm:$0x1]
    %v2189 = vlaneseq
    %v2190 = vshrl.u32 %v2189, 7
    %v2191 = vsub.s32 0, %v2190
    %v2192 = vrot.slane %v2187, %v2191
    %v2194 = vadd.f32 %v1225, %v2192
    %v2195 = vadd.f32 %v2186, %v2192
    %v2196 = vadd.f32 %v149, %v2194
    %v2197 = vadd.f32 %v150, %v2195
    %v2198 = vsel %vm178, %v2196, 0.0
    %2199 = vadd.xlane.f32.xlu0 %v2198
    %v2200 = vpop.xlane.xlu0 %2199
    %v2201 = vsel %vm178, %v2197, 0.0
    %2202 = vadd.xlane.f32.xlu0 %v2201
    %v2203 = vpop.xlane.xlu0 %2202
    %v2204 = vrcp.pop 32.0
    %v2205 = vmul.f32 %v2200, %v2204
    %v2206 = vmul.f32 %v2203, %v2204
    %v2207 = vsub.f32 %v2196, %v2205
    %v2208 = vsub.f32 %v2197, %v2206
    %v2209 = vmul.f32 %v2207, %v2207
    %v2210 = vmul.f32 %v2208, %v2208
    %v2211 = vsel %vm178, %v2209, 0.0
    %2212 = vadd.xlane.f32.xlu0 %v2211
    %v2213 = vpop.xlane.xlu0 %2212
    %v2214 = vsel %vm178, %v2210, 0.0
    %2215 = vadd.xlane.f32.xlu0 %v2214
    %v2216 = vpop.xlane.xlu0 %2215
    %v2217 = vmul.f32 %v2213, %v2204
    %v2218 = vmul.f32 %v2216, %v2204
    %v2219 = vadd.f32 %v2217, 1e-05
    %v2220 = vadd.f32 %v2218, 1e-05
    %v2221 = vrsqrt.pop %v2219
    %v2222 = vrsqrt.pop %v2220
    %v2223 = vmul.f32 %v2207, %v2221
    %v2224 = vmul.f32 %v2208, %v2222
    %v2225 = vld [vmem:[%s8] sm:$0x1]
    %v2227 = vlaneseq
    %v2228 = vshrl.u32 %v2227, 7
    %v2229 = vsub.s32 0, %v2228
    %v2230 = vrot.slane %v2225, %v2229
    %v2232 = vmul.f32 %v2223, %v2230
    %v2233 = vmul.f32 %v2224, %v2230
    %v2234 = vld [vmem:[%s9] sm:$0x1]
    %v2236 = vlaneseq
    %v2237 = vshrl.u32 %v2236, 7
    %v2238 = vsub.s32 0, %v2237
    %v2239 = vrot.slane %v2234, %v2238
    %v2241 = vadd.f32 %v2232, %v2239
    %v2242 = vadd.f32 %v2233, %v2239
    %v2243 = vld [vmem:[%s10] sm:$0xff]
    %v2244 = vld [vmem:[%s10 + $0x8] sm:$0xff]
    %v2245 = vld [vmem:[%s10 + $0x10] sm:$0xff]
    %v2246 = vld [vmem:[%s10 + $0x18] sm:$0xff]
    %v2247 = vld [vmem:[%s11] sm:$0x1]
    %v2249 = vlaneseq
    %v2250 = vshrl.u32 %v2249, 7
    %v2251 = vsub.s32 0, %v2250
    %v2252 = vrot.slane %v2247, %v2251
    %v2255 = vsel %vm178, %v2241, 0
    %v2258 = vsel %vm178, %v2242, 0
    %2260 = vmatprep.subr.mxu0 0.0
    %2261 = vmatpush1.msra.mxu0 %v2243
    %2262 = vmatprep.subr.mxu0 0.0
    %2263 = vmatpush1.msra.mxu0 %v2244
    %2264 = vmatprep.subr.mxu0 0.0
    %2265 = vmatpush1.msra.mxu0 %v2245
    %2266 = vmatprep.subr.mxu0 0.0
    %2267 = vmatpush1.msra.mxu0 %v2246
    %2268 = vmatprep.subr.mxu0 0.0
    %2269 = vmatpush1.msra.mxu0 0.0
    %2270 = vmatprep.subr.mxu0 0.0
    %2271 = vmatpush1.msra.mxu0 0.0
    %2272 = vmatprep.subr.mxu0 0.0
    %2273 = vmatpush1.msra.mxu0 0.0
    %2274 = vmatprep.subr.mxu0 0.0
    %2275 = vmatpush1.msra.mxu0 0.0
    %2276 = vmatprep.subr.mxu0 0.0
    %2277 = vmatpush1.msra.mxu0 0.0
    %2278 = vmatprep.subr.mxu0 0.0
    %2279 = vmatpush1.msra.mxu0 0.0
    %2280 = vmatprep.subr.mxu0 0.0
    %2281 = vmatpush1.msra.mxu0 0.0
    %2282 = vmatprep.subr.mxu0 0.0
    %2283 = vmatpush1.msra.mxu0 0.0
    %2284 = vmatprep.subr.mxu0 0.0
    %2285 = vmatpush1.msra.mxu0 0.0
    %2286 = vmatprep.subr.mxu0 0.0
    %2287 = vmatpush1.msra.mxu0 0.0
    %2288 = vmatprep.subr.mxu0 0.0
    %2289 = vmatpush1.msra.mxu0 0.0
    %2290 = vmatprep.subr.mxu0 0.0
    %2291 = vmatpush1.msra.mxu0 0.0
    %2292 = vmatprep.subr.mxu0 0.0
    %2293 = vmatpush1.msra.mxu0 0.0
    %2294 = vmatprep.subr.mxu0 0.0
    %2295 = vmatpush1.msra.mxu0 0.0
    %2296 = vmatprep.subr.mxu0 0.0
    %2297 = vmatpush1.msra.mxu0 0.0
    %2298 = vmatprep.subr.mxu0 0.0
    %2299 = vmatpush1.msra.mxu0 0.0
    %2300 = vmatprep.subr.mxu0 0.0
    %2301 = vmatpush1.msra.mxu0 0.0
    %2302 = vmatprep.subr.mxu0 0.0
    %2303 = vmatpush1.msra.mxu0 0.0
    %2304 = vmatprep.subr.mxu0 0.0
    %2305 = vmatpush1.msra.mxu0 0.0
    %2306 = vmatprep.subr.mxu0 0.0
    %2307 = vmatpush1.msra.mxu0 0.0
    %2308 = vmatprep.subr.mxu0 0.0
    %2309 = vmatpush1.msra.mxu0 0.0
    %2310 = vmatprep.subr.mxu0 0.0
    %2311 = vmatpush1.msra.mxu0 0.0
    %2312 = vmatprep.subr.mxu0 0.0
    %2313 = vmatpush1.msra.mxu0 0.0
    %2314 = vmatprep.subr.mxu0 0.0
    %2315 = vmatpush1.msra.mxu0 0.0
    %2316 = vmatprep.subr.mxu0 0.0
    %2317 = vmatpush1.msra.mxu0 0.0
    %2318 = vmatprep.subr.mxu0 0.0
    %2319 = vmatpush1.msra.mxu0 0.0
    %2320 = vmatprep.subr.mxu0 0.0
    %2321 = vmatpush1.msra.mxu0 0.0
    %2322 = vmatprep.subr.mxu0 0.0
    %2323 = vmatpush1.msra.mxu0 0.0
    %2324 = vmatprep.mubr.f32.mxu0 0.0
    %2325 = vmatmul.mubr.f32.gmra.mrb[0].mxu0 %v2255
    %v2326 = vpop.f32.mrb[0].mxu0
    %v2327 = vadd.f32 %v2252, %v2326
    %v2328 = vpop.f32.mrb[0].mxu0
    %2329 = vmatprep.mubr.f32.mxu0 0.0
    %2330 = vmatmul.mubr.f32.gmra.mrb[0].mxu0 %v2258
    %v2331 = vpop.f32.mrb[0].mxu0
    %v2332 = vadd.f32 %v2252, %v2331
    %v2333 = vpop.f32.mrb[0].mxu0
    %2334 = vdwg.mxu0
    %v2335 = vld [vmem:[#allocation7] sm:$0xff]
    %v2336 = vld [vmem:[#allocation7 + $0x8] sm:$0xff]
    %v2337 = vld [vmem:[#allocation7 + $0x10] sm:$0xff]
    %v2338 = vld [vmem:[#allocation7 + $0x18] sm:$0xff]
    %v2339 = vld [vmem:[%s13] sm:$0x1]
    %v2341 = vlaneseq
    %v2342 = vshrl.u32 %v2341, 7
    %v2343 = vsub.s32 0, %v2342
    %v2344 = vrot.slane %v2339, %v2343
    %v2347 = vsel %vm178, %v151, 0
    %v2350 = vsel %vm178, %v152, 0
    %2352 = vmatprep.subr.mxu0 0.0
    %2353 = vmatpush1.msra.mxu0 %v2335
    %2354 = vmatprep.subr.mxu0 0.0
    %2355 = vmatpush1.msra.mxu0 %v2336
    %2356 = vmatprep.subr.mxu0 0.0
    %2357 = vmatpush1.msra.mxu0 %v2337
    %2358 = vmatprep.subr.mxu0 0.0
    %2359 = vmatpush1.msra.mxu0 %v2338
    %2360 = vmatprep.subr.mxu0 0.0
    %2361 = vmatpush1.msra.mxu0 0.0
    %2362 = vmatprep.subr.mxu0 0.0
    %2363 = vmatpush1.msra.mxu0 0.0
    %2364 = vmatprep.subr.mxu0 0.0
    %2365 = vmatpush1.msra.mxu0 0.0
    %2366 = vmatprep.subr.mxu0 0.0
    %2367 = vmatpush1.msra.mxu0 0.0
    %2368 = vmatprep.subr.mxu0 0.0
    %2369 = vmatpush1.msra.mxu0 0.0
    %2370 = vmatprep.subr.mxu0 0.0
    %2371 = vmatpush1.msra.mxu0 0.0
    %2372 = vmatprep.subr.mxu0 0.0
    %2373 = vmatpush1.msra.mxu0 0.0
    %2374 = vmatprep.subr.mxu0 0.0
    %2375 = vmatpush1.msra.mxu0 0.0
    %2376 = vmatprep.subr.mxu0 0.0
    %2377 = vmatpush1.msra.mxu0 0.0
    %2378 = vmatprep.subr.mxu0 0.0
    %2379 = vmatpush1.msra.mxu0 0.0
    %2380 = vmatprep.subr.mxu0 0.0
    %2381 = vmatpush1.msra.mxu0 0.0
    %2382 = vmatprep.subr.mxu0 0.0
    %2383 = vmatpush1.msra.mxu0 0.0
    %2384 = vmatprep.subr.mxu0 0.0
    %2385 = vmatpush1.msra.mxu0 0.0
    %2386 = vmatprep.subr.mxu0 0.0
    %2387 = vmatpush1.msra.mxu0 0.0
    %2388 = vmatprep.subr.mxu0 0.0
    %2389 = vmatpush1.msra.mxu0 0.0
    %2390 = vmatprep.subr.mxu0 0.0
    %2391 = vmatpush1.msra.mxu0 0.0
    %2392 = vmatprep.subr.mxu0 0.0
    %2393 = vmatpush1.msra.mxu0 0.0
    %2394 = vmatprep.subr.mxu0 0.0
    %2395 = vmatpush1.msra.mxu0 0.0
    %2396 = vmatprep.subr.mxu0 0.0
    %2397 = vmatpush1.msra.mxu0 0.0
    %2398 = vmatprep.subr.mxu0 0.0
    %2399 = vmatpush1.msra.mxu0 0.0
    %2400 = vmatprep.subr.mxu0 0.0
    %2401 = vmatpush1.msra.mxu0 0.0
    %2402 = vmatprep.subr.mxu0 0.0
    %2403 = vmatpush1.msra.mxu0 0.0
    %2404 = vmatprep.subr.mxu0 0.0
    %2405 = vmatpush1.msra.mxu0 0.0
    %2406 = vmatprep.subr.mxu0 0.0
    %2407 = vmatpush1.msra.mxu0 0.0
    %2408 = vmatprep.subr.mxu0 0.0
    %2409 = vmatpush1.msra.mxu0 0.0
    %2410 = vmatprep.subr.mxu0 0.0
    %2411 = vmatpush1.msra.mxu0 0.0
    %2412 = vmatprep.subr.mxu0 0.0
    %2413 = vmatpush1.msra.mxu0 0.0
    %2414 = vmatprep.subr.mxu0 0.0
    %2415 = vmatpush1.msra.mxu0 0.0
    %2416 = vmatprep.mubr.f32.mxu0 0.0
    %2417 = vmatmul.mubr.f32.gmra.mrb[0].mxu0 %v2347
    %v2418 = vpop.f32.mrb[0].mxu0
    %v2419 = vadd.f32 %v2344, %v2418
    %v2420 = vpop.f32.mrb[0].mxu0
    %2421 = vmatprep.mubr.f32.mxu0 0.0
    %2422 = vmatmul.mubr.f32.gmra.mrb[0].mxu0 %v2350
    %v2423 = vpop.f32.mrb[0].mxu0
    %v2424 = vadd.f32 %v2344, %v2423
    %v2425 = vpop.f32.mrb[0].mxu0
    %2426 = vdwg.mxu0
    %v2428 = vsel %vm263, %v2327, 0
    %v2431 = vsel %vm263, %v2419, 0
    %2433 = vmatprep.subr.mxu0 0.0
    %2434 = vmatpush1.xpose.msra.mxu0 %v2431
    %2435 = vmatprep.subr.mxu0 0.0
    %2436 = vmatpush1.xpose.msra.mxu0 0.0
    %2437 = vmatprep.subr.mxu0 0.0
    %2438 = vmatpush1.xpose.msra.mxu0 0.0
    %2439 = vmatprep.subr.mxu0 0.0
    %2440 = vmatpush1.xpose.msra.mxu0 0.0
    %2441 = vmatprep.subr.mxu0 0.0
    %2442 = vmatpush1.xpose.msra.mxu0 0.0
    %2443 = vmatprep.subr.mxu0 0.0
    %2444 = vmatpush1.xpose.msra.mxu0 0.0
    %2445 = vmatprep.subr.mxu0 0.0
    %2446 = vmatpush1.xpose.msra.mxu0 0.0
    %2447 = vmatprep.subr.mxu0 0.0
    %2448 = vmatpush1.xpose.msra.mxu0 0.0
    %2449 = vmatprep.subr.mxu0 0.0
    %2450 = vmatpush1.xpose.msra.mxu0 0.0
    %2451 = vmatprep.subr.mxu0 0.0
    %2452 = vmatpush1.xpose.msra.mxu0 0.0
    %2453 = vmatprep.subr.mxu0 0.0
    %2454 = vmatpush1.xpose.msra.mxu0 0.0
    %2455 = vmatprep.subr.mxu0 0.0
    %2456 = vmatpush1.xpose.msra.mxu0 0.0
    %2457 = vmatprep.subr.mxu0 0.0
    %2458 = vmatpush1.xpose.msra.mxu0 0.0
    %2459 = vmatprep.subr.mxu0 0.0
    %2460 = vmatpush1.xpose.msra.mxu0 0.0
    %2461 = vmatprep.subr.mxu0 0.0
    %2462 = vmatpush1.xpose.msra.mxu0 0.0
    %2463 = vmatprep.subr.mxu0 0.0
    %2464 = vmatpush1.xpose.msra.mxu0 0.0
    %2465 = vmatprep.subr.mxu0 0.0
    %2466 = vmatpush1.xpose.msra.mxu0 0.0
    %2467 = vmatprep.subr.mxu0 0.0
    %2468 = vmatpush1.xpose.msra.mxu0 0.0
    %2469 = vmatprep.subr.mxu0 0.0
    %2470 = vmatpush1.xpose.msra.mxu0 0.0
    %2471 = vmatprep.subr.mxu0 0.0
    %2472 = vmatpush1.xpose.msra.mxu0 0.0
    %2473 = vmatprep.subr.mxu0 0.0
    %2474 = vmatpush1.xpose.msra.mxu0 0.0
    %2475 = vmatprep.subr.mxu0 0.0
    %2476 = vmatpush1.xpose.msra.mxu0 0.0
    %2477 = vmatprep.subr.mxu0 0.0
    %2478 = vmatpush1.xpose.msra.mxu0 0.0
    %2479 = vmatprep.subr.mxu0 0.0
    %2480 = vmatpush1.xpose.msra.mxu0 0.0
    %2481 = vmatprep.subr.mxu0 0.0
    %2482 = vmatpush1.xpose.msra.mxu0 0.0
    %2483 = vmatprep.subr.mxu0 0.0
    %2484 = vmatpush1.xpose.msra.mxu0 0.0
    %2485 = vmatprep.subr.mxu0 0.0
    %2486 = vmatpush1.xpose.msra.mxu0 0.0
    %2487 = vmatprep.subr.mxu0 0.0
    %2488 = vmatpush1.xpose.msra.mxu0 0.0
    %2489 = vmatprep.subr.mxu0 0.0
    %2490 = vmatpush1.xpose.msra.mxu0 0.0
    %2491 = vmatprep.subr.mxu0 0.0
    %2492 = vmatpush1.xpose.msra.mxu0 0.0
    %2493 = vmatprep.subr.mxu0 0.0
    %2494 = vmatpush1.xpose.msra.mxu0 0.0
    %2495 = vmatprep.subr.mxu0 0.0
    %2496 = vmatpush1.xpose.msra.mxu0 0.0
    %2497 = vmatprep.mubr.f32.mxu0 0.0
    %2498 = vmatmul.mubr.f32.gmra.mrb[0].mxu0 %v2428
    %v2499 = vpop.f32.mrb[0].mxu0
    %v2500 = vadd.f32 0.0, %v2499
    %v2501 = vpop.f32.mrb[0].mxu0
    %2502 = vdwg.mxu0
    %v2503 = vmul.f32 %v2500, 0.35355338
    %v2505 = vlaneseq
    %v2506 = vshrl.u32 %v2505, 7
    %v2507 = vsub.s32 0, %v2506
    %v2508 = vrot.slane %v162, %v2507
    %v2510 = vadd.f32 %v2503, %v2508
    %v2511 = vsel %vm263, %v2510, -inf
    %2512 = vmax.xlane.f32.xlu0 %v2511
    %v2513 = vpop.xlane.xlu0 %2512
    %v2514 = vsub.f32 %v2510, %v2513
    %v2515 = vmul.f32 %v2514, 1.442695
    %v2516 = vpow.pop %v2515
    %v2517 = vsel %vm263, %v2516, 0.0
    %2518 = vadd.xlane.f32.xlu0 %v2517
    %v2519 = vpop.xlane.xlu0 %2518
    %v2520 = vrcp.pop %v2519
    %v2521 = vmul.f32 %v2516, %v2520
    %2522 = vst.msk [vmem:[#allocation12] sm:$0xff] %vm263, %v2521
    %2523 = vrot.lane.b32.xlu0 %v2419, 96
    %v2524 = vpop.permute.xlu0 %2523
    %v2527 = vsel %vm263, %v2521, 0
    %2529 = vmatprep.subr.mxu0 0.0
    %2530 = vmatpush1.msra.mxu0 %v2524
    %2531 = vmatprep.subr.mxu0 0.0
    %2532 = vmatpush1.msra.mxu0 0.0
    %2533 = vmatprep.subr.mxu0 0.0
    %2534 = vmatpush1.msra.mxu0 0.0
    %2535 = vmatprep.subr.mxu0 0.0
    %2536 = vmatpush1.msra.mxu0 0.0
    %2537 = vmatprep.subr.mxu0 0.0
    %2538 = vmatpush1.msra.mxu0 0.0
    %2539 = vmatprep.subr.mxu0 0.0
    %2540 = vmatpush1.msra.mxu0 0.0
    %2541 = vmatprep.subr.mxu0 0.0
    %2542 = vmatpush1.msra.mxu0 0.0
    %2543 = vmatprep.subr.mxu0 0.0
    %2544 = vmatpush1.msra.mxu0 0.0
    %2545 = vmatprep.subr.mxu0 0.0
    %2546 = vmatpush1.msra.mxu0 0.0
    %2547 = vmatprep.subr.mxu0 0.0
    %2548 = vmatpush1.msra.mxu0 0.0
    %2549 = vmatprep.subr.mxu0 0.0
    %2550 = vmatpush1.msra.mxu0 0.0
    %2551 = vmatprep.subr.mxu0 0.0
    %2552 = vmatpush1.msra.mxu0 0.0
    %2553 = vmatprep.subr.mxu0 0.0
    %2554 = vmatpush1.msra.mxu0 0.0
    %2555 = vmatprep.subr.mxu0 0.0
    %2556 = vmatpush1.msra.mxu0 0.0
    %2557 = vmatprep.subr.mxu0 0.0
    %2558 = vmatpush1.msra.mxu0 0.0
    %2559 = vmatprep.subr.mxu0 0.0
    %2560 = vmatpush1.msra.mxu0 0.0
    %2561 = vmatprep.subr.mxu0 0.0
    %2562 = vmatpush1.msra.mxu0 0.0
    %2563 = vmatprep.subr.mxu0 0.0
    %2564 = vmatpush1.msra.mxu0 0.0
    %2565 = vmatprep.subr.mxu0 0.0
    %2566 = vmatpush1.msra.mxu0 0.0
    %2567 = vmatprep.subr.mxu0 0.0
    %2568 = vmatpush1.msra.mxu0 0.0
    %2569 = vmatprep.subr.mxu0 0.0
    %2570 = vmatpush1.msra.mxu0 0.0
    %2571 = vmatprep.subr.mxu0 0.0
    %2572 = vmatpush1.msra.mxu0 0.0
    %2573 = vmatprep.subr.mxu0 0.0
    %2574 = vmatpush1.msra.mxu0 0.0
    %2575 = vmatprep.subr.mxu0 0.0
    %2576 = vmatpush1.msra.mxu0 0.0
    %2577 = vmatprep.subr.mxu0 0.0
    %2578 = vmatpush1.msra.mxu0 0.0
    %2579 = vmatprep.subr.mxu0 0.0
    %2580 = vmatpush1.msra.mxu0 0.0
    %2581 = vmatprep.subr.mxu0 0.0
    %2582 = vmatpush1.msra.mxu0 0.0
    %2583 = vmatprep.subr.mxu0 0.0
    %2584 = vmatpush1.msra.mxu0 0.0
    %2585 = vmatprep.subr.mxu0 0.0
    %2586 = vmatpush1.msra.mxu0 0.0
    %2587 = vmatprep.subr.mxu0 0.0
    %2588 = vmatpush1.msra.mxu0 0.0
    %2589 = vmatprep.subr.mxu0 0.0
    %2590 = vmatpush1.msra.mxu0 0.0
    %2591 = vmatprep.subr.mxu0 0.0
    %2592 = vmatpush1.msra.mxu0 0.0
    %2593 = vmatprep.mubr.f32.mxu0 0.0
    %2594 = vmatmul.mubr.f32.gmra.mrb[0].mxu0 %v2527
    %v2595 = vpop.f32.mrb[0].mxu0
    %v2596 = vadd.f32 0.0, %v2595
    %v2597 = vpop.f32.mrb[0].mxu0
    %2598 = vdwg.mxu0
    %v2599 = vld [vmem:[#allocation8] sm:$0xff]
    %2600 = vrot.lane.b32.xlu0 %v2327, 120
    %v2601 = vpop.permute.xlu0 %2600
    %2602 = vrot.lane.b32.xlu0 %v2419, 120
    %v2603 = vpop.permute.xlu0 %2602
    %v2604 = vsel %vm263, %v2601, 0
    %v2606 = vsel %vm263, %v2603, 0
    %2608 = vmatprep.subr.mxu0 0.0
    %2609 = vmatpush1.xpose.msra.mxu0 %v2606
    %2610 = vmatprep.subr.mxu0 0.0
    %2611 = vmatpush1.xpose.msra.mxu0 0.0
    %2612 = vmatprep.subr.mxu0 0.0
    %2613 = vmatpush1.xpose.msra.mxu0 0.0
    %2614 = vmatprep.subr.mxu0 0.0
    %2615 = vmatpush1.xpose.msra.mxu0 0.0
    %2616 = vmatprep.subr.mxu0 0.0
    %2617 = vmatpush1.xpose.msra.mxu0 0.0
    %2618 = vmatprep.subr.mxu0 0.0
    %2619 = vmatpush1.xpose.msra.mxu0 0.0
    %2620 = vmatprep.subr.mxu0 0.0
    %2621 = vmatpush1.xpose.msra.mxu0 0.0
    %2622 = vmatprep.subr.mxu0 0.0
    %2623 = vmatpush1.xpose.msra.mxu0 0.0
    %2624 = vmatprep.subr.mxu0 0.0
    %2625 = vmatpush1.xpose.msra.mxu0 0.0
    %2626 = vmatprep.subr.mxu0 0.0
    %2627 = vmatpush1.xpose.msra.mxu0 0.0
    %2628 = vmatprep.subr.mxu0 0.0
    %2629 = vmatpush1.xpose.msra.mxu0 0.0
    %2630 = vmatprep.subr.mxu0 0.0
    %2631 = vmatpush1.xpose.msra.mxu0 0.0
    %2632 = vmatprep.subr.mxu0 0.0
    %2633 = vmatpush1.xpose.msra.mxu0 0.0
    %2634 = vmatprep.subr.mxu0 0.0
    %2635 = vmatpush1.xpose.msra.mxu0 0.0
    %2636 = vmatprep.subr.mxu0 0.0
    %2637 = vmatpush1.xpose.msra.mxu0 0.0
    %2638 = vmatprep.subr.mxu0 0.0
    %2639 = vmatpush1.xpose.msra.mxu0 0.0
    %2640 = vmatprep.subr.mxu0 0.0
    %2641 = vmatpush1.xpose.msra.mxu0 0.0
    %2642 = vmatprep.subr.mxu0 0.0
    %2643 = vmatpush1.xpose.msra.mxu0 0.0
    %2644 = vmatprep.subr.mxu0 0.0
    %2645 = vmatpush1.xpose.msra.mxu0 0.0
    %2646 = vmatprep.subr.mxu0 0.0
    %2647 = vmatpush1.xpose.msra.mxu0 0.0
    %2648 = vmatprep.subr.mxu0 0.0
    %2649 = vmatpush1.xpose.msra.mxu0 0.0
    %2650 = vmatprep.subr.mxu0 0.0
    %2651 = vmatpush1.xpose.msra.mxu0 0.0
    %2652 = vmatprep.subr.mxu0 0.0
    %2653 = vmatpush1.xpose.msra.mxu0 0.0
    %2654 = vmatprep.subr.mxu0 0.0
    %2655 = vmatpush1.xpose.msra.mxu0 0.0
    %2656 = vmatprep.subr.mxu0 0.0
    %2657 = vmatpush1.xpose.msra.mxu0 0.0
    %2658 = vmatprep.subr.mxu0 0.0
    %2659 = vmatpush1.xpose.msra.mxu0 0.0
    %2660 = vmatprep.subr.mxu0 0.0
    %2661 = vmatpush1.xpose.msra.mxu0 0.0
    %2662 = vmatprep.subr.mxu0 0.0
    %2663 = vmatpush1.xpose.msra.mxu0 0.0
    %2664 = vmatprep.subr.mxu0 0.0
    %2665 = vmatpush1.xpose.msra.mxu0 0.0
    %2666 = vmatprep.subr.mxu0 0.0
    %2667 = vmatpush1.xpose.msra.mxu0 0.0
    %2668 = vmatprep.subr.mxu0 0.0
    %2669 = vmatpush1.xpose.msra.mxu0 0.0
    %2670 = vmatprep.subr.mxu0 0.0
    %2671 = vmatpush1.xpose.msra.mxu0 0.0
    %2672 = vmatprep.mubr.f32.mxu0 0.0
    %2673 = vmatmul.mubr.f32.gmra.mrb[0].mxu0 %v2604
    %v2674 = vpop.f32.mrb[0].mxu0
    %v2675 = vadd.f32 0.0, %v2674
    %v2676 = vpop.f32.mrb[0].mxu0
    %2677 = vdwg.mxu0
    %v2678 = vmul.f32 %v2675, 0.35355338
    %v2679 = vadd.f32 %v2678, %v2508
    %v2680 = vsel %vm263, %v2679, -inf
    %2681 = vmax.xlane.f32.xlu0 %v2680
    %v2682 = vpop.xlane.xlu0 %2681
    %v2683 = vsub.f32 %v2679, %v2682
    %v2684 = vmul.f32 %v2683, 1.442695
    %v2685 = vpow.pop %v2684
    %v2686 = vsel %vm263, %v2685, 0.0
    %2687 = vadd.xlane.f32.xlu0 %v2686
    %v2688 = vpop.xlane.xlu0 %2687
    %v2689 = vrcp.pop %v2688
    %v2690 = vmul.f32 %v2685, %v2689
    %s2691 = scalar_lea.vmem [#allocation12], 8
    %2692 = vst.msk [vmem:[%s2691] sm:$0xff] %vm263, %v2690
    %2693 = vrot.lane.b32.xlu0 %v2419, 88
    %v2694 = vpop.permute.xlu0 %2693
    %v2697 = vsel %vm263, %v2690, 0
    %2699 = vmatprep.subr.mxu0 0.0
    %2700 = vmatpush1.msra.mxu0 %v2694
    %2701 = vmatprep.subr.mxu0 0.0
    %2702 = vmatpush1.msra.mxu0 0.0
    %2703 = vmatprep.subr.mxu0 0.0
    %2704 = vmatpush1.msra.mxu0 0.0
    %2705 = vmatprep.subr.mxu0 0.0
    %2706 = vmatpush1.msra.mxu0 0.0
    %2707 = vmatprep.subr.mxu0 0.0
    %2708 = vmatpush1.msra.mxu0 0.0
    %2709 = vmatprep.subr.mxu0 0.0
    %2710 = vmatpush1.msra.mxu0 0.0
    %2711 = vmatprep.subr.mxu0 0.0
    %2712 = vmatpush1.msra.mxu0 0.0
    %2713 = vmatprep.subr.mxu0 0.0
    %2714 = vmatpush1.msra.mxu0 0.0
    %2715 = vmatprep.subr.mxu0 0.0
    %2716 = vmatpush1.msra.mxu0 0.0
    %2717 = vmatprep.subr.mxu0 0.0
    %2718 = vmatpush1.msra.mxu0 0.0
    %2719 = vmatprep.subr.mxu0 0.0
    %2720 = vmatpush1.msra.mxu0 0.0
    %2721 = vmatprep.subr.mxu0 0.0
    %2722 = vmatpush1.msra.mxu0 0.0
    %2723 = vmatprep.subr.mxu0 0.0
    %2724 = vmatpush1.msra.mxu0 0.0
    %2725 = vmatprep.subr.mxu0 0.0
    %2726 = vmatpush1.msra.mxu0 0.0
    %2727 = vmatprep.subr.mxu0 0.0
    %2728 = vmatpush1.msra.mxu0 0.0
    %2729 = vmatprep.subr.mxu0 0.0
    %2730 = vmatpush1.msra.mxu0 0.0
    %2731 = vmatprep.subr.mxu0 0.0
    %2732 = vmatpush1.msra.mxu0 0.0
    %2733 = vmatprep.subr.mxu0 0.0
    %2734 = vmatpush1.msra.mxu0 0.0
    %2735 = vmatprep.subr.mxu0 0.0
    %2736 = vmatpush1.msra.mxu0 0.0
    %2737 = vmatprep.subr.mxu0 0.0
    %2738 = vmatpush1.msra.mxu0 0.0
    %2739 = vmatprep.subr.mxu0 0.0
    %2740 = vmatpush1.msra.mxu0 0.0
    %2741 = vmatprep.subr.mxu0 0.0
    %2742 = vmatpush1.msra.mxu0 0.0
    %2743 = vmatprep.subr.mxu0 0.0
    %2744 = vmatpush1.msra.mxu0 0.0
    %2745 = vmatprep.subr.mxu0 0.0
    %2746 = vmatpush1.msra.mxu0 0.0
    %2747 = vmatprep.subr.mxu0 0.0
    %2748 = vmatpush1.msra.mxu0 0.0
    %2749 = vmatprep.subr.mxu0 0.0
    %2750 = vmatpush1.msra.mxu0 0.0
    %2751 = vmatprep.subr.mxu0 0.0
    %2752 = vmatpush1.msra.mxu0 0.0
    %2753 = vmatprep.subr.mxu0 0.0
    %2754 = vmatpush1.msra.mxu0 0.0
    %2755 = vmatprep.subr.mxu0 0.0
    %2756 = vmatpush1.msra.mxu0 0.0
    %2757 = vmatprep.subr.mxu0 0.0
    %2758 = vmatpush1.msra.mxu0 0.0
    %2759 = vmatprep.subr.mxu0 0.0
    %2760 = vmatpush1.msra.mxu0 0.0
    %2761 = vmatprep.subr.mxu0 0.0
    %2762 = vmatpush1.msra.mxu0 0.0
    %2763 = vmatprep.mubr.f32.mxu0 0.0
    %2764 = vmatmul.mubr.f32.gmra.mrb[0].mxu0 %v2697
    %v2765 = vpop.f32.mrb[0].mxu0
    %v2766 = vadd.f32 0.0, %v2765
    %v2767 = vpop.f32.mrb[0].mxu0
    %2768 = vdwg.mxu0
    %v2769 = vld [vmem:[#allocation8 + $0x8] sm:$0xff]
    %v2771 = vsel %vm263, %v2766, 0
    %2773 = vmatprep.subr.mxu0 0.0
    %2774 = vmatpush1.msra.mxu0 %v2769
    %2775 = vmatprep.subr.mxu0 0.0
    %2776 = vmatpush1.msra.mxu0 0.0
    %2777 = vmatprep.subr.mxu0 0.0
    %2778 = vmatpush1.msra.mxu0 0.0
    %2779 = vmatprep.subr.mxu0 0.0
    %2780 = vmatpush1.msra.mxu0 0.0
    %2781 = vmatprep.subr.mxu0 0.0
    %2782 = vmatpush1.msra.mxu0 0.0
    %2783 = vmatprep.subr.mxu0 0.0
    %2784 = vmatpush1.msra.mxu0 0.0
    %2785 = vmatprep.subr.mxu0 0.0
    %2786 = vmatpush1.msra.mxu0 0.0
    %2787 = vmatprep.subr.mxu0 0.0
    %2788 = vmatpush1.msra.mxu0 0.0
    %2789 = vmatprep.subr.mxu0 0.0
    %2790 = vmatpush1.msra.mxu0 0.0
    %2791 = vmatprep.subr.mxu0 0.0
    %2792 = vmatpush1.msra.mxu0 0.0
    %2793 = vmatprep.subr.mxu0 0.0
    %2794 = vmatpush1.msra.mxu0 0.0
    %2795 = vmatprep.subr.mxu0 0.0
    %2796 = vmatpush1.msra.mxu0 0.0
    %2797 = vmatprep.subr.mxu0 0.0
    %2798 = vmatpush1.msra.mxu0 0.0
    %2799 = vmatprep.subr.mxu0 0.0
    %2800 = vmatpush1.msra.mxu0 0.0
    %2801 = vmatprep.subr.mxu0 0.0
    %2802 = vmatpush1.msra.mxu0 0.0
    %2803 = vmatprep.subr.mxu0 0.0
    %2804 = vmatpush1.msra.mxu0 0.0
    %2805 = vmatprep.subr.mxu0 0.0
    %2806 = vmatpush1.msra.mxu0 0.0
    %2807 = vmatprep.subr.mxu0 0.0
    %2808 = vmatpush1.msra.mxu0 0.0
    %2809 = vmatprep.subr.mxu0 0.0
    %2810 = vmatpush1.msra.mxu0 0.0
    %2811 = vmatprep.subr.mxu0 0.0
    %2812 = vmatpush1.msra.mxu0 0.0
    %2813 = vmatprep.subr.mxu0 0.0
    %2814 = vmatpush1.msra.mxu0 0.0
    %2815 = vmatprep.subr.mxu0 0.0
    %2816 = vmatpush1.msra.mxu0 0.0
    %2817 = vmatprep.subr.mxu0 0.0
    %2818 = vmatpush1.msra.mxu0 0.0
    %2819 = vmatprep.subr.mxu0 0.0
    %2820 = vmatpush1.msra.mxu0 0.0
    %2821 = vmatprep.subr.mxu0 0.0
    %2822 = vmatpush1.msra.mxu0 0.0
    %2823 = vmatprep.subr.mxu0 0.0
    %2824 = vmatpush1.msra.mxu0 0.0
    %2825 = vmatprep.subr.mxu0 0.0
    %2826 = vmatpush1.msra.mxu0 0.0
    %2827 = vmatprep.subr.mxu0 0.0
    %2828 = vmatpush1.msra.mxu0 0.0
    %2829 = vmatprep.subr.mxu0 0.0
    %2830 = vmatpush1.msra.mxu0 0.0
    %2831 = vmatprep.subr.mxu0 0.0
    %2832 = vmatpush1.msra.mxu0 0.0
    %2833 = vmatprep.subr.mxu0 0.0
    %2834 = vmatpush1.msra.mxu0 0.0
    %2835 = vmatprep.subr.mxu0 0.0
    %2836 = vmatpush1.msra.mxu0 0.0
    %2837 = vmatprep.mubr.f32.mxu0 0.0
    %2838 = vmatmul.mubr.f32.gmra.mrb[0].mxu0 %v2771
    %v2839 = vpop.f32.mrb[0].mxu0
    %v2840 = vadd.f32 0.0, %v2839
    %v2841 = vpop.f32.mrb[0].mxu0
    %2842 = vdwg.mxu0
    %v2844 = vsel %vm263, %v2596, 0
    %2846 = vmatprep.subr.mxu0 0.0
    %2847 = vmatpush1.msra.mxu0 %v2599
    %2848 = vmatprep.subr.mxu0 0.0
    %2849 = vmatpush1.msra.mxu0 0.0
    %2850 = vmatprep.subr.mxu0 0.0
    %2851 = vmatpush1.msra.mxu0 0.0
    %2852 = vmatprep.subr.mxu0 0.0
    %2853 = vmatpush1.msra.mxu0 0.0
    %2854 = vmatprep.subr.mxu0 0.0
    %2855 = vmatpush1.msra.mxu0 0.0
    %2856 = vmatprep.subr.mxu0 0.0
    %2857 = vmatpush1.msra.mxu0 0.0
    %2858 = vmatprep.subr.mxu0 0.0
    %2859 = vmatpush1.msra.mxu0 0.0
    %2860 = vmatprep.subr.mxu0 0.0
    %2861 = vmatpush1.msra.mxu0 0.0
    %2862 = vmatprep.subr.mxu0 0.0
    %2863 = vmatpush1.msra.mxu0 0.0
    %2864 = vmatprep.subr.mxu0 0.0
    %2865 = vmatpush1.msra.mxu0 0.0
    %2866 = vmatprep.subr.mxu0 0.0
    %2867 = vmatpush1.msra.mxu0 0.0
    %2868 = vmatprep.subr.mxu0 0.0
    %2869 = vmatpush1.msra.mxu0 0.0
    %2870 = vmatprep.subr.mxu0 0.0
    %2871 = vmatpush1.msra.mxu0 0.0
    %2872 = vmatprep.subr.mxu0 0.0
    %2873 = vmatpush1.msra.mxu0 0.0
    %2874 = vmatprep.subr.mxu0 0.0
    %2875 = vmatpush1.msra.mxu0 0.0
    %2876 = vmatprep.subr.mxu0 0.0
    %2877 = vmatpush1.msra.mxu0 0.0
    %2878 = vmatprep.subr.mxu0 0.0
    %2879 = vmatpush1.msra.mxu0 0.0
    %2880 = vmatprep.subr.mxu0 0.0
    %2881 = vmatpush1.msra.mxu0 0.0
    %2882 = vmatprep.subr.mxu0 0.0
    %2883 = vmatpush1.msra.mxu0 0.0
    %2884 = vmatprep.subr.mxu0 0.0
    %2885 = vmatpush1.msra.mxu0 0.0
    %2886 = vmatprep.subr.mxu0 0.0
    %2887 = vmatpush1.msra.mxu0 0.0
    %2888 = vmatprep.subr.mxu0 0.0
    %2889 = vmatpush1.msra.mxu0 0.0
    %2890 = vmatprep.subr.mxu0 0.0
    %2891 = vmatpush1.msra.mxu0 0.0
    %2892 = vmatprep.subr.mxu0 0.0
    %2893 = vmatpush1.msra.mxu0 0.0
    %2894 = vmatprep.subr.mxu0 0.0
    %2895 = vmatpush1.msra.mxu0 0.0
    %2896 = vmatprep.subr.mxu0 0.0
    %2897 = vmatpush1.msra.mxu0 0.0
    %2898 = vmatprep.subr.mxu0 0.0
    %2899 = vmatpush1.msra.mxu0 0.0
    %2900 = vmatprep.subr.mxu0 0.0
    %2901 = vmatpush1.msra.mxu0 0.0
    %2902 = vmatprep.subr.mxu0 0.0
    %2903 = vmatpush1.msra.mxu0 0.0
    %2904 = vmatprep.subr.mxu0 0.0
    %2905 = vmatpush1.msra.mxu0 0.0
    %2906 = vmatprep.subr.mxu0 0.0
    %2907 = vmatpush1.msra.mxu0 0.0
    %2908 = vmatprep.subr.mxu0 0.0
    %2909 = vmatpush1.msra.mxu0 0.0
    %2910 = vmatprep.mubr.f32.mxu0 0.0
    %2911 = vmatmul.mubr.f32.gmra.mrb[0].mxu0 %v2844
    %v2912 = vpop.f32.mrb[0].mxu0
    %v2913 = vadd.f32 %v2840, %v2912
    %v2914 = vpop.f32.mrb[0].mxu0
    %2915 = vdwg.mxu0
    %2916 = vrot.lane.b32.xlu0 %v2327, 112
    %v2917 = vpop.permute.xlu0 %2916
    %2918 = vrot.lane.b32.xlu0 %v2419, 112
    %v2919 = vpop.permute.xlu0 %2918
    %v2920 = vsel %vm263, %v2917, 0
    %v2922 = vsel %vm263, %v2919, 0
    %2924 = vmatprep.subr.mxu0 0.0
    %2925 = vmatpush1.xpose.msra.mxu0 %v2922
    %2926 = vmatprep.subr.mxu0 0.0
    %2927 = vmatpush1.xpose.msra.mxu0 0.0
    %2928 = vmatprep.subr.mxu0 0.0
    %2929 = vmatpush1.xpose.msra.mxu0 0.0
    %2930 = vmatprep.subr.mxu0 0.0
    %2931 = vmatpush1.xpose.msra.mxu0 0.0
    %2932 = vmatprep.subr.mxu0 0.0
    %2933 = vmatpush1.xpose.msra.mxu0 0.0
    %2934 = vmatprep.subr.mxu0 0.0
    %2935 = vmatpush1.xpose.msra.mxu0 0.0
    %2936 = vmatprep.subr.mxu0 0.0
    %2937 = vmatpush1.xpose.msra.mxu0 0.0
    %2938 = vmatprep.subr.mxu0 0.0
    %2939 = vmatpush1.xpose.msra.mxu0 0.0
    %2940 = vmatprep.subr.mxu0 0.0
    %2941 = vmatpush1.xpose.msra.mxu0 0.0
    %2942 = vmatprep.subr.mxu0 0.0
    %2943 = vmatpush1.xpose.msra.mxu0 0.0
    %2944 = vmatprep.subr.mxu0 0.0
    %2945 = vmatpush1.xpose.msra.mxu0 0.0
    %2946 = vmatprep.subr.mxu0 0.0
    %2947 = vmatpush1.xpose.msra.mxu0 0.0
    %2948 = vmatprep.subr.mxu0 0.0
    %2949 = vmatpush1.xpose.msra.mxu0 0.0
    %2950 = vmatprep.subr.mxu0 0.0
    %2951 = vmatpush1.xpose.msra.mxu0 0.0
    %2952 = vmatprep.subr.mxu0 0.0
    %2953 = vmatpush1.xpose.msra.mxu0 0.0
    %2954 = vmatprep.subr.mxu0 0.0
    %2955 = vmatpush1.xpose.msra.mxu0 0.0
    %2956 = vmatprep.subr.mxu0 0.0
    %2957 = vmatpush1.xpose.msra.mxu0 0.0
    %2958 = vmatprep.subr.mxu0 0.0
    %2959 = vmatpush1.xpose.msra.mxu0 0.0
    %2960 = vmatprep.subr.mxu0 0.0
    %2961 = vmatpush1.xpose.msra.mxu0 0.0
    %2962 = vmatprep.subr.mxu0 0.0
    %2963 = vmatpush1.xpose.msra.mxu0 0.0
    %2964 = vmatprep.subr.mxu0 0.0
    %2965 = vmatpush1.xpose.msra.mxu0 0.0
    %2966 = vmatprep.subr.mxu0 0.0
    %2967 = vmatpush1.xpose.msra.mxu0 0.0
    %2968 = vmatprep.subr.mxu0 0.0
    %2969 = vmatpush1.xpose.msra.mxu0 0.0
    %2970 = vmatprep.subr.mxu0 0.0
    %2971 = vmatpush1.xpose.msra.mxu0 0.0
    %2972 = vmatprep.subr.mxu0 0.0
    %2973 = vmatpush1.xpose.msra.mxu0 0.0
    %2974 = vmatprep.subr.mxu0 0.0
    %2975 = vmatpush1.xpose.msra.mxu0 0.0
    %2976 = vmatprep.subr.mxu0 0.0
    %2977 = vmatpush1.xpose.msra.mxu0 0.0
    %2978 = vmatprep.subr.mxu0 0.0
    %2979 = vmatpush1.xpose.msra.mxu0 0.0
    %2980 = vmatprep.subr.mxu0 0.0
    %2981 = vmatpush1.xpose.msra.mxu0 0.0
    %2982 = vmatprep.subr.mxu0 0.0
    %2983 = vmatpush1.xpose.msra.mxu0 0.0
    %2984 = vmatprep.subr.mxu0 0.0
    %2985 = vmatpush1.xpose.msra.mxu0 0.0
    %2986 = vmatprep.subr.mxu0 0.0
    %2987 = vmatpush1.xpose.msra.mxu0 0.0
    %2988 = vmatprep.mubr.f32.mxu0 0.0
    %2989 = vmatmul.mubr.f32.gmra.mrb[0].mxu0 %v2920
    %v2990 = vpop.f32.mrb[0].mxu0
    %v2991 = vadd.f32 0.0, %v2990
    %v2992 = vpop.f32.mrb[0].mxu0
    %2993 = vdwg.mxu0
    %v2994 = vmul.f32 %v2991, 0.35355338
    %v2995 = vadd.f32 %v2994, %v2508
    %v2996 = vsel %vm263, %v2995, -inf
    %2997 = vmax.xlane.f32.xlu0 %v2996
    %v2998 = vpop.xlane.xlu0 %2997
    %v2999 = vsub.f32 %v2995, %v2998
    %v3000 = vmul.f32 %v2999, 1.442695
    %v3001 = vpow.pop %v3000
    %v3002 = vsel %vm263, %v3001, 0.0
    %3003 = vadd.xlane.f32.xlu0 %v3002
    %v3004 = vpop.xlane.xlu0 %3003
    %v3005 = vrcp.pop %v3004
    %v3006 = vmul.f32 %v3001, %v3005
    %s3007 = scalar_lea.vmem [#allocation12], 16
    %3008 = vst.msk [vmem:[%s3007] sm:$0xff] %vm263, %v3006
    %3009 = vrot.lane.b32.xlu0 %v2419, 80
    %v3010 = vpop.permute.xlu0 %3009
    %v3013 = vsel %vm263, %v3006, 0
    %3015 = vmatprep.subr.mxu0 0.0
    %3016 = vmatpush1.msra.mxu0 %v3010
    %3017 = vmatprep.subr.mxu0 0.0
    %3018 = vmatpush1.msra.mxu0 0.0
    %3019 = vmatprep.subr.mxu0 0.0
    %3020 = vmatpush1.msra.mxu0 0.0
    %3021 = vmatprep.subr.mxu0 0.0
    %3022 = vmatpush1.msra.mxu0 0.0
    %3023 = vmatprep.subr.mxu0 0.0
    %3024 = vmatpush1.msra.mxu0 0.0
    %3025 = vmatprep.subr.mxu0 0.0
    %3026 = vmatpush1.msra.mxu0 0.0
    %3027 = vmatprep.subr.mxu0 0.0
    %3028 = vmatpush1.msra.mxu0 0.0
    %3029 = vmatprep.subr.mxu0 0.0
    %3030 = vmatpush1.msra.mxu0 0.0
    %3031 = vmatprep.subr.mxu0 0.0
    %3032 = vmatpush1.msra.mxu0 0.0
    %3033 = vmatprep.subr.mxu0 0.0
    %3034 = vmatpush1.msra.mxu0 0.0
    %3035 = vmatprep.subr.mxu0 0.0
    %3036 = vmatpush1.msra.mxu0 0.0
    %3037 = vmatprep.subr.mxu0 0.0
    %3038 = vmatpush1.msra.mxu0 0.0
    %3039 = vmatprep.subr.mxu0 0.0
    %3040 = vmatpush1.msra.mxu0 0.0
    %3041 = vmatprep.subr.mxu0 0.0
    %3042 = vmatpush1.msra.mxu0 0.0
    %3043 = vmatprep.subr.mxu0 0.0
    %3044 = vmatpush1.msra.mxu0 0.0
    %3045 = vmatprep.subr.mxu0 0.0
    %3046 = vmatpush1.msra.mxu0 0.0
    %3047 = vmatprep.subr.mxu0 0.0
    %3048 = vmatpush1.msra.mxu0 0.0
    %3049 = vmatprep.subr.mxu0 0.0
    %3050 = vmatpush1.msra.mxu0 0.0
    %3051 = vmatprep.subr.mxu0 0.0
    %3052 = vmatpush1.msra.mxu0 0.0
    %3053 = vmatprep.subr.mxu0 0.0
    %3054 = vmatpush1.msra.mxu0 0.0
    %3055 = vmatprep.subr.mxu0 0.0
    %3056 = vmatpush1.msra.mxu0 0.0
    %3057 = vmatprep.subr.mxu0 0.0
    %3058 = vmatpush1.msra.mxu0 0.0
    %3059 = vmatprep.subr.mxu0 0.0
    %3060 = vmatpush1.msra.mxu0 0.0
    %3061 = vmatprep.subr.mxu0 0.0
    %3062 = vmatpush1.msra.mxu0 0.0
    %3063 = vmatprep.subr.mxu0 0.0
    %3064 = vmatpush1.msra.mxu0 0.0
    %3065 = vmatprep.subr.mxu0 0.0
    %3066 = vmatpush1.msra.mxu0 0.0
    %3067 = vmatprep.subr.mxu0 0.0
    %3068 = vmatpush1.msra.mxu0 0.0
    %3069 = vmatprep.subr.mxu0 0.0
    %3070 = vmatpush1.msra.mxu0 0.0
    %3071 = vmatprep.subr.mxu0 0.0
    %3072 = vmatpush1.msra.mxu0 0.0
    %3073 = vmatprep.subr.mxu0 0.0
    %3074 = vmatpush1.msra.mxu0 0.0
    %3075 = vmatprep.subr.mxu0 0.0
    %3076 = vmatpush1.msra.mxu0 0.0
    %3077 = vmatprep.subr.mxu0 0.0
    %3078 = vmatpush1.msra.mxu0 0.0
    %3079 = vmatprep.mubr.f32.mxu0 0.0
    %3080 = vmatmul.mubr.f32.gmra.mrb[0].mxu0 %v3013
    %v3081 = vpop.f32.mrb[0].mxu0
    %v3082 = vadd.f32 0.0, %v3081
    %v3083 = vpop.f32.mrb[0].mxu0
    %3084 = vdwg.mxu0
    %v3085 = vld [vmem:[#allocation8 + $0x10] sm:$0xff]
    %v3087 = vsel %vm263, %v3082, 0
    %3089 = vmatprep.subr.mxu0 0.0
    %3090 = vmatpush1.msra.mxu0 %v3085
    %3091 = vmatprep.subr.mxu0 0.0
    %3092 = vmatpush1.msra.mxu0 0.0
    %3093 = vmatprep.subr.mxu0 0.0
    %3094 = vmatpush1.msra.mxu0 0.0
    %3095 = vmatprep.subr.mxu0 0.0
    %3096 = vmatpush1.msra.mxu0 0.0
    %3097 = vmatprep.subr.mxu0 0.0
    %3098 = vmatpush1.msra.mxu0 0.0
    %3099 = vmatprep.subr.mxu0 0.0
    %3100 = vmatpush1.msra.mxu0 0.0
    %3101 = vmatprep.subr.mxu0 0.0
    %3102 = vmatpush1.msra.mxu0 0.0
    %3103 = vmatprep.subr.mxu0 0.0
    %3104 = vmatpush1.msra.mxu0 0.0
    %3105 = vmatprep.subr.mxu0 0.0
    %3106 = vmatpush1.msra.mxu0 0.0
    %3107 = vmatprep.subr.mxu0 0.0
    %3108 = vmatpush1.msra.mxu0 0.0
    %3109 = vmatprep.subr.mxu0 0.0
    %3110 = vmatpush1.msra.mxu0 0.0
    %3111 = vmatprep.subr.mxu0 0.0
    %3112 = vmatpush1.msra.mxu0 0.0
    %3113 = vmatprep.subr.mxu0 0.0
    %3114 = vmatpush1.msra.mxu0 0.0
    %3115 = vmatprep.subr.mxu0 0.0
    %3116 = vmatpush1.msra.mxu0 0.0
    %3117 = vmatprep.subr.mxu0 0.0
    %3118 = vmatpush1.msra.mxu0 0.0
    %3119 = vmatprep.subr.mxu0 0.0
    %3120 = vmatpush1.msra.mxu0 0.0
    %3121 = vmatprep.subr.mxu0 0.0
    %3122 = vmatpush1.msra.mxu0 0.0
    %3123 = vmatprep.subr.mxu0 0.0
    %3124 = vmatpush1.msra.mxu0 0.0
    %3125 = vmatprep.subr.mxu0 0.0
    %3126 = vmatpush1.msra.mxu0 0.0
    %3127 = vmatprep.subr.mxu0 0.0
    %3128 = vmatpush1.msra.mxu0 0.0
    %3129 = vmatprep.subr.mxu0 0.0
    %3130 = vmatpush1.msra.mxu0 0.0
    %3131 = vmatprep.subr.mxu0 0.0
    %3132 = vmatpush1.msra.mxu0 0.0
    %3133 = vmatprep.subr.mxu0 0.0
    %3134 = vmatpush1.msra.mxu0 0.0
    %3135 = vmatprep.subr.mxu0 0.0
    %3136 = vmatpush1.msra.mxu0 0.0
    %3137 = vmatprep.subr.mxu0 0.0
    %3138 = vmatpush1.msra.mxu0 0.0
    %3139 = vmatprep.subr.mxu0 0.0
    %3140 = vmatpush1.msra.mxu0 0.0
    %3141 = vmatprep.subr.mxu0 0.0
    %3142 = vmatpush1.msra.mxu0 0.0
    %3143 = vmatprep.subr.mxu0 0.0
    %3144 = vmatpush1.msra.mxu0 0.0
    %3145 = vmatprep.subr.mxu0 0.0
    %3146 = vmatpush1.msra.mxu0 0.0
    %3147 = vmatprep.subr.mxu0 0.0
    %3148 = vmatpush1.msra.mxu0 0.0
    %3149 = vmatprep.subr.mxu0 0.0
    %3150 = vmatpush1.msra.mxu0 0.0
    %3151 = vmatprep.subr.mxu0 0.0
    %3152 = vmatpush1.msra.mxu0 0.0
    %3153 = vmatprep.mubr.f32.mxu0 0.0
    %3154 = vmatmul.mubr.f32.gmra.mrb[0].mxu0 %v3087
    %v3155 = vpop.f32.mrb[0].mxu0
    %v3156 = vadd.f32 0.0, %v3155
    %v3157 = vpop.f32.mrb[0].mxu0
    %3158 = vdwg.mxu0
    %v3159 = vadd.f32 %v2913, %v3156
    %3160 = vrot.lane.b32.xlu0 %v2327, 104
    %v3161 = vpop.permute.xlu0 %3160
    %3162 = vrot.lane.b32.xlu0 %v2419, 104
    %v3163 = vpop.permute.xlu0 %3162
    %v3164 = vsel %vm263, %v3161, 0
    %v3166 = vsel %vm263, %v3163, 0
    %3168 = vmatprep.subr.mxu0 0.0
    %3169 = vmatpush1.xpose.msra.mxu0 %v3166
    %3170 = vmatprep.subr.mxu0 0.0
    %3171 = vmatpush1.xpose.msra.mxu0 0.0
    %3172 = vmatprep.subr.mxu0 0.0
    %3173 = vmatpush1.xpose.msra.mxu0 0.0
    %3174 = vmatprep.subr.mxu0 0.0
    %3175 = vmatpush1.xpose.msra.mxu0 0.0
    %3176 = vmatprep.subr.mxu0 0.0
    %3177 = vmatpush1.xpose.msra.mxu0 0.0
    %3178 = vmatprep.subr.mxu0 0.0
    %3179 = vmatpush1.xpose.msra.mxu0 0.0
    %3180 = vmatprep.subr.mxu0 0.0
    %3181 = vmatpush1.xpose.msra.mxu0 0.0
    %3182 = vmatprep.subr.mxu0 0.0
    %3183 = vmatpush1.xpose.msra.mxu0 0.0
    %3184 = vmatprep.subr.mxu0 0.0
    %3185 = vmatpush1.xpose.msra.mxu0 0.0
    %3186 = vmatprep.subr.mxu0 0.0
    %3187 = vmatpush1.xpose.msra.mxu0 0.0
    %3188 = vmatprep.subr.mxu0 0.0
    %3189 = vmatpush1.xpose.msra.mxu0 0.0
    %3190 = vmatprep.subr.mxu0 0.0
    %3191 = vmatpush1.xpose.msra.mxu0 0.0
    %3192 = vmatprep.subr.mxu0 0.0
    %3193 = vmatpush1.xpose.msra.mxu0 0.0
    %3194 = vmatprep.subr.mxu0 0.0
    %3195 = vmatpush1.xpose.msra.mxu0 0.0
    %3196 = vmatprep.subr.mxu0 0.0
    %3197 = vmatpush1.xpose.msra.mxu0 0.0
    %3198 = vmatprep.subr.mxu0 0.0
    %3199 = vmatpush1.xpose.msra.mxu0 0.0
    %3200 = vmatprep.subr.mxu0 0.0
    %3201 = vmatpush1.xpose.msra.mxu0 0.0
    %3202 = vmatprep.subr.mxu0 0.0
    %3203 = vmatpush1.xpose.msra.mxu0 0.0
    %3204 = vmatprep.subr.mxu0 0.0
    %3205 = vmatpush1.xpose.msra.mxu0 0.0
    %3206 = vmatprep.subr.mxu0 0.0
    %3207 = vmatpush1.xpose.msra.mxu0 0.0
    %3208 = vmatprep.subr.mxu0 0.0
    %3209 = vmatpush1.xpose.msra.mxu0 0.0
    %3210 = vmatprep.subr.mxu0 0.0
    %3211 = vmatpush1.xpose.msra.mxu0 0.0
    %3212 = vmatprep.subr.mxu0 0.0
    %3213 = vmatpush1.xpose.msra.mxu0 0.0
    %3214 = vmatprep.subr.mxu0 0.0
    %3215 = vmatpush1.xpose.msra.mxu0 0.0
    %3216 = vmatprep.subr.mxu0 0.0
    %3217 = vmatpush1.xpose.msra.mxu0 0.0
    %3218 = vmatprep.subr.mxu0 0.0
    %3219 = vmatpush1.xpose.msra.mxu0 0.0
    %3220 = vmatprep.subr.mxu0 0.0
    %3221 = vmatpush1.xpose.msra.mxu0 0.0
    %3222 = vmatprep.subr.mxu0 0.0
    %3223 = vmatpush1.xpose.msra.mxu0 0.0
    %3224 = vmatprep.subr.mxu0 0.0
    %3225 = vmatpush1.xpose.msra.mxu0 0.0
    %3226 = vmatprep.subr.mxu0 0.0
    %3227 = vmatpush1.xpose.msra.mxu0 0.0
    %3228 = vmatprep.subr.mxu0 0.0
    %3229 = vmatpush1.xpose.msra.mxu0 0.0
    %3230 = vmatprep.subr.mxu0 0.0
    %3231 = vmatpush1.xpose.msra.mxu0 0.0
    %3232 = vmatprep.mubr.f32.mxu0 0.0
    %3233 = vmatmul.mubr.f32.gmra.mrb[0].mxu0 %v3164
    %v3234 = vpop.f32.mrb[0].mxu0
    %v3235 = vadd.f32 0.0, %v3234
    %v3236 = vpop.f32.mrb[0].mxu0
    %3237 = vdwg.mxu0
    %v3238 = vmul.f32 %v3235, 0.35355338
    %v3239 = vadd.f32 %v3238, %v2508
    %v3240 = vsel %vm263, %v3239, -inf
    %3241 = vmax.xlane.f32.xlu0 %v3240
    %v3242 = vpop.xlane.xlu0 %3241
    %v3243 = vsub.f32 %v3239, %v3242
    %v3244 = vmul.f32 %v3243, 1.442695
    %v3245 = vpow.pop %v3244
    %v3246 = vsel %vm263, %v3245, 0.0
    %3247 = vadd.xlane.f32.xlu0 %v3246
    %v3248 = vpop.xlane.xlu0 %3247
    %v3249 = vrcp.pop %v3248
    %v3250 = vmul.f32 %v3245, %v3249
    %s3251 = scalar_lea.vmem [#allocation12], 24
    %3252 = vst.msk [vmem:[%s3251] sm:$0xff] %vm263, %v3250
    %3253 = vrot.lane.b32.xlu0 %v2419, 72
    %v3254 = vpop.permute.xlu0 %3253
    %v3257 = vsel %vm263, %v3250, 0
    %3259 = vmatprep.subr.mxu0 0.0
    %3260 = vmatpush1.msra.mxu0 %v3254
    %3261 = vmatprep.subr.mxu0 0.0
    %3262 = vmatpush1.msra.mxu0 0.0
    %3263 = vmatprep.subr.mxu0 0.0
    %3264 = vmatpush1.msra.mxu0 0.0
    %3265 = vmatprep.subr.mxu0 0.0
    %3266 = vmatpush1.msra.mxu0 0.0
    %3267 = vmatprep.subr.mxu0 0.0
    %3268 = vmatpush1.msra.mxu0 0.0
    %3269 = vmatprep.subr.mxu0 0.0
    %3270 = vmatpush1.msra.mxu0 0.0
    %3271 = vmatprep.subr.mxu0 0.0
    %3272 = vmatpush1.msra.mxu0 0.0
    %3273 = vmatprep.subr.mxu0 0.0
    %3274 = vmatpush1.msra.mxu0 0.0
    %3275 = vmatprep.subr.mxu0 0.0
    %3276 = vmatpush1.msra.mxu0 0.0
    %3277 = vmatprep.subr.mxu0 0.0
    %3278 = vmatpush1.msra.mxu0 0.0
    %3279 = vmatprep.subr.mxu0 0.0
    %3280 = vmatpush1.msra.mxu0 0.0
    %3281 = vmatprep.subr.mxu0 0.0
    %3282 = vmatpush1.msra.mxu0 0.0
    %3283 = vmatprep.subr.mxu0 0.0
    %3284 = vmatpush1.msra.mxu0 0.0
    %3285 = vmatprep.subr.mxu0 0.0
    %3286 = vmatpush1.msra.mxu0 0.0
    %3287 = vmatprep.subr.mxu0 0.0
    %3288 = vmatpush1.msra.mxu0 0.0
    %3289 = vmatprep.subr.mxu0 0.0
    %3290 = vmatpush1.msra.mxu0 0.0
    %3291 = vmatprep.subr.mxu0 0.0
    %3292 = vmatpush1.msra.mxu0 0.0
    %3293 = vmatprep.subr.mxu0 0.0
    %3294 = vmatpush1.msra.mxu0 0.0
    %3295 = vmatprep.subr.mxu0 0.0
    %3296 = vmatpush1.msra.mxu0 0.0
    %3297 = vmatprep.subr.mxu0 0.0
    %3298 = vmatpush1.msra.mxu0 0.0
    %3299 = vmatprep.subr.mxu0 0.0
    %3300 = vmatpush1.msra.mxu0 0.0
    %3301 = vmatprep.subr.mxu0 0.0
    %3302 = vmatpush1.msra.mxu0 0.0
    %3303 = vmatprep.subr.mxu0 0.0
    %3304 = vmatpush1.msra.mxu0 0.0
    %3305 = vmatprep.subr.mxu0 0.0
    %3306 = vmatpush1.msra.mxu0 0.0
    %3307 = vmatprep.subr.mxu0 0.0
    %3308 = vmatpush1.msra.mxu0 0.0
    %3309 = vmatprep.subr.mxu0 0.0
    %3310 = vmatpush1.msra.mxu0 0.0
    %3311 = vmatprep.subr.mxu0 0.0
    %3312 = vmatpush1.msra.mxu0 0.0
    %3313 = vmatprep.subr.mxu0 0.0
    %3314 = vmatpush1.msra.mxu0 0.0
    %3315 = vmatprep.subr.mxu0 0.0
    %3316 = vmatpush1.msra.mxu0 0.0
    %3317 = vmatprep.subr.mxu0 0.0
    %3318 = vmatpush1.msra.mxu0 0.0
    %3319 = vmatprep.subr.mxu0 0.0
    %3320 = vmatpush1.msra.mxu0 0.0
    %3321 = vmatprep.subr.mxu0 0.0
    %3322 = vmatpush1.msra.mxu0 0.0
    %3323 = vmatprep.mubr.f32.mxu0 0.0
    %3324 = vmatmul.mubr.f32.gmra.mrb[0].mxu0 %v3257
    %v3325 = vpop.f32.mrb[0].mxu0
    %v3326 = vadd.f32 0.0, %v3325
    %v3327 = vpop.f32.mrb[0].mxu0
    %3328 = vdwg.mxu0
    %v3329 = vld [vmem:[#allocation8 + $0x18] sm:$0xff]
    %v3331 = vsel %vm263, %v3326, 0
    %3333 = vmatprep.subr.mxu0 0.0
    %3334 = vmatpush1.msra.mxu0 %v3329
    %3335 = vmatprep.subr.mxu0 0.0
    %3336 = vmatpush1.msra.mxu0 0.0
    %3337 = vmatprep.subr.mxu0 0.0
    %3338 = vmatpush1.msra.mxu0 0.0
    %3339 = vmatprep.subr.mxu0 0.0
    %3340 = vmatpush1.msra.mxu0 0.0
    %3341 = vmatprep.subr.mxu0 0.0
    %3342 = vmatpush1.msra.mxu0 0.0
    %3343 = vmatprep.subr.mxu0 0.0
    %3344 = vmatpush1.msra.mxu0 0.0
    %3345 = vmatprep.subr.mxu0 0.0
    %3346 = vmatpush1.msra.mxu0 0.0
    %3347 = vmatprep.subr.mxu0 0.0
    %3348 = vmatpush1.msra.mxu0 0.0
    %3349 = vmatprep.subr.mxu0 0.0
    %3350 = vmatpush1.msra.mxu0 0.0
    %3351 = vmatprep.subr.mxu0 0.0
    %3352 = vmatpush1.msra.mxu0 0.0
    %3353 = vmatprep.subr.mxu0 0.0
    %3354 = vmatpush1.msra.mxu0 0.0
    %3355 = vmatprep.subr.mxu0 0.0
    %3356 = vmatpush1.msra.mxu0 0.0
    %3357 = vmatprep.subr.mxu0 0.0
    %3358 = vmatpush1.msra.mxu0 0.0
    %3359 = vmatprep.subr.mxu0 0.0
    %3360 = vmatpush1.msra.mxu0 0.0
    %3361 = vmatprep.subr.mxu0 0.0
    %3362 = vmatpush1.msra.mxu0 0.0
    %3363 = vmatprep.subr.mxu0 0.0
    %3364 = vmatpush1.msra.mxu0 0.0
    %3365 = vmatprep.subr.mxu0 0.0
    %3366 = vmatpush1.msra.mxu0 0.0
    %3367 = vmatprep.subr.mxu0 0.0
    %3368 = vmatpush1.msra.mxu0 0.0
    %3369 = vmatprep.subr.mxu0 0.0
    %3370 = vmatpush1.msra.mxu0 0.0
    %3371 = vmatprep.subr.mxu0 0.0
    %3372 = vmatpush1.msra.mxu0 0.0
    %3373 = vmatprep.subr.mxu0 0.0
    %3374 = vmatpush1.msra.mxu0 0.0
    %3375 = vmatprep.subr.mxu0 0.0
    %3376 = vmatpush1.msra.mxu0 0.0
    %3377 = vmatprep.subr.mxu0 0.0
    %3378 = vmatpush1.msra.mxu0 0.0
    %3379 = vmatprep.subr.mxu0 0.0
    %3380 = vmatpush1.msra.mxu0 0.0
    %3381 = vmatprep.subr.mxu0 0.0
    %3382 = vmatpush1.msra.mxu0 0.0
    %3383 = vmatprep.subr.mxu0 0.0
    %3384 = vmatpush1.msra.mxu0 0.0
    %3385 = vmatprep.subr.mxu0 0.0
    %3386 = vmatpush1.msra.mxu0 0.0
    %3387 = vmatprep.subr.mxu0 0.0
    %3388 = vmatpush1.msra.mxu0 0.0
    %3389 = vmatprep.subr.mxu0 0.0
    %3390 = vmatpush1.msra.mxu0 0.0
    %3391 = vmatprep.subr.mxu0 0.0
    %3392 = vmatpush1.msra.mxu0 0.0
    %3393 = vmatprep.subr.mxu0 0.0
    %3394 = vmatpush1.msra.mxu0 0.0
    %3395 = vmatprep.subr.mxu0 0.0
    %3396 = vmatpush1.msra.mxu0 0.0
    %3397 = vmatprep.mubr.f32.mxu0 0.0
    %3398 = vmatmul.mubr.f32.gmra.mrb[0].mxu0 %v3331
    %v3399 = vpop.f32.mrb[0].mxu0
    %v3400 = vadd.f32 0.0, %v3399
    %v3401 = vpop.f32.mrb[0].mxu0
    %3402 = vdwg.mxu0
    %v3403 = vadd.f32 %v3159, %v3400
    %v3405 = vsel %vm263, %v2332, 0
    %v3408 = vsel %vm263, %v2424, 0
    %3410 = vmatprep.subr.mxu0 0.0
    %3411 = vmatpush1.xpose.msra.mxu0 %v3408
    %3412 = vmatprep.subr.mxu0 0.0
    %3413 = vmatpush1.xpose.msra.mxu0 0.0
    %3414 = vmatprep.subr.mxu0 0.0
    %3415 = vmatpush1.xpose.msra.mxu0 0.0
    %3416 = vmatprep.subr.mxu0 0.0
    %3417 = vmatpush1.xpose.msra.mxu0 0.0
    %3418 = vmatprep.subr.mxu0 0.0
    %3419 = vmatpush1.xpose.msra.mxu0 0.0
    %3420 = vmatprep.subr.mxu0 0.0
    %3421 = vmatpush1.xpose.msra.mxu0 0.0
    %3422 = vmatprep.subr.mxu0 0.0
    %3423 = vmatpush1.xpose.msra.mxu0 0.0
    %3424 = vmatprep.subr.mxu0 0.0
    %3425 = vmatpush1.xpose.msra.mxu0 0.0
    %3426 = vmatprep.subr.mxu0 0.0
    %3427 = vmatpush1.xpose.msra.mxu0 0.0
    %3428 = vmatprep.subr.mxu0 0.0
    %3429 = vmatpush1.xpose.msra.mxu0 0.0
    %3430 = vmatprep.subr.mxu0 0.0
    %3431 = vmatpush1.xpose.msra.mxu0 0.0
    %3432 = vmatprep.subr.mxu0 0.0
    %3433 = vmatpush1.xpose.msra.mxu0 0.0
    %3434 = vmatprep.subr.mxu0 0.0
    %3435 = vmatpush1.xpose.msra.mxu0 0.0
    %3436 = vmatprep.subr.mxu0 0.0
    %3437 = vmatpush1.xpose.msra.mxu0 0.0
    %3438 = vmatprep.subr.mxu0 0.0
    %3439 = vmatpush1.xpose.msra.mxu0 0.0
    %3440 = vmatprep.subr.mxu0 0.0
    %3441 = vmatpush1.xpose.msra.mxu0 0.0
    %3442 = vmatprep.subr.mxu0 0.0
    %3443 = vmatpush1.xpose.msra.mxu0 0.0
    %3444 = vmatprep.subr.mxu0 0.0
    %3445 = vmatpush1.xpose.msra.mxu0 0.0
    %3446 = vmatprep.subr.mxu0 0.0
    %3447 = vmatpush1.xpose.msra.mxu0 0.0
    %3448 = vmatprep.subr.mxu0 0.0
    %3449 = vmatpush1.xpose.msra.mxu0 0.0
    %3450 = vmatprep.subr.mxu0 0.0
    %3451 = vmatpush1.xpose.msra.mxu0 0.0
    %3452 = vmatprep.subr.mxu0 0.0
    %3453 = vmatpush1.xpose.msra.mxu0 0.0
    %3454 = vmatprep.subr.mxu0 0.0
    %3455 = vmatpush1.xpose.msra.mxu0 0.0
    %3456 = vmatprep.subr.mxu0 0.0
    %3457 = vmatpush1.xpose.msra.mxu0 0.0
    %3458 = vmatprep.subr.mxu0 0.0
    %3459 = vmatpush1.xpose.msra.mxu0 0.0
    %3460 = vmatprep.subr.mxu0 0.0
    %3461 = vmatpush1.xpose.msra.mxu0 0.0
    %3462 = vmatprep.subr.mxu0 0.0
    %3463 = vmatpush1.xpose.msra.mxu0 0.0
    %3464 = vmatprep.subr.mxu0 0.0
    %3465 = vmatpush1.xpose.msra.mxu0 0.0
    %3466 = vmatprep.subr.mxu0 0.0
    %3467 = vmatpush1.xpose.msra.mxu0 0.0
    %3468 = vmatprep.subr.mxu0 0.0
    %3469 = vmatpush1.xpose.msra.mxu0 0.0
    %3470 = vmatprep.subr.mxu0 0.0
    %3471 = vmatpush1.xpose.msra.mxu0 0.0
    %3472 = vmatprep.subr.mxu0 0.0
    %3473 = vmatpush1.xpose.msra.mxu0 0.0
    %3474 = vmatprep.mubr.f32.mxu0 0.0
    %3475 = vmatmul.mubr.f32.gmra.mrb[0].mxu0 %v3405
    %v3476 = vpop.f32.mrb[0].mxu0
    %v3477 = vadd.f32 0.0, %v3476
    %v3478 = vpop.f32.mrb[0].mxu0
    %3479 = vdwg.mxu0
    %v3480 = vmul.f32 %v3477, 0.35355338
    %v3482 = vlaneseq
    %v3483 = vshrl.u32 %v3482, 7
    %v3484 = vsub.s32 0, %v3483
    %v3485 = vrot.slane %v166, %v3484
    %v3487 = vadd.f32 %v3480, %v3485
    %v3488 = vsel %vm263, %v3487, -inf
    %3489 = vmax.xlane.f32.xlu0 %v3488
    %v3490 = vpop.xlane.xlu0 %3489
    %v3491 = vsub.f32 %v3487, %v3490
    %v3492 = vmul.f32 %v3491, 1.442695
    %v3493 = vpow.pop %v3492
    %v3494 = vsel %vm263, %v3493, 0.0
    %3495 = vadd.xlane.f32.xlu0 %v3494
    %v3496 = vpop.xlane.xlu0 %3495
    %v3497 = vrcp.pop %v3496
    %v3498 = vmul.f32 %v3493, %v3497
    %s3499 = scalar_lea.vmem [#allocation12], 32
    %3500 = vst.msk [vmem:[%s3499] sm:$0xff] %vm263, %v3498
    %3501 = vrot.lane.b32.xlu0 %v2424, 96
    %v3502 = vpop.permute.xlu0 %3501
    %v3505 = vsel %vm263, %v3498, 0
    %3507 = vmatprep.subr.mxu0 0.0
    %3508 = vmatpush1.msra.mxu0 %v3502
    %3509 = vmatprep.subr.mxu0 0.0
    %3510 = vmatpush1.msra.mxu0 0.0
    %3511 = vmatprep.subr.mxu0 0.0
    %3512 = vmatpush1.msra.mxu0 0.0
    %3513 = vmatprep.subr.mxu0 0.0
    %3514 = vmatpush1.msra.mxu0 0.0
    %3515 = vmatprep.subr.mxu0 0.0
    %3516 = vmatpush1.msra.mxu0 0.0
    %3517 = vmatprep.subr.mxu0 0.0
    %3518 = vmatpush1.msra.mxu0 0.0
    %3519 = vmatprep.subr.mxu0 0.0
    %3520 = vmatpush1.msra.mxu0 0.0
    %3521 = vmatprep.subr.mxu0 0.0
    %3522 = vmatpush1.msra.mxu0 0.0
    %3523 = vmatprep.subr.mxu0 0.0
    %3524 = vmatpush1.msra.mxu0 0.0
    %3525 = vmatprep.subr.mxu0 0.0
    %3526 = vmatpush1.msra.mxu0 0.0
    %3527 = vmatprep.subr.mxu0 0.0
    %3528 = vmatpush1.msra.mxu0 0.0
    %3529 = vmatprep.subr.mxu0 0.0
    %3530 = vmatpush1.msra.mxu0 0.0
    %3531 = vmatprep.subr.mxu0 0.0
    %3532 = vmatpush1.msra.mxu0 0.0
    %3533 = vmatprep.subr.mxu0 0.0
    %3534 = vmatpush1.msra.mxu0 0.0
    %3535 = vmatprep.subr.mxu0 0.0
    %3536 = vmatpush1.msra.mxu0 0.0
    %3537 = vmatprep.subr.mxu0 0.0
    %3538 = vmatpush1.msra.mxu0 0.0
    %3539 = vmatprep.subr.mxu0 0.0
    %3540 = vmatpush1.msra.mxu0 0.0
    %3541 = vmatprep.subr.mxu0 0.0
    %3542 = vmatpush1.msra.mxu0 0.0
    %3543 = vmatprep.subr.mxu0 0.0
    %3544 = vmatpush1.msra.mxu0 0.0
    %3545 = vmatprep.subr.mxu0 0.0
    %3546 = vmatpush1.msra.mxu0 0.0
    %3547 = vmatprep.subr.mxu0 0.0
    %3548 = vmatpush1.msra.mxu0 0.0
    %3549 = vmatprep.subr.mxu0 0.0
    %3550 = vmatpush1.msra.mxu0 0.0
    %3551 = vmatprep.subr.mxu0 0.0
    %3552 = vmatpush1.msra.mxu0 0.0
    %3553 = vmatprep.subr.mxu0 0.0
    %3554 = vmatpush1.msra.mxu0 0.0
    %3555 = vmatprep.subr.mxu0 0.0
    %3556 = vmatpush1.msra.mxu0 0.0
    %3557 = vmatprep.subr.mxu0 0.0
    %3558 = vmatpush1.msra.mxu0 0.0
    %3559 = vmatprep.subr.mxu0 0.0
    %3560 = vmatpush1.msra.mxu0 0.0
    %3561 = vmatprep.subr.mxu0 0.0
    %3562 = vmatpush1.msra.mxu0 0.0
    %3563 = vmatprep.subr.mxu0 0.0
    %3564 = vmatpush1.msra.mxu0 0.0
    %3565 = vmatprep.subr.mxu0 0.0
    %3566 = vmatpush1.msra.mxu0 0.0
    %3567 = vmatprep.subr.mxu0 0.0
    %3568 = vmatpush1.msra.mxu0 0.0
    %3569 = vmatprep.subr.mxu0 0.0
    %3570 = vmatpush1.msra.mxu0 0.0
    %3571 = vmatprep.mubr.f32.mxu0 0.0
    %3572 = vmatmul.mubr.f32.gmra.mrb[0].mxu0 %v3505
    %v3573 = vpop.f32.mrb[0].mxu0
    %v3574 = vadd.f32 0.0, %v3573
    %v3575 = vpop.f32.mrb[0].mxu0
    %3576 = vdwg.mxu0
    %v3577 = vld [vmem:[#allocation8] sm:$0xff]
    %3578 = vrot.lane.b32.xlu0 %v2332, 120
    %v3579 = vpop.permute.xlu0 %3578
    %3580 = vrot.lane.b32.xlu0 %v2424, 120
    %v3581 = vpop.permute.xlu0 %3580
    %v3582 = vsel %vm263, %v3579, 0
    %v3584 = vsel %vm263, %v3581, 0
    %3586 = vmatprep.subr.mxu0 0.0
    %3587 = vmatpush1.xpose.msra.mxu0 %v3584
    %3588 = vmatprep.subr.mxu0 0.0
    %3589 = vmatpush1.xpose.msra.mxu0 0.0
    %3590 = vmatprep.subr.mxu0 0.0
    %3591 = vmatpush1.xpose.msra.mxu0 0.0
    %3592 = vmatprep.subr.mxu0 0.0
    %3593 = vmatpush1.xpose.msra.mxu0 0.0
    %3594 = vmatprep.subr.mxu0 0.0
    %3595 = vmatpush1.xpose.msra.mxu0 0.0
    %3596 = vmatprep.subr.mxu0 0.0
    %3597 = vmatpush1.xpose.msra.mxu0 0.0
    %3598 = vmatprep.subr.mxu0 0.0
    %3599 = vmatpush1.xpose.msra.mxu0 0.0
    %3600 = vmatprep.subr.mxu0 0.0
    %3601 = vmatpush1.xpose.msra.mxu0 0.0
    %3602 = vmatprep.subr.mxu0 0.0
    %3603 = vmatpush1.xpose.msra.mxu0 0.0
    %3604 = vmatprep.subr.mxu0 0.0
    %3605 = vmatpush1.xpose.msra.mxu0 0.0
    %3606 = vmatprep.subr.mxu0 0.0
    %3607 = vmatpush1.xpose.msra.mxu0 0.0
    %3608 = vmatprep.subr.mxu0 0.0
    %3609 = vmatpush1.xpose.msra.mxu0 0.0
    %3610 = vmatprep.subr.mxu0 0.0
    %3611 = vmatpush1.xpose.msra.mxu0 0.0
    %3612 = vmatprep.subr.mxu0 0.0
    %3613 = vmatpush1.xpose.msra.mxu0 0.0
    %3614 = vmatprep.subr.mxu0 0.0
    %3615 = vmatpush1.xpose.msra.mxu0 0.0
    %3616 = vmatprep.subr.mxu0 0.0
    %3617 = vmatpush1.xpose.msra.mxu0 0.0
    %3618 = vmatprep.subr.mxu0 0.0
    %3619 = vmatpush1.xpose.msra.mxu0 0.0
    %3620 = vmatprep.subr.mxu0 0.0
    %3621 = vmatpush1.xpose.msra.mxu0 0.0
    %3622 = vmatprep.subr.mxu0 0.0
    %3623 = vmatpush1.xpose.msra.mxu0 0.0
    %3624 = vmatprep.subr.mxu0 0.0
    %3625 = vmatpush1.xpose.msra.mxu0 0.0
    %3626 = vmatprep.subr.mxu0 0.0
    %3627 = vmatpush1.xpose.msra.mxu0 0.0
    %3628 = vmatprep.subr.mxu0 0.0
    %3629 = vmatpush1.xpose.msra.mxu0 0.0
    %3630 = vmatprep.subr.mxu0 0.0
    %3631 = vmatpush1.xpose.msra.mxu0 0.0
    %3632 = vmatprep.subr.mxu0 0.0
    %3633 = vmatpush1.xpose.msra.mxu0 0.0
    %3634 = vmatprep.subr.mxu0 0.0
    %3635 = vmatpush1.xpose.msra.mxu0 0.0
    %3636 = vmatprep.subr.mxu0 0.0
    %3637 = vmatpush1.xpose.msra.mxu0 0.0
    %3638 = vmatprep.subr.mxu0 0.0
    %3639 = vmatpush1.xpose.msra.mxu0 0.0
    %3640 = vmatprep.subr.mxu0 0.0
    %3641 = vmatpush1.xpose.msra.mxu0 0.0
    %3642 = vmatprep.subr.mxu0 0.0
    %3643 = vmatpush1.xpose.msra.mxu0 0.0
    %3644 = vmatprep.subr.mxu0 0.0
    %3645 = vmatpush1.xpose.msra.mxu0 0.0
    %3646 = vmatprep.subr.mxu0 0.0
    %3647 = vmatpush1.xpose.msra.mxu0 0.0
    %3648 = vmatprep.subr.mxu0 0.0
    %3649 = vmatpush1.xpose.msra.mxu0 0.0
    %3650 = vmatprep.mubr.f32.mxu0 0.0
    %3651 = vmatmul.mubr.f32.gmra.mrb[0].mxu0 %v3582
    %v3652 = vpop.f32.mrb[0].mxu0
    %v3653 = vadd.f32 0.0, %v3652
    %v3654 = vpop.f32.mrb[0].mxu0
    %3655 = vdwg.mxu0
    %v3656 = vmul.f32 %v3653, 0.35355338
    %v3657 = vadd.f32 %v3656, %v3485
    %v3658 = vsel %vm263, %v3657, -inf
    %3659 = vmax.xlane.f32.xlu0 %v3658
    %v3660 = vpop.xlane.xlu0 %3659
    %v3661 = vsub.f32 %v3657, %v3660
    %v3662 = vmul.f32 %v3661, 1.442695
    %v3663 = vpow.pop %v3662
    %v3664 = vsel %vm263, %v3663, 0.0
    %3665 = vadd.xlane.f32.xlu0 %v3664
    %v3666 = vpop.xlane.xlu0 %3665
    %v3667 = vrcp.pop %v3666
    %v3668 = vmul.f32 %v3663, %v3667
    %s3669 = scalar_lea.vmem [#allocation12], 40
    %3670 = vst.msk [vmem:[%s3669] sm:$0xff] %vm263, %v3668
    %3671 = vrot.lane.b32.xlu0 %v2424, 88
    %v3672 = vpop.permute.xlu0 %3671
    %v3675 = vsel %vm263, %v3668, 0
    %3677 = vmatprep.subr.mxu0 0.0
    %3678 = vmatpush1.msra.mxu0 %v3672
    %3679 = vmatprep.subr.mxu0 0.0
    %3680 = vmatpush1.msra.mxu0 0.0
    %3681 = vmatprep.subr.mxu0 0.0
    %3682 = vmatpush1.msra.mxu0 0.0
    %3683 = vmatprep.subr.mxu0 0.0
    %3684 = vmatpush1.msra.mxu0 0.0
    %3685 = vmatprep.subr.mxu0 0.0
    %3686 = vmatpush1.msra.mxu0 0.0
    %3687 = vmatprep.subr.mxu0 0.0
    %3688 = vmatpush1.msra.mxu0 0.0
    %3689 = vmatprep.subr.mxu0 0.0
    %3690 = vmatpush1.msra.mxu0 0.0
    %3691 = vmatprep.subr.mxu0 0.0
    %3692 = vmatpush1.msra.mxu0 0.0
    %3693 = vmatprep.subr.mxu0 0.0
    %3694 = vmatpush1.msra.mxu0 0.0
    %3695 = vmatprep.subr.mxu0 0.0
    %3696 = vmatpush1.msra.mxu0 0.0
    %3697 = vmatprep.subr.mxu0 0.0
    %3698 = vmatpush1.msra.mxu0 0.0
    %3699 = vmatprep.subr.mxu0 0.0
    %3700 = vmatpush1.msra.mxu0 0.0
    %3701 = vmatprep.subr.mxu0 0.0
    %3702 = vmatpush1.msra.mxu0 0.0
    %3703 = vmatprep.subr.mxu0 0.0
    %3704 = vmatpush1.msra.mxu0 0.0
    %3705 = vmatprep.subr.mxu0 0.0
    %3706 = vmatpush1.msra.mxu0 0.0
    %3707 = vmatprep.subr.mxu0 0.0
    %3708 = vmatpush1.msra.mxu0 0.0
    %3709 = vmatprep.subr.mxu0 0.0
    %3710 = vmatpush1.msra.mxu0 0.0
    %3711 = vmatprep.subr.mxu0 0.0
    %3712 = vmatpush1.msra.mxu0 0.0
    %3713 = vmatprep.subr.mxu0 0.0
    %3714 = vmatpush1.msra.mxu0 0.0
    %3715 = vmatprep.subr.mxu0 0.0
    %3716 = vmatpush1.msra.mxu0 0.0
    %3717 = vmatprep.subr.mxu0 0.0
    %3718 = vmatpush1.msra.mxu0 0.0
    %3719 = vmatprep.subr.mxu0 0.0
    %3720 = vmatpush1.msra.mxu0 0.0
    %3721 = vmatprep.subr.mxu0 0.0
    %3722 = vmatpush1.msra.mxu0 0.0
    %3723 = vmatprep.subr.mxu0 0.0
    %3724 = vmatpush1.msra.mxu0 0.0
    %3725 = vmatprep.subr.mxu0 0.0
    %3726 = vmatpush1.msra.mxu0 0.0
    %3727 = vmatprep.subr.mxu0 0.0
    %3728 = vmatpush1.msra.mxu0 0.0
    %3729 = vmatprep.subr.mxu0 0.0
    %3730 = vmatpush1.msra.mxu0 0.0
    %3731 = vmatprep.subr.mxu0 0.0
    %3732 = vmatpush1.msra.mxu0 0.0
    %3733 = vmatprep.subr.mxu0 0.0
    %3734 = vmatpush1.msra.mxu0 0.0
    %3735 = vmatprep.subr.mxu0 0.0
    %3736 = vmatpush1.msra.mxu0 0.0
    %3737 = vmatprep.subr.mxu0 0.0
    %3738 = vmatpush1.msra.mxu0 0.0
    %3739 = vmatprep.subr.mxu0 0.0
    %3740 = vmatpush1.msra.mxu0 0.0
    %3741 = vmatprep.mubr.f32.mxu0 0.0
    %3742 = vmatmul.mubr.f32.gmra.mrb[0].mxu0 %v3675
    %v3743 = vpop.f32.mrb[0].mxu0
    %v3744 = vadd.f32 0.0, %v3743
    %v3745 = vpop.f32.mrb[0].mxu0
    %3746 = vdwg.mxu0
    %v3747 = vld [vmem:[#allocation8 + $0x8] sm:$0xff]
    %v3749 = vsel %vm263, %v3744, 0
    %3751 = vmatprep.subr.mxu0 0.0
    %3752 = vmatpush1.msra.mxu0 %v3747
    %3753 = vmatprep.subr.mxu0 0.0
    %3754 = vmatpush1.msra.mxu0 0.0
    %3755 = vmatprep.subr.mxu0 0.0
    %3756 = vmatpush1.msra.mxu0 0.0
    %3757 = vmatprep.subr.mxu0 0.0
    %3758 = vmatpush1.msra.mxu0 0.0
    %3759 = vmatprep.subr.mxu0 0.0
    %3760 = vmatpush1.msra.mxu0 0.0
    %3761 = vmatprep.subr.mxu0 0.0
    %3762 = vmatpush1.msra.mxu0 0.0
    %3763 = vmatprep.subr.mxu0 0.0
    %3764 = vmatpush1.msra.mxu0 0.0
    %3765 = vmatprep.subr.mxu0 0.0
    %3766 = vmatpush1.msra.mxu0 0.0
    %3767 = vmatprep.subr.mxu0 0.0
    %3768 = vmatpush1.msra.mxu0 0.0
    %3769 = vmatprep.subr.mxu0 0.0
    %3770 = vmatpush1.msra.mxu0 0.0
    %3771 = vmatprep.subr.mxu0 0.0
    %3772 = vmatpush1.msra.mxu0 0.0
    %3773 = vmatprep.subr.mxu0 0.0
    %3774 = vmatpush1.msra.mxu0 0.0
    %3775 = vmatprep.subr.mxu0 0.0
    %3776 = vmatpush1.msra.mxu0 0.0
    %3777 = vmatprep.subr.mxu0 0.0
    %3778 = vmatpush1.msra.mxu0 0.0
    %3779 = vmatprep.subr.mxu0 0.0
    %3780 = vmatpush1.msra.mxu0 0.0
    %3781 = vmatprep.subr.mxu0 0.0
    %3782 = vmatpush1.msra.mxu0 0.0
    %3783 = vmatprep.subr.mxu0 0.0
    %3784 = vmatpush1.msra.mxu0 0.0
    %3785 = vmatprep.subr.mxu0 0.0
    %3786 = vmatpush1.msra.mxu0 0.0
    %3787 = vmatprep.subr.mxu0 0.0
    %3788 = vmatpush1.msra.mxu0 0.0
    %3789 = vmatprep.subr.mxu0 0.0
    %3790 = vmatpush1.msra.mxu0 0.0
    %3791 = vmatprep.subr.mxu0 0.0
    %3792 = vmatpush1.msra.mxu0 0.0
    %3793 = vmatprep.subr.mxu0 0.0
    %3794 = vmatpush1.msra.mxu0 0.0
    %3795 = vmatprep.subr.mxu0 0.0
    %3796 = vmatpush1.msra.mxu0 0.0
    %3797 = vmatprep.subr.mxu0 0.0
    %3798 = vmatpush1.msra.mxu0 0.0
    %3799 = vmatprep.subr.mxu0 0.0
    %3800 = vmatpush1.msra.mxu0 0.0
    %3801 = vmatprep.subr.mxu0 0.0
    %3802 = vmatpush1.msra.mxu0 0.0
    %3803 = vmatprep.subr.mxu0 0.0
    %3804 = vmatpush1.msra.mxu0 0.0
    %3805 = vmatprep.subr.mxu0 0.0
    %3806 = vmatpush1.msra.mxu0 0.0
    %3807 = vmatprep.subr.mxu0 0.0
    %3808 = vmatpush1.msra.mxu0 0.0
    %3809 = vmatprep.subr.mxu0 0.0
    %3810 = vmatpush1.msra.mxu0 0.0
    %3811 = vmatprep.subr.mxu0 0.0
    %3812 = vmatpush1.msra.mxu0 0.0
    %3813 = vmatprep.subr.mxu0 0.0
    %3814 = vmatpush1.msra.mxu0 0.0
    %3815 = vmatprep.mubr.f32.mxu0 0.0
    %3816 = vmatmul.mubr.f32.gmra.mrb[0].mxu0 %v3749
    %v3817 = vpop.f32.mrb[0].mxu0
    %v3818 = vadd.f32 0.0, %v3817
    %v3819 = vpop.f32.mrb[0].mxu0
    %3820 = vdwg.mxu0
    %v3822 = vsel %vm263, %v3574, 0
    %3824 = vmatprep.subr.mxu0 0.0
    %3825 = vmatpush1.msra.mxu0 %v3577
    %3826 = vmatprep.subr.mxu0 0.0
    %3827 = vmatpush1.msra.mxu0 0.0
    %3828 = vmatprep.subr.mxu0 0.0
    %3829 = vmatpush1.msra.mxu0 0.0
    %3830 = vmatprep.subr.mxu0 0.0
    %3831 = vmatpush1.msra.mxu0 0.0
    %3832 = vmatprep.subr.mxu0 0.0
    %3833 = vmatpush1.msra.mxu0 0.0
    %3834 = vmatprep.subr.mxu0 0.0
    %3835 = vmatpush1.msra.mxu0 0.0
    %3836 = vmatprep.subr.mxu0 0.0
    %3837 = vmatpush1.msra.mxu0 0.0
    %3838 = vmatprep.subr.mxu0 0.0
    %3839 = vmatpush1.msra.mxu0 0.0
    %3840 = vmatprep.subr.mxu0 0.0
    %3841 = vmatpush1.msra.mxu0 0.0
    %3842 = vmatprep.subr.mxu0 0.0
    %3843 = vmatpush1.msra.mxu0 0.0
    %3844 = vmatprep.subr.mxu0 0.0
    %3845 = vmatpush1.msra.mxu0 0.0
    %3846 = vmatprep.subr.mxu0 0.0
    %3847 = vmatpush1.msra.mxu0 0.0
    %3848 = vmatprep.subr.mxu0 0.0
    %3849 = vmatpush1.msra.mxu0 0.0
    %3850 = vmatprep.subr.mxu0 0.0
    %3851 = vmatpush1.msra.mxu0 0.0
    %3852 = vmatprep.subr.mxu0 0.0
    %3853 = vmatpush1.msra.mxu0 0.0
    %3854 = vmatprep.subr.mxu0 0.0
    %3855 = vmatpush1.msra.mxu0 0.0
    %3856 = vmatprep.subr.mxu0 0.0
    %3857 = vmatpush1.msra.mxu0 0.0
    %3858 = vmatprep.subr.mxu0 0.0
    %3859 = vmatpush1.msra.mxu0 0.0
    %3860 = vmatprep.subr.mxu0 0.0
    %3861 = vmatpush1.msra.mxu0 0.0
    %3862 = vmatprep.subr.mxu0 0.0
    %3863 = vmatpush1.msra.mxu0 0.0
    %3864 = vmatprep.subr.mxu0 0.0
    %3865 = vmatpush1.msra.mxu0 0.0
    %3866 = vmatprep.subr.mxu0 0.0
    %3867 = vmatpush1.msra.mxu0 0.0
    %3868 = vmatprep.subr.mxu0 0.0
    %3869 = vmatpush1.msra.mxu0 0.0
    %3870 = vmatprep.subr.mxu0 0.0
    %3871 = vmatpush1.msra.mxu0 0.0
    %3872 = vmatprep.subr.mxu0 0.0
    %3873 = vmatpush1.msra.mxu0 0.0
    %3874 = vmatprep.subr.mxu0 0.0
    %3875 = vmatpush1.msra.mxu0 0.0
    %3876 = vmatprep.subr.mxu0 0.0
    %3877 = vmatpush1.msra.mxu0 0.0
    %3878 = vmatprep.subr.mxu0 0.0
    %3879 = vmatpush1.msra.mxu0 0.0
    %3880 = vmatprep.subr.mxu0 0.0
    %3881 = vmatpush1.msra.mxu0 0.0
    %3882 = vmatprep.subr.mxu0 0.0
    %3883 = vmatpush1.msra.mxu0 0.0
    %3884 = vmatprep.subr.mxu0 0.0
    %3885 = vmatpush1.msra.mxu0 0.0
    %3886 = vmatprep.subr.mxu0 0.0
    %3887 = vmatpush1.msra.mxu0 0.0
    %3888 = vmatprep.mubr.f32.mxu0 0.0
    %3889 = vmatmul.mubr.f32.gmra.mrb[0].mxu0 %v3822
    %v3890 = vpop.f32.mrb[0].mxu0
    %v3891 = vadd.f32 %v3818, %v3890
    %v3892 = vpop.f32.mrb[0].mxu0
    %3893 = vdwg.mxu0
    %3894 = vrot.lane.b32.xlu0 %v2332, 112
    %v3895 = vpop.permute.xlu0 %3894
    %3896 = vrot.lane.b32.xlu0 %v2424, 112
    %v3897 = vpop.permute.xlu0 %3896
    %v3898 = vsel %vm263, %v3895, 0
    %v3900 = vsel %vm263, %v3897, 0
    %3902 = vmatprep.subr.mxu0 0.0
    %3903 = vmatpush1.xpose.msra.mxu0 %v3900
    %3904 = vmatprep.subr.mxu0 0.0
    %3905 = vmatpush1.xpose.msra.mxu0 0.0
    %3906 = vmatprep.subr.mxu0 0.0
    %3907 = vmatpush1.xpose.msra.mxu0 0.0
    %3908 = vmatprep.subr.mxu0 0.0
    %3909 = vmatpush1.xpose.msra.mxu0 0.0
    %3910 = vmatprep.subr.mxu0 0.0
    %3911 = vmatpush1.xpose.msra.mxu0 0.0
    %3912 = vmatprep.subr.mxu0 0.0
    %3913 = vmatpush1.xpose.msra.mxu0 0.0
    %3914 = vmatprep.subr.mxu0 0.0
    %3915 = vmatpush1.xpose.msra.mxu0 0.0
    %3916 = vmatprep.subr.mxu0 0.0
    %3917 = vmatpush1.xpose.msra.mxu0 0.0
    %3918 = vmatprep.subr.mxu0 0.0
    %3919 = vmatpush1.xpose.msra.mxu0 0.0
    %3920 = vmatprep.subr.mxu0 0.0
    %3921 = vmatpush1.xpose.msra.mxu0 0.0
    %3922 = vmatprep.subr.mxu0 0.0
    %3923 = vmatpush1.xpose.msra.mxu0 0.0
    %3924 = vmatprep.subr.mxu0 0.0
    %3925 = vmatpush1.xpose.msra.mxu0 0.0
    %3926 = vmatprep.subr.mxu0 0.0
    %3927 = vmatpush1.xpose.msra.mxu0 0.0
    %3928 = vmatprep.subr.mxu0 0.0
    %3929 = vmatpush1.xpose.msra.mxu0 0.0
    %3930 = vmatprep.subr.mxu0 0.0
    %3931 = vmatpush1.xpose.msra.mxu0 0.0
    %3932 = vmatprep.subr.mxu0 0.0
    %3933 = vmatpush1.xpose.msra.mxu0 0.0
    %3934 = vmatprep.subr.mxu0 0.0
    %3935 = vmatpush1.xpose.msra.mxu0 0.0
    %3936 = vmatprep.subr.mxu0 0.0
    %3937 = vmatpush1.xpose.msra.mxu0 0.0
    %3938 = vmatprep.subr.mxu0 0.0
    %3939 = vmatpush1.xpose.msra.mxu0 0.0
    %3940 = vmatprep.subr.mxu0 0.0
    %3941 = vmatpush1.xpose.msra.mxu0 0.0
    %3942 = vmatprep.subr.mxu0 0.0
    %3943 = vmatpush1.xpose.msra.mxu0 0.0
    %3944 = vmatprep.subr.mxu0 0.0
    %3945 = vmatpush1.xpose.msra.mxu0 0.0
    %3946 = vmatprep.subr.mxu0 0.0
    %3947 = vmatpush1.xpose.msra.mxu0 0.0
    %3948 = vmatprep.subr.mxu0 0.0
    %3949 = vmatpush1.xpose.msra.mxu0 0.0
    %3950 = vmatprep.subr.mxu0 0.0
    %3951 = vmatpush1.xpose.msra.mxu0 0.0
    %3952 = vmatprep.subr.mxu0 0.0
    %3953 = vmatpush1.xpose.msra.mxu0 0.0
    %3954 = vmatprep.subr.mxu0 0.0
    %3955 = vmatpush1.xpose.msra.mxu0 0.0
    %3956 = vmatprep.subr.mxu0 0.0
    %3957 = vmatpush1.xpose.msra.mxu0 0.0
    %3958 = vmatprep.subr.mxu0 0.0
    %3959 = vmatpush1.xpose.msra.mxu0 0.0
    %3960 = vmatprep.subr.mxu0 0.0
    %3961 = vmatpush1.xpose.msra.mxu0 0.0
    %3962 = vmatprep.subr.mxu0 0.0
    %3963 = vmatpush1.xpose.msra.mxu0 0.0
    %3964 = vmatprep.subr.mxu0 0.0
    %3965 = vmatpush1.xpose.msra.mxu0 0.0
    %3966 = vmatprep.mubr.f32.mxu0 0.0
    %3967 = vmatmul.mubr.f32.gmra.mrb[0].mxu0 %v3898
    %v3968 = vpop.f32.mrb[0].mxu0
    %v3969 = vadd.f32 0.0, %v3968
    %v3970 = vpop.f32.mrb[0].mxu0
    %3971 = vdwg.mxu0
    %v3972 = vmul.f32 %v3969, 0.35355338
    %v3973 = vadd.f32 %v3972, %v3485
    %v3974 = vsel %vm263, %v3973, -inf
    %3975 = vmax.xlane.f32.xlu0 %v3974
    %v3976 = vpop.xlane.xlu0 %3975
    %v3977 = vsub.f32 %v3973, %v3976
    %v3978 = vmul.f32 %v3977, 1.442695
    %v3979 = vpow.pop %v3978
    %v3980 = vsel %vm263, %v3979, 0.0
    %3981 = vadd.xlane.f32.xlu0 %v3980
    %v3982 = vpop.xlane.xlu0 %3981
    %v3983 = vrcp.pop %v3982
    %v3984 = vmul.f32 %v3979, %v3983
    %s3985 = scalar_lea.vmem [#allocation12], 48
    %3986 = vst.msk [vmem:[%s3985] sm:$0xff] %vm263, %v3984
    %3987 = vrot.lane.b32.xlu0 %v2424, 80
    %v3988 = vpop.permute.xlu0 %3987
    %v3991 = vsel %vm263, %v3984, 0
    %3993 = vmatprep.subr.mxu0 0.0
    %3994 = vmatpush1.msra.mxu0 %v3988
    %3995 = vmatprep.subr.mxu0 0.0
    %3996 = vmatpush1.msra.mxu0 0.0
    %3997 = vmatprep.subr.mxu0 0.0
    %3998 = vmatpush1.msra.mxu0 0.0
    %3999 = vmatprep.subr.mxu0 0.0
    %4000 = vmatpush1.msra.mxu0 0.0
    %4001 = vmatprep.subr.mxu0 0.0
    %4002 = vmatpush1.msra.mxu0 0.0
    %4003 = vmatprep.subr.mxu0 0.0
    %4004 = vmatpush1.msra.mxu0 0.0
    %4005 = vmatprep.subr.mxu0 0.0
    %4006 = vmatpush1.msra.mxu0 0.0
    %4007 = vmatprep.subr.mxu0 0.0
    %4008 = vmatpush1.msra.mxu0 0.0
    %4009 = vmatprep.subr.mxu0 0.0
    %4010 = vmatpush1.msra.mxu0 0.0
    %4011 = vmatprep.subr.mxu0 0.0
    %4012 = vmatpush1.msra.mxu0 0.0
    %4013 = vmatprep.subr.mxu0 0.0
    %4014 = vmatpush1.msra.mxu0 0.0
    %4015 = vmatprep.subr.mxu0 0.0
    %4016 = vmatpush1.msra.mxu0 0.0
    %4017 = vmatprep.subr.mxu0 0.0
    %4018 = vmatpush1.msra.mxu0 0.0
    %4019 = vmatprep.subr.mxu0 0.0
    %4020 = vmatpush1.msra.mxu0 0.0
    %4021 = vmatprep.subr.mxu0 0.0
    %4022 = vmatpush1.msra.mxu0 0.0
    %4023 = vmatprep.subr.mxu0 0.0
    %4024 = vmatpush1.msra.mxu0 0.0
    %4025 = vmatprep.subr.mxu0 0.0
    %4026 = vmatpush1.msra.mxu0 0.0
    %4027 = vmatprep.subr.mxu0 0.0
    %4028 = vmatpush1.msra.mxu0 0.0
    %4029 = vmatprep.subr.mxu0 0.0
    %4030 = vmatpush1.msra.mxu0 0.0
    %4031 = vmatprep.subr.mxu0 0.0
    %4032 = vmatpush1.msra.mxu0 0.0
    %4033 = vmatprep.subr.mxu0 0.0
    %4034 = vmatpush1.msra.mxu0 0.0
    %4035 = vmatprep.subr.mxu0 0.0
    %4036 = vmatpush1.msra.mxu0 0.0
    %4037 = vmatprep.subr.mxu0 0.0
    %4038 = vmatpush1.msra.mxu0 0.0
    %4039 = vmatprep.subr.mxu0 0.0
    %4040 = vmatpush1.msra.mxu0 0.0
    %4041 = vmatprep.subr.mxu0 0.0
    %4042 = vmatpush1.msra.mxu0 0.0
    %4043 = vmatprep.subr.mxu0 0.0
    %4044 = vmatpush1.msra.mxu0 0.0
    %4045 = vmatprep.subr.mxu0 0.0
    %4046 = vmatpush1.msra.mxu0 0.0
    %4047 = vmatprep.subr.mxu0 0.0
    %4048 = vmatpush1.msra.mxu0 0.0
    %4049 = vmatprep.subr.mxu0 0.0
    %4050 = vmatpush1.msra.mxu0 0.0
    %4051 = vmatprep.subr.mxu0 0.0
    %4052 = vmatpush1.msra.mxu0 0.0
    %4053 = vmatprep.subr.mxu0 0.0
    %4054 = vmatpush1.msra.mxu0 0.0
    %4055 = vmatprep.subr.mxu0 0.0
    %4056 = vmatpush1.msra.mxu0 0.0
    %4057 = vmatprep.mubr.f32.mxu0 0.0
    %4058 = vmatmul.mubr.f32.gmra.mrb[0].mxu0 %v3991
    %v4059 = vpop.f32.mrb[0].mxu0
    %v4060 = vadd.f32 0.0, %v4059
    %v4061 = vpop.f32.mrb[0].mxu0
    %4062 = vdwg.mxu0
    %v4063 = vld [vmem:[#allocation8 + $0x10] sm:$0xff]
    %v4065 = vsel %vm263, %v4060, 0
    %4067 = vmatprep.subr.mxu0 0.0
    %4068 = vmatpush1.msra.mxu0 %v4063
    %4069 = vmatprep.subr.mxu0 0.0
    %4070 = vmatpush1.msra.mxu0 0.0
    %4071 = vmatprep.subr.mxu0 0.0
    %4072 = vmatpush1.msra.mxu0 0.0
    %4073 = vmatprep.subr.mxu0 0.0
    %4074 = vmatpush1.msra.mxu0 0.0
    %4075 = vmatprep.subr.mxu0 0.0
    %4076 = vmatpush1.msra.mxu0 0.0
    %4077 = vmatprep.subr.mxu0 0.0
    %4078 = vmatpush1.msra.mxu0 0.0
    %4079 = vmatprep.subr.mxu0 0.0
    %4080 = vmatpush1.msra.mxu0 0.0
    %4081 = vmatprep.subr.mxu0 0.0
    %4082 = vmatpush1.msra.mxu0 0.0
    %4083 = vmatprep.subr.mxu0 0.0
    %4084 = vmatpush1.msra.mxu0 0.0
    %4085 = vmatprep.subr.mxu0 0.0
    %4086 = vmatpush1.msra.mxu0 0.0
    %4087 = vmatprep.subr.mxu0 0.0
    %4088 = vmatpush1.msra.mxu0 0.0
    %4089 = vmatprep.subr.mxu0 0.0
    %4090 = vmatpush1.msra.mxu0 0.0
    %4091 = vmatprep.subr.mxu0 0.0
    %4092 = vmatpush1.msra.mxu0 0.0
    %4093 = vmatprep.subr.mxu0 0.0
    %4094 = vmatpush1.msra.mxu0 0.0
    %4095 = vmatprep.subr.mxu0 0.0
    %4096 = vmatpush1.msra.mxu0 0.0
    %4097 = vmatprep.subr.mxu0 0.0
    %4098 = vmatpush1.msra.mxu0 0.0
    %4099 = vmatprep.subr.mxu0 0.0
    %4100 = vmatpush1.msra.mxu0 0.0
    %4101 = vmatprep.subr.mxu0 0.0
    %4102 = vmatpush1.msra.mxu0 0.0
    %4103 = vmatprep.subr.mxu0 0.0
    %4104 = vmatpush1.msra.mxu0 0.0
    %4105 = vmatprep.subr.mxu0 0.0
    %4106 = vmatpush1.msra.mxu0 0.0
    %4107 = vmatprep.subr.mxu0 0.0
    %4108 = vmatpush1.msra.mxu0 0.0
    %4109 = vmatprep.subr.mxu0 0.0
    %4110 = vmatpush1.msra.mxu0 0.0
    %4111 = vmatprep.subr.mxu0 0.0
    %4112 = vmatpush1.msra.mxu0 0.0
    %4113 = vmatprep.subr.mxu0 0.0
    %4114 = vmatpush1.msra.mxu0 0.0
    %4115 = vmatprep.subr.mxu0 0.0
    %4116 = vmatpush1.msra.mxu0 0.0
    %4117 = vmatprep.subr.mxu0 0.0
    %4118 = vmatpush1.msra.mxu0 0.0
    %4119 = vmatprep.subr.mxu0 0.0
    %4120 = vmatpush1.msra.mxu0 0.0
    %4121 = vmatprep.subr.mxu0 0.0
    %4122 = vmatpush1.msra.mxu0 0.0
    %4123 = vmatprep.subr.mxu0 0.0
    %4124 = vmatpush1.msra.mxu0 0.0
    %4125 = vmatprep.subr.mxu0 0.0
    %4126 = vmatpush1.msra.mxu0 0.0
    %4127 = vmatprep.subr.mxu0 0.0
    %4128 = vmatpush1.msra.mxu0 0.0
    %4129 = vmatprep.subr.mxu0 0.0
    %4130 = vmatpush1.msra.mxu0 0.0
    %4131 = vmatprep.mubr.f32.mxu0 0.0
    %4132 = vmatmul.mubr.f32.gmra.mrb[0].mxu0 %v4065
    %v4133 = vpop.f32.mrb[0].mxu0
    %v4134 = vadd.f32 0.0, %v4133
    %v4135 = vpop.f32.mrb[0].mxu0
    %4136 = vdwg.mxu0
    %v4137 = vadd.f32 %v3891, %v4134
    %4138 = vrot.lane.b32.xlu0 %v2332, 104
    %v4139 = vpop.permute.xlu0 %4138
    %4140 = vrot.lane.b32.xlu0 %v2424, 104
    %v4141 = vpop.permute.xlu0 %4140
    %v4142 = vsel %vm263, %v4139, 0
    %v4144 = vsel %vm263, %v4141, 0
    %4146 = vmatprep.subr.mxu0 0.0
    %4147 = vmatpush1.xpose.msra.mxu0 %v4144
    %4148 = vmatprep.subr.mxu0 0.0
    %4149 = vmatpush1.xpose.msra.mxu0 0.0
    %4150 = vmatprep.subr.mxu0 0.0
    %4151 = vmatpush1.xpose.msra.mxu0 0.0
    %4152 = vmatprep.subr.mxu0 0.0
    %4153 = vmatpush1.xpose.msra.mxu0 0.0
    %4154 = vmatprep.subr.mxu0 0.0
    %4155 = vmatpush1.xpose.msra.mxu0 0.0
    %4156 = vmatprep.subr.mxu0 0.0
    %4157 = vmatpush1.xpose.msra.mxu0 0.0
    %4158 = vmatprep.subr.mxu0 0.0
    %4159 = vmatpush1.xpose.msra.mxu0 0.0
    %4160 = vmatprep.subr.mxu0 0.0
    %4161 = vmatpush1.xpose.msra.mxu0 0.0
    %4162 = vmatprep.subr.mxu0 0.0
    %4163 = vmatpush1.xpose.msra.mxu0 0.0
    %4164 = vmatprep.subr.mxu0 0.0
    %4165 = vmatpush1.xpose.msra.mxu0 0.0
    %4166 = vmatprep.subr.mxu0 0.0
    %4167 = vmatpush1.xpose.msra.mxu0 0.0
    %4168 = vmatprep.subr.mxu0 0.0
    %4169 = vmatpush1.xpose.msra.mxu0 0.0
    %4170 = vmatprep.subr.mxu0 0.0
    %4171 = vmatpush1.xpose.msra.mxu0 0.0
    %4172 = vmatprep.subr.mxu0 0.0
    %4173 = vmatpush1.xpose.msra.mxu0 0.0
    %4174 = vmatprep.subr.mxu0 0.0
    %4175 = vmatpush1.xpose.msra.mxu0 0.0
    %4176 = vmatprep.subr.mxu0 0.0
    %4177 = vmatpush1.xpose.msra.mxu0 0.0
    %4178 = vmatprep.subr.mxu0 0.0
    %4179 = vmatpush1.xpose.msra.mxu0 0.0
    %4180 = vmatprep.subr.mxu0 0.0
    %4181 = vmatpush1.xpose.msra.mxu0 0.0
    %4182 = vmatprep.subr.mxu0 0.0
    %4183 = vmatpush1.xpose.msra.mxu0 0.0
    %4184 = vmatprep.subr.mxu0 0.0
    %4185 = vmatpush1.xpose.msra.mxu0 0.0
    %4186 = vmatprep.subr.mxu0 0.0
    %4187 = vmatpush1.xpose.msra.mxu0 0.0
    %4188 = vmatprep.subr.mxu0 0.0
    %4189 = vmatpush1.xpose.msra.mxu0 0.0
    %4190 = vmatprep.subr.mxu0 0.0
    %4191 = vmatpush1.xpose.msra.mxu0 0.0
    %4192 = vmatprep.subr.mxu0 0.0
    %4193 = vmatpush1.xpose.msra.mxu0 0.0
    %4194 = vmatprep.subr.mxu0 0.0
    %4195 = vmatpush1.xpose.msra.mxu0 0.0
    %4196 = vmatprep.subr.mxu0 0.0
    %4197 = vmatpush1.xpose.msra.mxu0 0.0
    %4198 = vmatprep.subr.mxu0 0.0
    %4199 = vmatpush1.xpose.msra.mxu0 0.0
    %4200 = vmatprep.subr.mxu0 0.0
    %4201 = vmatpush1.xpose.msra.mxu0 0.0
    %4202 = vmatprep.subr.mxu0 0.0
    %4203 = vmatpush1.xpose.msra.mxu0 0.0
    %4204 = vmatprep.subr.mxu0 0.0
    %4205 = vmatpush1.xpose.msra.mxu0 0.0
    %4206 = vmatprep.subr.mxu0 0.0
    %4207 = vmatpush1.xpose.msra.mxu0 0.0
    %4208 = vmatprep.subr.mxu0 0.0
    %4209 = vmatpush1.xpose.msra.mxu0 0.0
    %4210 = vmatprep.mubr.f32.mxu0 0.0
    %4211 = vmatmul.mubr.f32.gmra.mrb[0].mxu0 %v4142
    %v4212 = vpop.f32.mrb[0].mxu0
    %v4213 = vadd.f32 0.0, %v4212
    %v4214 = vpop.f32.mrb[0].mxu0
    %4215 = vdwg.mxu0
    %v4216 = vmul.f32 %v4213, 0.35355338
    %v4217 = vadd.f32 %v4216, %v3485
    %v4218 = vsel %vm263, %v4217, -inf
    %4219 = vmax.xlane.f32.xlu0 %v4218
    %v4220 = vpop.xlane.xlu0 %4219
    %v4221 = vsub.f32 %v4217, %v4220
    %v4222 = vmul.f32 %v4221, 1.442695
    %v4223 = vpow.pop %v4222
    %v4224 = vsel %vm263, %v4223, 0.0
    %4225 = vadd.xlane.f32.xlu0 %v4224
    %v4226 = vpop.xlane.xlu0 %4225
    %v4227 = vrcp.pop %v4226
    %v4228 = vmul.f32 %v4223, %v4227
    %s4229 = scalar_lea.vmem [#allocation12], 56
    %4230 = vst.msk [vmem:[%s4229] sm:$0xff] %vm263, %v4228
    %4231 = vrot.lane.b32.xlu0 %v2424, 72
    %v4232 = vpop.permute.xlu0 %4231
    %v4235 = vsel %vm263, %v4228, 0
    %4237 = vmatprep.subr.mxu0 0.0
    %4238 = vmatpush1.msra.mxu0 %v4232
    %4239 = vmatprep.subr.mxu0 0.0
    %4240 = vmatpush1.msra.mxu0 0.0
    %4241 = vmatprep.subr.mxu0 0.0
    %4242 = vmatpush1.msra.mxu0 0.0
    %4243 = vmatprep.subr.mxu0 0.0
    %4244 = vmatpush1.msra.mxu0 0.0
    %4245 = vmatprep.subr.mxu0 0.0
    %4246 = vmatpush1.msra.mxu0 0.0
    %4247 = vmatprep.subr.mxu0 0.0
    %4248 = vmatpush1.msra.mxu0 0.0
    %4249 = vmatprep.subr.mxu0 0.0
    %4250 = vmatpush1.msra.mxu0 0.0
    %4251 = vmatprep.subr.mxu0 0.0
    %4252 = vmatpush1.msra.mxu0 0.0
    %4253 = vmatprep.subr.mxu0 0.0
    %4254 = vmatpush1.msra.mxu0 0.0
    %4255 = vmatprep.subr.mxu0 0.0
    %4256 = vmatpush1.msra.mxu0 0.0
    %4257 = vmatprep.subr.mxu0 0.0
    %4258 = vmatpush1.msra.mxu0 0.0
    %4259 = vmatprep.subr.mxu0 0.0
    %4260 = vmatpush1.msra.mxu0 0.0
    %4261 = vmatprep.subr.mxu0 0.0
    %4262 = vmatpush1.msra.mxu0 0.0
    %4263 = vmatprep.subr.mxu0 0.0
    %4264 = vmatpush1.msra.mxu0 0.0
    %4265 = vmatprep.subr.mxu0 0.0
    %4266 = vmatpush1.msra.mxu0 0.0
    %4267 = vmatprep.subr.mxu0 0.0
    %4268 = vmatpush1.msra.mxu0 0.0
    %4269 = vmatprep.subr.mxu0 0.0
    %4270 = vmatpush1.msra.mxu0 0.0
    %4271 = vmatprep.subr.mxu0 0.0
    %4272 = vmatpush1.msra.mxu0 0.0
    %4273 = vmatprep.subr.mxu0 0.0
    %4274 = vmatpush1.msra.mxu0 0.0
    %4275 = vmatprep.subr.mxu0 0.0
    %4276 = vmatpush1.msra.mxu0 0.0
    %4277 = vmatprep.subr.mxu0 0.0
    %4278 = vmatpush1.msra.mxu0 0.0
    %4279 = vmatprep.subr.mxu0 0.0
    %4280 = vmatpush1.msra.mxu0 0.0
    %4281 = vmatprep.subr.mxu0 0.0
    %4282 = vmatpush1.msra.mxu0 0.0
    %4283 = vmatprep.subr.mxu0 0.0
    %4284 = vmatpush1.msra.mxu0 0.0
    %4285 = vmatprep.subr.mxu0 0.0
    %4286 = vmatpush1.msra.mxu0 0.0
    %4287 = vmatprep.subr.mxu0 0.0
    %4288 = vmatpush1.msra.mxu0 0.0
    %4289 = vmatprep.subr.mxu0 0.0
    %4290 = vmatpush1.msra.mxu0 0.0
    %4291 = vmatprep.subr.mxu0 0.0
    %4292 = vmatpush1.msra.mxu0 0.0
    %4293 = vmatprep.subr.mxu0 0.0
    %4294 = vmatpush1.msra.mxu0 0.0
    %4295 = vmatprep.subr.mxu0 0.0
    %4296 = vmatpush1.msra.mxu0 0.0
    %4297 = vmatprep.subr.mxu0 0.0
    %4298 = vmatpush1.msra.mxu0 0.0
    %4299 = vmatprep.subr.mxu0 0.0
    %4300 = vmatpush1.msra.mxu0 0.0
    %4301 = vmatprep.mubr.f32.mxu0 0.0
    %4302 = vmatmul.mubr.f32.gmra.mrb[0].mxu0 %v4235
    %v4303 = vpop.f32.mrb[0].mxu0
    %v4304 = vadd.f32 0.0, %v4303
    %v4305 = vpop.f32.mrb[0].mxu0
    %4306 = vdwg.mxu0
    %v4307 = vld [vmem:[#allocation8 + $0x18] sm:$0xff]
    %v4309 = vsel %vm263, %v4304, 0
    %4311 = vmatprep.subr.mxu0 0.0
    %4312 = vmatpush1.msra.mxu0 %v4307
    %4313 = vmatprep.subr.mxu0 0.0
    %4314 = vmatpush1.msra.mxu0 0.0
    %4315 = vmatprep.subr.mxu0 0.0
    %4316 = vmatpush1.msra.mxu0 0.0
    %4317 = vmatprep.subr.mxu0 0.0
    %4318 = vmatpush1.msra.mxu0 0.0
    %4319 = vmatprep.subr.mxu0 0.0
    %4320 = vmatpush1.msra.mxu0 0.0
    %4321 = vmatprep.subr.mxu0 0.0
    %4322 = vmatpush1.msra.mxu0 0.0
    %4323 = vmatprep.subr.mxu0 0.0
    %4324 = vmatpush1.msra.mxu0 0.0
    %4325 = vmatprep.subr.mxu0 0.0
    %4326 = vmatpush1.msra.mxu0 0.0
    %4327 = vmatprep.subr.mxu0 0.0
    %4328 = vmatpush1.msra.mxu0 0.0
    %4329 = vmatprep.subr.mxu0 0.0
    %4330 = vmatpush1.msra.mxu0 0.0
    %4331 = vmatprep.subr.mxu0 0.0
    %4332 = vmatpush1.msra.mxu0 0.0
    %4333 = vmatprep.subr.mxu0 0.0
    %4334 = vmatpush1.msra.mxu0 0.0
    %4335 = vmatprep.subr.mxu0 0.0
    %4336 = vmatpush1.msra.mxu0 0.0
    %4337 = vmatprep.subr.mxu0 0.0
    %4338 = vmatpush1.msra.mxu0 0.0
    %4339 = vmatprep.subr.mxu0 0.0
    %4340 = vmatpush1.msra.mxu0 0.0
    %4341 = vmatprep.subr.mxu0 0.0
    %4342 = vmatpush1.msra.mxu0 0.0
    %4343 = vmatprep.subr.mxu0 0.0
    %4344 = vmatpush1.msra.mxu0 0.0
    %4345 = vmatprep.subr.mxu0 0.0
    %4346 = vmatpush1.msra.mxu0 0.0
    %4347 = vmatprep.subr.mxu0 0.0
    %4348 = vmatpush1.msra.mxu0 0.0
    %4349 = vmatprep.subr.mxu0 0.0
    %4350 = vmatpush1.msra.mxu0 0.0
    %4351 = vmatprep.subr.mxu0 0.0
    %4352 = vmatpush1.msra.mxu0 0.0
    %4353 = vmatprep.subr.mxu0 0.0
    %4354 = vmatpush1.msra.mxu0 0.0
    %4355 = vmatprep.subr.mxu0 0.0
    %4356 = vmatpush1.msra.mxu0 0.0
    %4357 = vmatprep.subr.mxu0 0.0
    %4358 = vmatpush1.msra.mxu0 0.0
    %4359 = vmatprep.subr.mxu0 0.0
    %4360 = vmatpush1.msra.mxu0 0.0
    %4361 = vmatprep.subr.mxu0 0.0
    %4362 = vmatpush1.msra.mxu0 0.0
    %4363 = vmatprep.subr.mxu0 0.0
    %4364 = vmatpush1.msra.mxu0 0.0
    %4365 = vmatprep.subr.mxu0 0.0
    %4366 = vmatpush1.msra.mxu0 0.0
    %4367 = vmatprep.subr.mxu0 0.0
    %4368 = vmatpush1.msra.mxu0 0.0
    %4369 = vmatprep.subr.mxu0 0.0
    %4370 = vmatpush1.msra.mxu0 0.0
    %4371 = vmatprep.subr.mxu0 0.0
    %4372 = vmatpush1.msra.mxu0 0.0
    %4373 = vmatprep.subr.mxu0 0.0
    %4374 = vmatpush1.msra.mxu0 0.0
    %4375 = vmatprep.mubr.f32.mxu0 0.0
    %4376 = vmatmul.mubr.f32.gmra.mrb[0].mxu0 %v4309
    %v4377 = vpop.f32.mrb[0].mxu0
    %v4378 = vadd.f32 0.0, %v4377
    %v4379 = vpop.f32.mrb[0].mxu0
    %4380 = vdwg.mxu0
    %v4381 = vadd.f32 %v4137, %v4378
    %v4382 = vld [vmem:[%s15] sm:$0x1]
    %v4384 = vlaneseq
    %v4385 = vshrl.u32 %v4384, 7
    %v4386 = vsub.s32 0, %v4385
    %v4387 = vrot.slane %v4382, %v4386
    %v4389 = vadd.f32 %v3403, %v4387
    %v4390 = vadd.f32 %v4381, %v4387
    %v4391 = vadd.f32 %v2241, %v4389
    %v4392 = vadd.f32 %v2242, %v4390
    %v4393 = vsel %vm178, %v4391, 0.0
    %4394 = vadd.xlane.f32.xlu0 %v4393
    %v4395 = vpop.xlane.xlu0 %4394
    %v4396 = vsel %vm178, %v4392, 0.0
    %4397 = vadd.xlane.f32.xlu0 %v4396
    %v4398 = vpop.xlane.xlu0 %4397
    %v4399 = vmul.f32 %v4395, %v2204
    %v4400 = vmul.f32 %v4398, %v2204
    %v4401 = vsub.f32 %v4391, %v4399
    %v4402 = vsub.f32 %v4392, %v4400
    %v4403 = vmul.f32 %v4401, %v4401
    %v4404 = vmul.f32 %v4402, %v4402
    %v4405 = vsel %vm178, %v4403, 0.0
    %4406 = vadd.xlane.f32.xlu0 %v4405
    %v4407 = vpop.xlane.xlu0 %4406
    %v4408 = vsel %vm178, %v4404, 0.0
    %4409 = vadd.xlane.f32.xlu0 %v4408
    %v4410 = vpop.xlane.xlu0 %4409
    %v4411 = vmul.f32 %v4407, %v2204
    %v4412 = vmul.f32 %v4410, %v2204
    %v4413 = vadd.f32 %v4411, 1e-05
    %v4414 = vadd.f32 %v4412, 1e-05
    %v4415 = vrsqrt.pop %v4413
    %v4416 = vrsqrt.pop %v4414
    %v4417 = vmul.f32 %v4401, %v4415
    %v4418 = vmul.f32 %v4402, %v4416
    %v4419 = vld [vmem:[%s16] sm:$0x1]
    %v4421 = vlaneseq
    %v4422 = vshrl.u32 %v4421, 7
    %v4423 = vsub.s32 0, %v4422
    %v4424 = vrot.slane %v4419, %v4423
    %v4426 = vmul.f32 %v4417, %v4424
    %v4427 = vmul.f32 %v4418, %v4424
    %v4428 = vld [vmem:[%s17] sm:$0x1]
    %v4430 = vlaneseq
    %v4431 = vshrl.u32 %v4430, 7
    %v4432 = vsub.s32 0, %v4431
    %v4433 = vrot.slane %v4428, %v4432
    %v4435 = vadd.f32 %v4426, %v4433
    %v4436 = vadd.f32 %v4427, %v4433
    %v4437 = vld [vmem:[#allocation10] sm:$0xff]
    %v4438 = vld [vmem:[#allocation10 + $0x8] sm:$0xff]
    %v4439 = vld [vmem:[#allocation10 + $0x10] sm:$0xff]
    %v4440 = vld [vmem:[#allocation10 + $0x18] sm:$0xff]
    %v4441 = vld [vmem:[%s19] sm:$0x1]
    %v4443 = vlaneseq
    %v4444 = vshrl.u32 %v4443, 7
    %v4445 = vsub.s32 0, %v4444
    %v4446 = vrot.slane %v4441, %v4445
    %v4449 = vsel %vm178, %v4435, 0
    %v4452 = vsel %vm178, %v4436, 0
    %4454 = vmatprep.subr.mxu0 0.0
    %4455 = vmatpush1.msra.mxu0 %v4437
    %4456 = vmatprep.subr.mxu0 0.0
    %4457 = vmatpush1.msra.mxu0 %v4438
    %4458 = vmatprep.subr.mxu0 0.0
    %4459 = vmatpush1.msra.mxu0 %v4439
    %4460 = vmatprep.subr.mxu0 0.0
    %4461 = vmatpush1.msra.mxu0 %v4440
    %4462 = vmatprep.subr.mxu0 0.0
    %4463 = vmatpush1.msra.mxu0 0.0
    %4464 = vmatprep.subr.mxu0 0.0
    %4465 = vmatpush1.msra.mxu0 0.0
    %4466 = vmatprep.subr.mxu0 0.0
    %4467 = vmatpush1.msra.mxu0 0.0
    %4468 = vmatprep.subr.mxu0 0.0
    %4469 = vmatpush1.msra.mxu0 0.0
    %4470 = vmatprep.subr.mxu0 0.0
    %4471 = vmatpush1.msra.mxu0 0.0
    %4472 = vmatprep.subr.mxu0 0.0
    %4473 = vmatpush1.msra.mxu0 0.0
    %4474 = vmatprep.subr.mxu0 0.0
    %4475 = vmatpush1.msra.mxu0 0.0
    %4476 = vmatprep.subr.mxu0 0.0
    %4477 = vmatpush1.msra.mxu0 0.0
    %4478 = vmatprep.subr.mxu0 0.0
    %4479 = vmatpush1.msra.mxu0 0.0
    %4480 = vmatprep.subr.mxu0 0.0
    %4481 = vmatpush1.msra.mxu0 0.0
    %4482 = vmatprep.subr.mxu0 0.0
    %4483 = vmatpush1.msra.mxu0 0.0
    %4484 = vmatprep.subr.mxu0 0.0
    %4485 = vmatpush1.msra.mxu0 0.0
    %4486 = vmatprep.subr.mxu0 0.0
    %4487 = vmatpush1.msra.mxu0 0.0
    %4488 = vmatprep.subr.mxu0 0.0
    %4489 = vmatpush1.msra.mxu0 0.0
    %4490 = vmatprep.subr.mxu0 0.0
    %4491 = vmatpush1.msra.mxu0 0.0
    %4492 = vmatprep.subr.mxu0 0.0
    %4493 = vmatpush1.msra.mxu0 0.0
    %4494 = vmatprep.subr.mxu0 0.0
    %4495 = vmatpush1.msra.mxu0 0.0
    %4496 = vmatprep.subr.mxu0 0.0
    %4497 = vmatpush1.msra.mxu0 0.0
    %4498 = vmatprep.subr.mxu0 0.0
    %4499 = vmatpush1.msra.mxu0 0.0
    %4500 = vmatprep.subr.mxu0 0.0
    %4501 = vmatpush1.msra.mxu0 0.0
    %4502 = vmatprep.subr.mxu0 0.0
    %4503 = vmatpush1.msra.mxu0 0.0
    %4504 = vmatprep.subr.mxu0 0.0
    %4505 = vmatpush1.msra.mxu0 0.0
    %4506 = vmatprep.subr.mxu0 0.0
    %4507 = vmatpush1.msra.mxu0 0.0
    %4508 = vmatprep.subr.mxu0 0.0
    %4509 = vmatpush1.msra.mxu0 0.0
    %4510 = vmatprep.subr.mxu0 0.0
    %4511 = vmatpush1.msra.mxu0 0.0
    %4512 = vmatprep.subr.mxu0 0.0
    %4513 = vmatpush1.msra.mxu0 0.0
    %4514 = vmatprep.subr.mxu0 0.0
    %4515 = vmatpush1.msra.mxu0 0.0
    %4516 = vmatprep.subr.mxu0 0.0
    %4517 = vmatpush1.msra.mxu0 0.0
    %4518 = vmatprep.mubr.f32.mxu0 0.0
    %4519 = vmatmul.mubr.f32.gmra.mrb[0].mxu0 %v4449
    %v4520 = vpop.f32.mrb[0].mxu0
    %v4521 = vadd.f32 %v4446, %v4520
    %v4522 = vpop.f32.mrb[0].mxu0
    %4523 = vmatprep.mubr.f32.mxu0 0.0
    %4524 = vmatmul.mubr.f32.gmra.mrb[0].mxu0 %v4452
    %v4525 = vpop.f32.mrb[0].mxu0
    %v4526 = vadd.f32 %v4446, %v4525
    %v4527 = vpop.f32.mrb[0].mxu0
    %4528 = vdwg.mxu0
    %v4529 = vmax.f32 %v4521, 0.0
    %v4530 = vmax.f32 %v4526, 0.0
    %v4531 = vld [vmem:[%s20] sm:$0xff]
    %v4532 = vld [vmem:[%s20 + $0x8] sm:$0xff]
    %v4533 = vld [vmem:[%s20 + $0x10] sm:$0xff]
    %v4534 = vld [vmem:[%s20 + $0x18] sm:$0xff]
    %v4535 = vld [vmem:[%s20 + $0x20] sm:$0xff]
    %v4536 = vld [vmem:[%s20 + $0x28] sm:$0xff]
    %v4537 = vld [vmem:[%s20 + $0x30] sm:$0xff]
    %v4538 = vld [vmem:[%s20 + $0x38] sm:$0xff]
    %v4539 = vld [vmem:[%s21] sm:$0x1]
    %v4541 = vlaneseq
    %v4542 = vshrl.u32 %v4541, 7
    %v4543 = vsub.s32 0, %v4542
    %v4544 = vrot.slane %v4539, %v4543
    %vm4546 = vcmask 523264
    %v4548 = vsel %vm4546, %v4529, 0
    %v4551 = vsel %vm4546, %v4530, 0
    %4553 = vmatprep.subr.mxu0 0.0
    %4554 = vmatpush1.msra.mxu0 %v4531
    %4555 = vmatprep.subr.mxu0 0.0
    %4556 = vmatpush1.msra.mxu0 %v4532
    %4557 = vmatprep.subr.mxu0 0.0
    %4558 = vmatpush1.msra.mxu0 %v4533
    %4559 = vmatprep.subr.mxu0 0.0
    %4560 = vmatpush1.msra.mxu0 %v4534
    %4561 = vmatprep.subr.mxu0 0.0
    %4562 = vmatpush1.msra.mxu0 %v4535
    %4563 = vmatprep.subr.mxu0 0.0
    %4564 = vmatpush1.msra.mxu0 %v4536
    %4565 = vmatprep.subr.mxu0 0.0
    %4566 = vmatpush1.msra.mxu0 %v4537
    %4567 = vmatprep.subr.mxu0 0.0
    %4568 = vmatpush1.msra.mxu0 %v4538
    %4569 = vmatprep.subr.mxu0 0.0
    %4570 = vmatpush1.msra.mxu0 0.0
    %4571 = vmatprep.subr.mxu0 0.0
    %4572 = vmatpush1.msra.mxu0 0.0
    %4573 = vmatprep.subr.mxu0 0.0
    %4574 = vmatpush1.msra.mxu0 0.0
    %4575 = vmatprep.subr.mxu0 0.0
    %4576 = vmatpush1.msra.mxu0 0.0
    %4577 = vmatprep.subr.mxu0 0.0
    %4578 = vmatpush1.msra.mxu0 0.0
    %4579 = vmatprep.subr.mxu0 0.0
    %4580 = vmatpush1.msra.mxu0 0.0
    %4581 = vmatprep.subr.mxu0 0.0
    %4582 = vmatpush1.msra.mxu0 0.0
    %4583 = vmatprep.subr.mxu0 0.0
    %4584 = vmatpush1.msra.mxu0 0.0
    %4585 = vmatprep.subr.mxu0 0.0
    %4586 = vmatpush1.msra.mxu0 0.0
    %4587 = vmatprep.subr.mxu0 0.0
    %4588 = vmatpush1.msra.mxu0 0.0
    %4589 = vmatprep.subr.mxu0 0.0
    %4590 = vmatpush1.msra.mxu0 0.0
    %4591 = vmatprep.subr.mxu0 0.0
    %4592 = vmatpush1.msra.mxu0 0.0
    %4593 = vmatprep.subr.mxu0 0.0
    %4594 = vmatpush1.msra.mxu0 0.0
    %4595 = vmatprep.subr.mxu0 0.0
    %4596 = vmatpush1.msra.mxu0 0.0
    %4597 = vmatprep.subr.mxu0 0.0
    %4598 = vmatpush1.msra.mxu0 0.0
    %4599 = vmatprep.subr.mxu0 0.0
    %4600 = vmatpush1.msra.mxu0 0.0
    %4601 = vmatprep.subr.mxu0 0.0
    %4602 = vmatpush1.msra.mxu0 0.0
    %4603 = vmatprep.subr.mxu0 0.0
    %4604 = vmatpush1.msra.mxu0 0.0
    %4605 = vmatprep.subr.mxu0 0.0
    %4606 = vmatpush1.msra.mxu0 0.0
    %4607 = vmatprep.subr.mxu0 0.0
    %4608 = vmatpush1.msra.mxu0 0.0
    %4609 = vmatprep.subr.mxu0 0.0
    %4610 = vmatpush1.msra.mxu0 0.0
    %4611 = vmatprep.subr.mxu0 0.0
    %4612 = vmatpush1.msra.mxu0 0.0
    %4613 = vmatprep.subr.mxu0 0.0
    %4614 = vmatpush1.msra.mxu0 0.0
    %4615 = vmatprep.subr.mxu0 0.0
    %4616 = vmatpush1.msra.mxu0 0.0
    %4617 = vmatprep.mubr.f32.mxu0 0.0
    %4618 = vmatmul.mubr.f32.gmra.mrb[0].mxu0 %v4548
    %v4619 = vpop.f32.mrb[0].mxu0
    %v4620 = vadd.f32 %v4544, %v4619
    %v4621 = vpop.f32.mrb[0].mxu0
    %4622 = vmatprep.mubr.f32.mxu0 0.0
    %4623 = vmatmul.mubr.f32.gmra.mrb[0].mxu0 %v4551
    %v4624 = vpop.f32.mrb[0].mxu0
    %v4625 = vadd.f32 %v4544, %v4624
    %v4626 = vpop.f32.mrb[0].mxu0
    %4627 = vdwg.mxu0
    %v4628 = vadd.f32 %v4435, %v4620
    %v4629 = vadd.f32 %v4436, %v4625
    %v4630 = vsel %vm178, %v4628, 0.0
    %4631 = vadd.xlane.f32.xlu0 %v4630
    %v4632 = vpop.xlane.xlu0 %4631
    %v4633 = vsel %vm178, %v4629, 0.0
    %4634 = vadd.xlane.f32.xlu0 %v4633
    %v4635 = vpop.xlane.xlu0 %4634
    %v4636 = vmul.f32 %v4632, %v2204
    %v4637 = vmul.f32 %v4635, %v2204
    %v4638 = vsub.f32 %v4628, %v4636
    %v4639 = vsub.f32 %v4629, %v4637
    %v4640 = vmul.f32 %v4638, %v4638
    %v4641 = vmul.f32 %v4639, %v4639
    %v4642 = vsel %vm178, %v4640, 0.0
    %4643 = vadd.xlane.f32.xlu0 %v4642
    %v4644 = vpop.xlane.xlu0 %4643
    %v4645 = vsel %vm178, %v4641, 0.0
    %4646 = vadd.xlane.f32.xlu0 %v4645
    %v4647 = vpop.xlane.xlu0 %4646
    %v4648 = vmul.f32 %v4644, %v2204
    %v4649 = vmul.f32 %v4647, %v2204
    %v4650 = vadd.f32 %v4648, 1e-05
    %v4651 = vadd.f32 %v4649, 1e-05
    %v4652 = vrsqrt.pop %v4650
    %v4653 = vrsqrt.pop %v4651
    %v4654 = vmul.f32 %v4638, %v4652
    %v4655 = vmul.f32 %v4639, %v4653
    %v4656 = vld [vmem:[%s22] sm:$0x1]
    %v4658 = vlaneseq
    %v4659 = vshrl.u32 %v4658, 7
    %v4660 = vsub.s32 0, %v4659
    %v4661 = vrot.slane %v4656, %v4660
    %v4663 = vmul.f32 %v4654, %v4661
    %v4664 = vmul.f32 %v4655, %v4661
    %v4665 = vld [vmem:[%s23] sm:$0x1]
    %v4667 = vlaneseq
    %v4668 = vshrl.u32 %v4667, 7
    %v4669 = vsub.s32 0, %v4668
    %v4670 = vrot.slane %v4665, %v4669
    %v4672 = vadd.f32 %v4663, %v4670
    %v4673 = vadd.f32 %v4664, %v4670
    %4674 = vst.msk [vmem:[#allocation11] sm:$0xff] %vm178, %v4672
    %4675 = vst.msk [vmem:[#allocation11 + $0x8] sm:$0xff] %vm178, %v4673
    // Predicated region
    $region118: #{decoder_layer.1} parent=1 // pred_check
      _
    $region119: #{decoder_layer.1} parent=1 // pred_check_branch
      %4677 = sbr.rel (0) target = $region121
    $region120: #{decoder_layer.1} parent=1 // pred_region
      %s4679 = ssub.s32 256, 256
      %4680 = vsyncadd [#allocation4], %s4679
      %s4681 = sshll.u32 [#allocation11], 4
      %s4682 = int_to_ptr.vmem [resolvable:$true] %s4681
      %4687 = dma.vmem_to_hbm [thread:$0]  %s4682, 256, %s24, [#allocation4], 128, 128, 8
    $region121: #{decoder_layer.1} parent=1 // pred_fallthru
      _
    // Predicated region
    $region122: #{decoder_layer.1} parent=1 // pred_check
      _
    $region123: #{decoder_layer.1} parent=1 // pred_check_branch
      %4689 = sbr.rel (0) target = $region125
    $region124: #{decoder_layer.1} parent=1 // pred_region
      %s4691 = ssub.s32 1024, 1024
      %4692 = vsyncadd [#allocation13], %s4691
      %s4693 = sshll.u32 [#allocation12], 4
      %s4694 = int_to_ptr.vmem [resolvable:$true] %s4693
      %4699 = dma.vmem_to_hbm [thread:$0]  %s4694, 1024, %s25, [#allocation13], 128, 128, 8
    $region125: #{decoder_layer.1} parent=1 // pred_fallthru
      _
    // Predicated region
    $region126: #{decoder_layer.1} parent=1 // pred_check
      _
    $region127: #{decoder_layer.1} parent=1 // pred_check_branch
      %4701 = sbr.rel (0) target = $region129
    $region128: #{decoder_layer.1} parent=1 // pred_region
      %4702 = dma.done [#allocation4], 256
    $region129: #{decoder_layer.1} parent=1 // pred_fallthru
      _
    // Predicated region
    $region130: #{decoder_layer.1} parent=1 // pred_check
      _
    $region131: #{decoder_layer.1} parent=1 // pred_check_branch
      %4704 = sbr.rel (0) target = $region133
    $region132: #{decoder_layer.1} parent=1 // pred_region
      %4705 = dma.done [#allocation13], 1024
    $region133: #{decoder_layer.1} parent=1 // pred_fallthru
      _
    %4706 = vsyncpa [#allocation3], 1
    %4707 = vsyncpa [#allocation6], 1
    %4708 = vsyncpa [#allocation9], 1
    %4709 = vsyncpa [#allocation4], 1
    %4710 = vsyncpa [#allocation13], 1

</llo_original>
